<compile_context>
chip_gen: v6e
topology: v6e:2x2x1
jax: 0.10.0
libtpu: 0.0.40
codegen_flags: <defaults>
</compile_context>

<pallas_src>
import math
from functools import partial

import jax
import jax.numpy as jnp
from jax.experimental import pallas as pl
from jax.experimental.pallas import tpu as pltpu

NEG_INF = -1e18


# ----------------------------- in-kernel helpers -----------------------------

def _layernorm(x, w, b, eps=1e-6):
    # x: [N, D], w/b: [1, D]   (nn.LayerNorm(eps=1e-6) semantics, biased variance)
    mu = jnp.mean(x, axis=-1, keepdims=True)
    xc = x - mu
    var = jnp.mean(xc * xc, axis=-1, keepdims=True)
    return xc * jax.lax.rsqrt(var + eps) * w + b


def _mha(q, k, v, bias, heads, dph, bb, ent_score=None):
    """Batched multi-head scaled-dot attention.

    q:    [bb*Tq, D] f32  (1/sqrt(d_head) folded into the query projection)
    k, v: [bb*Tk, D] f32
    bias: [bb, Tq, Tk] f32 additive mask bias (0 / NEG_INF) -- per batch element,
          NOT block-diagonal, so attention FLOPs stay O(bb * Tq * Tk).
    ent_score: optional [bb, 1, Tk] entity scores (MultiHeadedAttentionWithScore).
    Returns per-head contexts [H, bb*Tq, dph] (head merge happens in the output proj).
    """
    D = heads * dph
    Tq = q.shape[0] // bb
    Tk = k.shape[0] // bb
    bf16 = jnp.bfloat16

    qb = q.astype(bf16).reshape(bb, Tq, D)
    kb = k.astype(bf16).reshape(bb, Tk, D)
    vb = v.astype(bf16).reshape(bb, Tk, D)

    # Head split: one static lane slice per head (proven lowering path on this Mosaic
    # version); heads and folded batch share a single *leading* einsum batch dim.
    # TODO(synk): collapse to a single relayout once 2-batch-dim dot_general lowers.
    qz = jnp.stack([qb[:, :, h * dph:(h + 1) * dph] for h in range(heads)],
                   axis=0).reshape(heads * bb, Tq, dph)
    kz = jnp.stack([kb[:, :, h * dph:(h + 1) * dph] for h in range(heads)],
                   axis=0).reshape(heads * bb, Tk, dph)
    vz = jnp.stack([vb[:, :, h * dph:(h + 1) * dph] for h in range(heads)],
                   axis=0).reshape(heads * bb, Tk, dph)

    # bf16 operands, f32 accumulation (native MXU path).
    scores = jnp.einsum('zqd,zkd->zqk', qz, kz,
                        preferred_element_type=jnp.float32)           # [H*bb, Tq, Tk]
    scores = scores.reshape(heads, bb, Tq, Tk) + bias[None]
    m = jnp.max(scores, axis=-1, keepdims=True)
    e = jnp.exp(scores - m)
    attn = e * pl.reciprocal(jnp.sum(e, axis=-1, keepdims=True), approx=True)
    if ent_score is not None:
        # TODO(synk): MultiHeadedAttentionWithScore source not provided; we weight the
        # post-softmax attention by the entity scores (no renormalization).
        attn = attn * ent_score[None]

    ctx = jnp.einsum('zqk,zkd->zqd',
                     attn.astype(bf16).reshape(heads * bb, Tq, Tk), vz,
                     preferred_element_type=jnp.float32)              # [H*bb, Tq, dph]
    return ctx.reshape(heads, bb * Tq, dph)


def _head_merge_proj(ctx_heads, wo_heads, bias):
    """concat_h(ctx_h) @ Wo + b, computed as an accumulated sum of per-head matmuls.

    ctx_heads: [H, R, dph] f32, wo_heads: [H, dph, Dout] bf16, bias: [1, Dout] f32.
    Avoids the H-way lane concatenation (pure relayout) flagged by the perf review.
    """
    heads = ctx_heads.shape[0]
    ctx_bf = ctx_heads.astype(jnp.bfloat16)
    acc = jnp.dot(ctx_bf[0], wo_heads[0], preferred_element_type=jnp.float32)
    for h in range(1, heads):
        acc = acc + jnp.dot(ctx_bf[h], wo_heads[h],
                            preferred_element_type=jnp.float32)
    return acc + bias


# --------------------------------- the kernel --------------------------------

def decoder_layer_kernel(
    x_ref, mem_ref, ent_ref, escore_ref,
    tgt_bias_ref, src_bias_ref, ent_bias_ref,     # per-batch pad biases [1, bb, T, K]
    ln_ref,                                        # [6, D]: ln1 w,b | ln2 w,b | ffn-ln w,b
    qkv_w_ref, qkv_b_ref,                          # fused self-attn QKV [D, 3D]
    self_o_w_ref, self_o_b_ref,                    # [H, dph, D], [1, D]
    ctx_q_w_ref, ctx_q_b_ref,                      # fused word|graph query proj [D, 2D]
    word_kv_w_ref, word_kv_b_ref,                  # [D, 2D]
    graph_kv_w_ref, graph_kv_b_ref,                # [D, 2D]
    word_o_w_ref, word_o_b_ref,                    # [H, dph, D], [1, D]
    graph_o_w_ref, graph_o_b_ref,                  # [H, dph, D], [1, D]
    fusion_w_ref, fusion_b_ref,                    # [1, 2D], [1, 1]
    ffn_w1_ref, ffn_b1_ref, ffn_w2_ref, ffn_b2_ref,
    out_ref, allin_ref,                            # [1, bb*T, D] each
    *, heads, dph, bb):
    D = heads * dph
    bf16 = jnp.bfloat16

    x = x_ref[0]                    # [bb*T, D]
    mem = mem_ref[0]                # [bb*S, D]
    ent = ent_ref[0]                # [bb*E, D]
    escore = escore_ref[0]          # [bb, 1, E]
    tgt_bias = tgt_bias_ref[0]      # [bb, T, T] pad-only
    src_bias = src_bias_ref[0]      # [bb, T, S]
    ent_bias = ent_bias_ref[0]      # [bb, T, E]
    ln = ln_ref[...]
    T = tgt_bias.shape[1]

    # ---- layer_norm_1; all_input is stored immediately (ends its live range) ----
    input_norm = _layernorm(x, ln[0:1], ln[1:2])
    allin_ref[0] = input_norm

    # causal (subsequent) mask built on the VPU from iota -- no dense DMA needed
    row = jax.lax.broadcasted_iota(jnp.int32, (T, T), 0)
    col = jax.lax.broadcasted_iota(jnp.int32, (T, T), 1)
    dec_bias = tgt_bias + jnp.where(col > row, NEG_INF, 0.0)[None]     # [bb, T, T]

    # ---- masked self attention (fused QKV, scale folded into Wq) ----
    qkv = jnp.dot(input_norm.astype(bf16), qkv_w_ref[...],
                  preferred_element_type=jnp.float32) + qkv_b_ref[...]
    ctx_s = _mha(qkv[:, :D], qkv[:, D:2 * D], qkv[:, 2 * D:],
                 dec_bias, heads, dph, bb)
    self_out = _head_merge_proj(ctx_s, self_o_w_ref[...], self_o_b_ref[...])
    query = self_out + x                                   # drop() is identity (eval)

    # ---- layer_norm_2 + word / graph context attention (shared query norm) ----
    query_norm = _layernorm(query, ln[2:3], ln[3:4])
    q_both = jnp.dot(query_norm.astype(bf16), ctx_q_w_ref[...],
                     preferred_element_type=jnp.float32) + ctx_q_b_ref[...]
    kv_word = jnp.dot(mem.astype(bf16), word_kv_w_ref[...],
                      preferred_element_type=jnp.float32) + word_kv_b_ref[...]
    kv_graph = jnp.dot(ent.astype(bf16), graph_kv_w_ref[...],
                       preferred_element_type=jnp.float32) + graph_kv_b_ref[...]

    ctx_w = _mha(q_both[:, :D], kv_word[:, :D], kv_word[:, D:],
                 src_bias, heads, dph, bb)
    ctx_g = _mha(q_both[:, D:], kv_graph[:, :D], kv_graph[:, D:],
                 ent_bias, heads, dph, bb, ent_score=escore)

    word_ctx = _head_merge_proj(ctx_w, word_o_w_ref[...], word_o_b_ref[...])
    graph_ctx = _head_merge_proj(ctx_g, graph_o_w_ref[...], graph_o_b_ref[...])

    # fusion gate: sigmoid(Linear(cat([word, graph], -1))) without the concat
    fw = fusion_w_ref[...]
    gate = jax.nn.sigmoid(
        jnp.sum(word_ctx * fw[:, :D], axis=-1, keepdims=True)
        + jnp.sum(graph_ctx * fw[:, D:], axis=-1, keepdims=True)
        + fusion_b_ref[...])
    fused = gate * word_ctx + (1.0 - gate) * graph_ctx

    # ---- positionwise feed forward (pre-norm, ReLU) with residual ----
    ff_in = fused + query                                  # drop() is identity (eval)
    h = _layernorm(ff_in, ln[4:5], ln[5:6])
    h = jnp.dot(h.astype(bf16), ffn_w1_ref[...],
                preferred_element_type=jnp.float32) + ffn_b1_ref[...]
    h = jnp.maximum(h, 0.0)
    ff_out = jnp.dot(h.astype(bf16), ffn_w2_ref[...],
                     preferred_element_type=jnp.float32) + ffn_b2_ref[...]

    out_ref[0] = ff_out + ff_in


# --------------------------------- wrapper -----------------------------------

def _pick_batch_block(B, T):
    """Fold a few batch elements per grid step so the projection matmuls see a decent M,
    while keeping the per-step working set bounded and the grid long enough to pipeline
    (and to feed both TensorCores on v7x)."""
    bb = 1
    for cand in range(1, B + 1):
        if B % cand == 0 and cand * T <= 512:
            bb = cand
    return bb


def _vmem_limit_bytes():
    """Raise the scoped-VMEM limit on known chips; leave the default elsewhere."""
    try:
        kind = jax.devices()[0].device_kind.lower()
    except Exception:
        return None
    if "v7" in kind:
        return 48 * 1024 * 1024          # 64 MiB physical per TC -> leave headroom
    if "v5" in kind or "v6" in kind:
        return 96 * 1024 * 1024          # 128 MiB physical, default scoped is 16/32 MiB
    return None


def phase1_decoder_layer(inputs, memory_bank, src_pad_mask, tgt_pad_mask,
                         ent_context, ent_pad_mask, ent_score, params,
                         batch_block=None):
    B, T, D = inputs.shape
    S = memory_bank.shape[1]
    E = ent_context.shape[1]
    heads = params["heads"]
    dph = D // heads
    DFF = params["ffn_w1"].shape[1]

    bb = _pick_batch_block(B, T) if batch_block is None else batch_block
    g = B // bb

    # padding masks -> small per-batch additive biases (causal part is built in-kernel)
    tgt_bias = jnp.where(tgt_pad_mask > 0, NEG_INF, 0.0).astype(jnp.float32).reshape(g, bb, T, T)
    src_bias = jnp.where(src_pad_mask > 0, NEG_INF, 0.0).astype(jnp.float32).reshape(g, bb, T, S)
    ent_bias = jnp.where(ent_pad_mask > 0, NEG_INF, 0.0).astype(jnp.float32).reshape(g, bb, T, E)

    # fold bb batch elements per grid step (layout plumbing only)
    x_f = inputs.reshape(g, bb * T, D)
    mem_f = memory_bank.reshape(g, bb * S, D)
    ent_f = ent_context.reshape(g, bb * E, D)
    escore_f = ent_score.astype(jnp.float32).reshape(g, bb, 1, E)

    row3 = lambda shape: pl.BlockSpec(shape, lambda i: (i, 0, 0))
    row4 = lambda shape: pl.BlockSpec(shape, lambda i: (i, 0, 0, 0))
    w2 = lambda shape: pl.BlockSpec(shape, lambda i: (0, 0))
    w3 = lambda shape: pl.BlockSpec(shape, lambda i: (0, 0, 0))
    # Note: weight blocks have constant index maps -> not re-fetched across grid steps.

    in_specs = [
        row3((1, bb * T, D)),                      # inputs rows
        row3((1, bb * S, D)),                      # memory bank rows
        row3((1, bb * E, D)),                      # entity context rows
        row4((1, bb, 1, E)),                       # entity scores
        row4((1, bb, T, T)),                       # tgt pad bias
        row4((1, bb, T, S)),                       # src pad bias
        row4((1, bb, T, E)),                       # ent pad bias
        w2((6, D)),                                # layer-norm params
        w2((D, 3 * D)), w2((1, 3 * D)),            # self-attn fused QKV
        w3((heads, dph, D)), w2((1, D)),           # self-attn out proj (per-head)
        w2((D, 2 * D)), w2((1, 2 * D)),            # fused word|graph query proj
        w2((D, 2 * D)), w2((1, 2 * D)),            # word-attn KV
        w2((D, 2 * D)), w2((1, 2 * D)),            # graph-attn KV
        w3((heads, dph, D)), w2((1, D)),           # word-attn out proj (per-head)
        w3((heads, dph, D)), w2((1, D)),           # graph-attn out proj (per-head)
        w2((1, 2 * D)), w2((1, 1)),                # fusion gate
        w2((D, DFF)), w2((1, DFF)),                # ffn w1/b1
        w2((DFF, D)), w2((1, D)),                  # ffn w2/b2
    ]
    out_specs = [row3((1, bb * T, D)), row3((1, bb * T, D))]
    out_shape = (jax.ShapeDtypeStruct((g, bb * T, D), jnp.float32),
                 jax.ShapeDtypeStruct((g, bb * T, D), jnp.float32))

    kernel = partial(decoder_layer_kernel, heads=heads, dph=dph, bb=bb)
    output, all_input = pl.pallas_call(
        kernel,
        grid=(g,),
        in_specs=in_specs,
        out_specs=out_specs,
        out_shape=out_shape,
        compiler_params=pltpu.CompilerParams(
            dimension_semantics=("parallel",),
            vmem_limit_bytes=_vmem_limit_bytes()),
    )(x_f, mem_f, ent_f, escore_f, tgt_bias, src_bias, ent_bias,
      params["ln"],
      params["self_qkv_w"], params["self_qkv_b"],
      params["self_o_w"], params["self_o_b"],
      params["ctx_q_w"], params["ctx_q_b"],
      params["word_kv_w"], params["word_kv_b"],
      params["graph_kv_w"], params["graph_kv_b"],
      params["word_o_w"], params["word_o_b"],
      params["graph_o_w"], params["graph_o_b"],
      params["fusion_w"], params["fusion_b"],
      params["ffn_w1"], params["ffn_b1"], params["ffn_w2"], params["ffn_b2"])

    return output.reshape(B, T, D), all_input.reshape(B, T, D)


# --------------------------- deterministic params ----------------------------

def init_params(key, d_model, heads, d_ff):
    D = d_model
    dph = D // heads
    scale = 1.0 / math.sqrt(dph)
    keys = iter(jax.random.split(key, 48))
    w = lambda shape: (0.02 * jax.random.normal(next(keys), shape)).astype(jnp.float32)
    bf = lambda a: a.astype(jnp.bfloat16)
    head_split = lambda wo: wo.reshape(heads, dph, D)    # [D(in, head-major), D] -> [H, dph, D]

    def attn_raw():  # weights laid out [in, out]
        return dict(wq=w((D, D)), wk=w((D, D)), wv=w((D, D)), wo=w((D, D)),
                    bq=w((1, D)), bk=w((1, D)), bv=w((1, D)), bo=w((1, D)))

    a_s, a_w, a_g = attn_raw(), attn_raw(), attn_raw()
    ln = jnp.concatenate([jnp.ones((1, D)), jnp.zeros((1, D))] * 3,
                         axis=0).astype(jnp.float32)

    return dict(
        heads=heads,
        ln=ln,
        # self attention: fused [Wq*scale | Wk | Wv]
        self_qkv_w=bf(jnp.concatenate([a_s["wq"] * scale, a_s["wk"], a_s["wv"]], axis=1)),
        self_qkv_b=jnp.concatenate([a_s["bq"] * scale, a_s["bk"], a_s["bv"]], axis=1),
        self_o_w=bf(head_split(a_s["wo"])), self_o_b=a_s["bo"],
        # word+graph attention share query_norm -> fused query projection
        ctx_q_w=bf(jnp.concatenate([a_w["wq"] * scale, a_g["wq"] * scale], axis=1)),
        ctx_q_b=jnp.concatenate([a_w["bq"] * scale, a_g["bq"] * scale], axis=1),
        word_kv_w=bf(jnp.concatenate([a_w["wk"], a_w["wv"]], axis=1)),
        word_kv_b=jnp.concatenate([a_w["bk"], a_w["bv"]], axis=1),
        graph_kv_w=bf(jnp.concatenate([a_g["wk"], a_g["wv"]], axis=1)),
        graph_kv_b=jnp.concatenate([a_g["bk"], a_g["bv"]], axis=1),
        word_o_w=bf(head_split(a_w["wo"])), word_o_b=a_w["bo"],
        graph_o_w=bf(head_split(a_g["wo"])), graph_o_b=a_g["bo"],
        fusion_w=w((1, 2 * D)), fusion_b=w((1, 1)),
        ffn_w1=bf(w((D, d_ff))), ffn_b1=w((1, d_ff)),
        ffn_w2=bf(w((d_ff, D))), ffn_b2=w((1, D)),
    )


if __name__ == "__main__":
    B, T, S, E = 2, 8, 16, 8
    D, H, DFF = 32, 4, 64     # smoke-test sizes; production configs should keep D, dph, DFF
                              # multiples of 128 on the lane axis.

    root = jax.random.PRNGKey(0)
    kp, ki, km, ke, ks = jax.random.split(root, 5)

    params = init_params(kp, D, H, DFF)

    inputs = jax.random.normal(ki, (B, T, D), jnp.float32)
    memory_bank = jax.random.normal(km, (B, S, D), jnp.float32)
    ent_context = jax.random.normal(ke, (B, E, D), jnp.float32)
    ent_score = jax.nn.sigmoid(jax.random.normal(ks, (B, 1, E))).astype(jnp.float32)

    # padding masks (1 == padded)
    tgt_pad_mask = jnp.zeros((B, T, T), jnp.int32)
    src_pad_mask = jnp.zeros((B, T, S), jnp.int32).at[1, :, S - 2:].set(1)
    ent_pad_mask = jnp.zeros((B, T, E), jnp.int32).at[1, :, E - 1:].set(1)

    output, all_input = phase1_decoder_layer(
        inputs, memory_bank, src_pad_mask, tgt_pad_mask,
        ent_context, ent_pad_mask, ent_score, params)

    jax.block_until_ready((output, all_input))
    assert output.shape == (B, T, D) and all_input.shape == (B, T, D)
    assert bool(jnp.all(jnp.isfinite(output))) and bool(jnp.all(jnp.isfinite(all_input)))
    print("KERNEL_OK")
</pallas_src>

<mosaic_0001>
module attributes {stable_mosaic.version = 11 : i64} {
  func.func @decoder_layer_kernel(%arg0: i32, %arg1: memref<1x16x32xf32, #tpu.memory_space<vmem>>, %arg2: memref<1x32x32xf32, #tpu.memory_space<vmem>>, %arg3: memref<1x16x32xf32, #tpu.memory_space<vmem>>, %arg4: memref<1x2x1x8xf32, #tpu.memory_space<vmem>>, %arg5: memref<1x2x8x8xf32, #tpu.memory_space<vmem>>, %arg6: memref<1x2x8x16xf32, #tpu.memory_space<vmem>>, %arg7: memref<1x2x8x8xf32, #tpu.memory_space<vmem>>, %arg8: memref<6x32xf32, #tpu.memory_space<vmem>>, %arg9: memref<32x96xbf16, #tpu.memory_space<vmem>>, %arg10: memref<1x96xf32, #tpu.memory_space<vmem>>, %arg11: memref<4x8x32xbf16, #tpu.memory_space<vmem>>, %arg12: memref<1x32xf32, #tpu.memory_space<vmem>>, %arg13: memref<32x64xbf16, #tpu.memory_space<vmem>>, %arg14: memref<1x64xf32, #tpu.memory_space<vmem>>, %arg15: memref<32x64xbf16, #tpu.memory_space<vmem>>, %arg16: memref<1x64xf32, #tpu.memory_space<vmem>>, %arg17: memref<32x64xbf16, #tpu.memory_space<vmem>>, %arg18: memref<1x64xf32, #tpu.memory_space<vmem>>, %arg19: memref<4x8x32xbf16, #tpu.memory_space<vmem>>, %arg20: memref<1x32xf32, #tpu.memory_space<vmem>>, %arg21: memref<4x8x32xbf16, #tpu.memory_space<vmem>>, %arg22: memref<1x32xf32, #tpu.memory_space<vmem>>, %arg23: memref<1x64xf32, #tpu.memory_space<vmem>>, %arg24: memref<1x1xf32, #tpu.memory_space<vmem>>, %arg25: memref<32x64xbf16, #tpu.memory_space<vmem>>, %arg26: memref<1x64xf32, #tpu.memory_space<vmem>>, %arg27: memref<64x32xbf16, #tpu.memory_space<vmem>>, %arg28: memref<1x32xf32, #tpu.memory_space<vmem>>, %arg29: memref<1x16x32xf32, #tpu.memory_space<vmem>>, %arg30: memref<1x16x32xf32, #tpu.memory_space<vmem>>) attributes {dimension_semantics = [#tpu.dimension_semantics<parallel>], iteration_bounds = array<i64: 1>, scalar_prefetch = 0 : i64, scratch_operands = 0 : i64, tpu.core_type = #tpu.core_type<tc>, window_params = [{transform_indices = @transform_0, window_bounds = array<i64: 1, 16, 32>}, {transform_indices = @transform_1, window_bounds = array<i64: 1, 32, 32>}, {transform_indices = @transform_2, window_bounds = array<i64: 1, 16, 32>}, {transform_indices = @transform_3, window_bounds = array<i64: 1, 2, 1, 8>}, {transform_indices = @transform_4, window_bounds = array<i64: 1, 2, 8, 8>}, {transform_indices = @transform_5, window_bounds = array<i64: 1, 2, 8, 16>}, {transform_indices = @transform_6, window_bounds = array<i64: 1, 2, 8, 8>}, {pipeline_mode = #tpu.pipeline_mode<synchronous>, transform_indices = @transform_7, window_bounds = array<i64: 6, 32>}, {pipeline_mode = #tpu.pipeline_mode<synchronous>, transform_indices = @transform_8, window_bounds = array<i64: 32, 96>}, {pipeline_mode = #tpu.pipeline_mode<synchronous>, transform_indices = @transform_9, window_bounds = array<i64: 1, 96>}, {pipeline_mode = #tpu.pipeline_mode<synchronous>, transform_indices = @transform_10, window_bounds = array<i64: 4, 8, 32>}, {pipeline_mode = #tpu.pipeline_mode<synchronous>, transform_indices = @transform_11, window_bounds = array<i64: 1, 32>}, {pipeline_mode = #tpu.pipeline_mode<synchronous>, transform_indices = @transform_12, window_bounds = array<i64: 32, 64>}, {pipeline_mode = #tpu.pipeline_mode<synchronous>, transform_indices = @transform_13, window_bounds = array<i64: 1, 64>}, {pipeline_mode = #tpu.pipeline_mode<synchronous>, transform_indices = @transform_14, window_bounds = array<i64: 32, 64>}, {pipeline_mode = #tpu.pipeline_mode<synchronous>, transform_indices = @transform_15, window_bounds = array<i64: 1, 64>}, {pipeline_mode = #tpu.pipeline_mode<synchronous>, transform_indices = @transform_16, window_bounds = array<i64: 32, 64>}, {pipeline_mode = #tpu.pipeline_mode<synchronous>, transform_indices = @transform_17, window_bounds = array<i64: 1, 64>}, {pipeline_mode = #tpu.pipeline_mode<synchronous>, transform_indices = @transform_18, window_bounds = array<i64: 4, 8, 32>}, {pipeline_mode = #tpu.pipeline_mode<synchronous>, transform_indices = @transform_19, window_bounds = array<i64: 1, 32>}, {pipeline_mode = #tpu.pipeline_mode<synchronous>, transform_indices = @transform_20, window_bounds = array<i64: 4, 8, 32>}, {pipeline_mode = #tpu.pipeline_mode<synchronous>, transform_indices = @transform_21, window_bounds = array<i64: 1, 32>}, {pipeline_mode = #tpu.pipeline_mode<synchronous>, transform_indices = @transform_22, window_bounds = array<i64: 1, 64>}, {pipeline_mode = #tpu.pipeline_mode<synchronous>, transform_indices = @transform_23, window_bounds = array<i64: 1, 1>}, {pipeline_mode = #tpu.pipeline_mode<synchronous>, transform_indices = @transform_24, window_bounds = array<i64: 32, 64>}, {pipeline_mode = #tpu.pipeline_mode<synchronous>, transform_indices = @transform_25, window_bounds = array<i64: 1, 64>}, {pipeline_mode = #tpu.pipeline_mode<synchronous>, transform_indices = @transform_26, window_bounds = array<i64: 64, 32>}, {pipeline_mode = #tpu.pipeline_mode<synchronous>, transform_indices = @transform_27, window_bounds = array<i64: 1, 32>}, {transform_indices = @transform_28, window_bounds = array<i64: 1, 16, 32>}, {transform_indices = @transform_29, window_bounds = array<i64: 1, 16, 32>}]} {
    %c0 = arith.constant 0 : index
    %c0_0 = arith.constant 0 : index
    %c0_1 = arith.constant 0 : index
    %0 = vector.load %arg1[%c0, %c0_0, %c0_1] : memref<1x16x32xf32, #tpu.memory_space<vmem>>, vector<1x16x32xf32>
    %1 = vector.shape_cast %0 : vector<1x16x32xf32> to vector<16x32xf32>
    %c0_2 = arith.constant 0 : index
    %c0_3 = arith.constant 0 : index
    %c0_4 = arith.constant 0 : index
    %2 = vector.load %arg2[%c0_2, %c0_3, %c0_4] : memref<1x32x32xf32, #tpu.memory_space<vmem>>, vector<1x32x32xf32>
    %3 = vector.shape_cast %2 : vector<1x32x32xf32> to vector<32x32xf32>
    %c0_5 = arith.constant 0 : index
    %c0_6 = arith.constant 0 : index
    %c0_7 = arith.constant 0 : index
    %4 = vector.load %arg3[%c0_5, %c0_6, %c0_7] : memref<1x16x32xf32, #tpu.memory_space<vmem>>, vector<1x16x32xf32>
    %5 = vector.shape_cast %4 : vector<1x16x32xf32> to vector<16x32xf32>
    %c0_8 = arith.constant 0 : index
    %c0_9 = arith.constant 0 : index
    %c0_10 = arith.constant 0 : index
    %c0_11 = arith.constant 0 : index
    %6 = vector.load %arg4[%c0_8, %c0_9, %c0_10, %c0_11] : memref<1x2x1x8xf32, #tpu.memory_space<vmem>>, vector<1x2x1x8xf32>
    %7 = vector.shape_cast %6 : vector<1x2x1x8xf32> to vector<2x1x8xf32>
    %c0_12 = arith.constant 0 : index
    %c0_13 = arith.constant 0 : index
    %c0_14 = arith.constant 0 : index
    %c0_15 = arith.constant 0 : index
    %8 = vector.load %arg5[%c0_12, %c0_13, %c0_14, %c0_15] : memref<1x2x8x8xf32, #tpu.memory_space<vmem>>, vector<1x2x8x8xf32>
    %9 = vector.shape_cast %8 : vector<1x2x8x8xf32> to vector<2x8x8xf32>
    %c0_16 = arith.constant 0 : index
    %c0_17 = arith.constant 0 : index
    %c0_18 = arith.constant 0 : index
    %c0_19 = arith.constant 0 : index
    %10 = vector.load %arg6[%c0_16, %c0_17, %c0_18, %c0_19] : memref<1x2x8x16xf32, #tpu.memory_space<vmem>>, vector<1x2x8x16xf32>
    %11 = vector.shape_cast %10 : vector<1x2x8x16xf32> to vector<2x8x16xf32>
    %c0_20 = arith.constant 0 : index
    %c0_21 = arith.constant 0 : index
    %c0_22 = arith.constant 0 : index
    %c0_23 = arith.constant 0 : index
    %12 = vector.load %arg7[%c0_20, %c0_21, %c0_22, %c0_23] : memref<1x2x8x8xf32, #tpu.memory_space<vmem>>, vector<1x2x8x8xf32>
    %13 = vector.shape_cast %12 : vector<1x2x8x8xf32> to vector<2x8x8xf32>
    %c0_24 = arith.constant 0 : index
    %c0_25 = arith.constant 0 : index
    %14 = vector.load %arg8[%c0_24, %c0_25] : memref<6x32xf32, #tpu.memory_space<vmem>>, vector<6x32xf32>
    %15 = vector.extract_strided_slice %14 {offsets = [0, 0], sizes = [1, 32], strides = [1, 1]} : vector<6x32xf32> to vector<1x32xf32>
    %16 = vector.extract_strided_slice %14 {offsets = [1, 0], sizes = [1, 32], strides = [1, 1]} : vector<6x32xf32> to vector<1x32xf32>
    %cst = arith.constant dense<0.000000e+00> : vector<16xf32>
    %17 = vector.multi_reduction <add>, %1, %cst [1] : vector<16x32xf32> to vector<16xf32>
    %18 = vector.shape_cast %17 : vector<16xf32> to vector<16x1xf32>
    %cst_26 = arith.constant 3.200000e+01 : f32
    %19 = vector.broadcast %cst_26 : f32 to vector<16x1xf32>
    %20 = arith.divf %18, %19 : vector<16x1xf32>
    %21 = vector.broadcast %20 : vector<16x1xf32> to vector<16x32xf32>
    %22 = arith.subf %1, %21 : vector<16x32xf32>
    %23 = arith.mulf %22, %22 : vector<16x32xf32>
    %cst_27 = arith.constant dense<0.000000e+00> : vector<16xf32>
    %24 = vector.multi_reduction <add>, %23, %cst_27 [1] : vector<16x32xf32> to vector<16xf32>
    %25 = vector.shape_cast %24 : vector<16xf32> to vector<16x1xf32>
    %cst_28 = arith.constant 3.200000e+01 : f32
    %26 = vector.broadcast %cst_28 : f32 to vector<16x1xf32>
    %27 = arith.divf %25, %26 : vector<16x1xf32>
    %cst_29 = arith.constant 9.99999997E-7 : f32
    %28 = vector.broadcast %cst_29 : f32 to vector<16x1xf32>
    %29 = arith.addf %27, %28 : vector<16x1xf32>
    %30 = math.rsqrt %29 : vector<16x1xf32>
    %31 = vector.broadcast %30 : vector<16x1xf32> to vector<16x32xf32>
    %32 = arith.mulf %22, %31 : vector<16x32xf32>
    %33 = vector.broadcast %15 : vector<1x32xf32> to vector<16x32xf32>
    %34 = arith.mulf %32, %33 : vector<16x32xf32>
    %35 = vector.broadcast %16 : vector<1x32xf32> to vector<16x32xf32>
    %36 = arith.addf %34, %35 : vector<16x32xf32>
    %c0_30 = arith.constant 0 : index
    %c0_31 = arith.constant 0 : index
    %c0_32 = arith.constant 0 : index
    %37 = vector.load %arg30[%c0_30, %c0_31, %c0_32] : memref<1x16x32xf32, #tpu.memory_space<vmem>>, vector<1x16x32xf32>
    %38 = vector.shape_cast %37 : vector<1x16x32xf32> to vector<16x32xf32>
    %39 = vector.shape_cast %36 : vector<16x32xf32> to vector<1x16x32xf32>
    tpu.vector_store %arg30[%c0_30, %c0_31, %c0_32], %39 {strides = array<i32>} : memref<1x16x32xf32, #tpu.memory_space<vmem>>, vector<1x16x32xf32>,
    %40 = tpu.iota {dimensions = array<i32: 0>} : vector<8x8xi32>
    %41 = tpu.iota {dimensions = array<i32: 1>} : vector<8x8xi32>
    %42 = arith.cmpi sgt, %41, %40 : vector<8x8xi32>
    %cst_33 = arith.constant -9.99999984E+17 : f32
    %cst_34 = arith.constant 0.000000e+00 : f32
    %43 = vector.broadcast %cst_33 : f32 to vector<8x8xf32>
    %44 = vector.broadcast %cst_34 : f32 to vector<8x8xf32>
    %45 = arith.select %42, %43, %44 : vector<8x8xi1>, vector<8x8xf32>
    %46 = vector.shape_cast %45 : vector<8x8xf32> to vector<1x8x8xf32>
    %47 = vector.broadcast %46 : vector<1x8x8xf32> to vector<2x8x8xf32>
    %48 = arith.addf %9, %47 : vector<2x8x8xf32>
    %49 = arith.truncf %36 : vector<16x32xf32> to vector<16x32xbf16>
    %c0_35 = arith.constant 0 : index
    %c0_36 = arith.constant 0 : index
    %50 = vector.load %arg9[%c0_35, %c0_36] : memref<32x96xbf16, #tpu.memory_space<vmem>>, vector<32x96xbf16>
    %cst_37 = arith.constant dense<0.000000e+00> : vector<16x96xf32>
    %51 = tpu.matmul %49, %50, %cst_37 {dimension_numbers = #tpu.dot_dimension_numbers<[1], [0], [0], [1], [0, 0, 1, 1], [], []>} : vector<16x32xbf16>, vector<32x96xbf16>, vector<16x96xf32> -> vector<16x96xf32>
    %c0_38 = arith.constant 0 : index
    %c0_39 = arith.constant 0 : index
    %52 = vector.load %arg10[%c0_38, %c0_39] : memref<1x96xf32, #tpu.memory_space<vmem>>, vector<1x96xf32>
    %53 = vector.broadcast %52 : vector<1x96xf32> to vector<16x96xf32>
    %54 = arith.addf %51, %53 : vector<16x96xf32>
    %55 = vector.extract_strided_slice %54 {offsets = [0, 0], sizes = [16, 32], strides = [1, 1]} : vector<16x96xf32> to vector<16x32xf32>
    %56 = vector.extract_strided_slice %54 {offsets = [0, 32], sizes = [16, 32], strides = [1, 1]} : vector<16x96xf32> to vector<16x32xf32>
    %57 = vector.extract_strided_slice %54 {offsets = [0, 64], sizes = [16, 32], strides = [1, 1]} : vector<16x96xf32> to vector<16x32xf32>
    %58 = arith.truncf %55 : vector<16x32xf32> to vector<16x32xbf16>
    %59 = vector.shape_cast %58 : vector<16x32xbf16> to vector<2x8x32xbf16>
    %60 = arith.truncf %56 : vector<16x32xf32> to vector<16x32xbf16>
    %61 = vector.shape_cast %60 : vector<16x32xbf16> to vector<2x8x32xbf16>
    %62 = arith.truncf %57 : vector<16x32xf32> to vector<16x32xbf16>
    %63 = vector.shape_cast %62 : vector<16x32xbf16> to vector<2x8x32xbf16>
    %64 = vector.extract_strided_slice %59 {offsets = [0, 0, 0], sizes = [2, 8, 8], strides = [1, 1, 1]} : vector<2x8x32xbf16> to vector<2x8x8xbf16>
    %65 = vector.extract_strided_slice %59 {offsets = [0, 0, 8], sizes = [2, 8, 8], strides = [1, 1, 1]} : vector<2x8x32xbf16> to vector<2x8x8xbf16>
    %66 = vector.extract_strided_slice %59 {offsets = [0, 0, 16], sizes = [2, 8, 8], strides = [1, 1, 1]} : vector<2x8x32xbf16> to vector<2x8x8xbf16>
    %67 = vector.extract_strided_slice %59 {offsets = [0, 0, 24], sizes = [2, 8, 8], strides = [1, 1, 1]} : vector<2x8x32xbf16> to vector<2x8x8xbf16>
    %68 = vector.shape_cast %64 : vector<2x8x8xbf16> to vector<1x2x8x8xbf16>
    %69 = vector.shape_cast %65 : vector<2x8x8xbf16> to vector<1x2x8x8xbf16>
    %70 = vector.shape_cast %66 : vector<2x8x8xbf16> to vector<1x2x8x8xbf16>
    %71 = vector.shape_cast %67 : vector<2x8x8xbf16> to vector<1x2x8x8xbf16>
    %72 = tpu.concatenate %68, %69, %70, %71 in 0 : vector<1x2x8x8xbf16>, vector<1x2x8x8xbf16>, vector<1x2x8x8xbf16>, vector<1x2x8x8xbf16> -> vector<4x2x8x8xbf16>
    %73 = vector.shape_cast %72 : vector<4x2x8x8xbf16> to vector<8x8x8xbf16>
    %74 = vector.extract_strided_slice %61 {offsets = [0, 0, 0], sizes = [2, 8, 8], strides = [1, 1, 1]} : vector<2x8x32xbf16> to vector<2x8x8xbf16>
    %75 = vector.extract_strided_slice %61 {offsets = [0, 0, 8], sizes = [2, 8, 8], strides = [1, 1, 1]} : vector<2x8x32xbf16> to vector<2x8x8xbf16>
    %76 = vector.extract_strided_slice %61 {offsets = [0, 0, 16], sizes = [2, 8, 8], strides = [1, 1, 1]} : vector<2x8x32xbf16> to vector<2x8x8xbf16>
    %77 = vector.extract_strided_slice %61 {offsets = [0, 0, 24], sizes = [2, 8, 8], strides = [1, 1, 1]} : vector<2x8x32xbf16> to vector<2x8x8xbf16>
    %78 = vector.shape_cast %74 : vector<2x8x8xbf16> to vector<1x2x8x8xbf16>
    %79 = vector.shape_cast %75 : vector<2x8x8xbf16> to vector<1x2x8x8xbf16>
    %80 = vector.shape_cast %76 : vector<2x8x8xbf16> to vector<1x2x8x8xbf16>
    %81 = vector.shape_cast %77 : vector<2x8x8xbf16> to vector<1x2x8x8xbf16>
    %82 = tpu.concatenate %78, %79, %80, %81 in 0 : vector<1x2x8x8xbf16>, vector<1x2x8x8xbf16>, vector<1x2x8x8xbf16>, vector<1x2x8x8xbf16> -> vector<4x2x8x8xbf16>
    %83 = vector.shape_cast %82 : vector<4x2x8x8xbf16> to vector<8x8x8xbf16>
    %84 = vector.extract_strided_slice %63 {offsets = [0, 0, 0], sizes = [2, 8, 8], strides = [1, 1, 1]} : vector<2x8x32xbf16> to vector<2x8x8xbf16>
    %85 = vector.extract_strided_slice %63 {offsets = [0, 0, 8], sizes = [2, 8, 8], strides = [1, 1, 1]} : vector<2x8x32xbf16> to vector<2x8x8xbf16>
    %86 = vector.extract_strided_slice %63 {offsets = [0, 0, 16], sizes = [2, 8, 8], strides = [1, 1, 1]} : vector<2x8x32xbf16> to vector<2x8x8xbf16>
    %87 = vector.extract_strided_slice %63 {offsets = [0, 0, 24], sizes = [2, 8, 8], strides = [1, 1, 1]} : vector<2x8x32xbf16> to vector<2x8x8xbf16>
    %88 = vector.shape_cast %84 : vector<2x8x8xbf16> to vector<1x2x8x8xbf16>
    %89 = vector.shape_cast %85 : vector<2x8x8xbf16> to vector<1x2x8x8xbf16>
    %90 = vector.shape_cast %86 : vector<2x8x8xbf16> to vector<1x2x8x8xbf16>
    %91 = vector.shape_cast %87 : vector<2x8x8xbf16> to vector<1x2x8x8xbf16>
    %92 = tpu.concatenate %88, %89, %90, %91 in 0 : vector<1x2x8x8xbf16>, vector<1x2x8x8xbf16>, vector<1x2x8x8xbf16>, vector<1x2x8x8xbf16> -> vector<4x2x8x8xbf16>
    %93 = vector.shape_cast %92 : vector<4x2x8x8xbf16> to vector<8x8x8xbf16>
    "tpu.trace_start"() <{level = 10 : i32, message = "zqd,zkd->zqk"}> : () -> ()
    %cst_40 = arith.constant dense<0.000000e+00> : vector<8x8x8xf32>
    %94 = tpu.matmul %73, %83, %cst_40 {dimension_numbers = #tpu.dot_dimension_numbers<[2], [2], [1], [1], [0, 0, 0, 1, 1, 1], [0], [0]>} : vector<8x8x8xbf16>, vector<8x8x8xbf16>, vector<8x8x8xf32> -> vector<8x8x8xf32>
    "tpu.trace_stop"() : () -> ()
    %95 = vector.shape_cast %94 : vector<8x8x8xf32> to vector<4x2x8x8xf32>
    %96 = vector.shape_cast %48 : vector<2x8x8xf32> to vector<1x2x8x8xf32>
    %97 = vector.broadcast %96 : vector<1x2x8x8xf32> to vector<4x2x8x8xf32>
    %98 = arith.addf %95, %97 : vector<4x2x8x8xf32>
    %cst_41 = arith.constant dense<0xFF800000> : vector<4x2x8xf32>
    %99 = vector.multi_reduction <maximumf>, %98, %cst_41 [3] : vector<4x2x8x8xf32> to vector<4x2x8xf32>
    %100 = vector.shape_cast %99 : vector<4x2x8xf32> to vector<4x2x8x1xf32>
    %101 = vector.broadcast %100 : vector<4x2x8x1xf32> to vector<4x2x8x8xf32>
    %102 = arith.subf %98, %101 : vector<4x2x8x8xf32>
    %103 = math.exp %102 : vector<4x2x8x8xf32>
    %cst_42 = arith.constant dense<0.000000e+00> : vector<4x2x8xf32>
    %104 = vector.multi_reduction <add>, %103, %cst_42 [3] : vector<4x2x8x8xf32> to vector<4x2x8xf32>
    %105 = vector.shape_cast %104 : vector<4x2x8xf32> to vector<4x2x8x1xf32>
    %106 = tpu.reciprocal %105 {approx = true} : vector<4x2x8x1xf32> -> vector<4x2x8x1xf32>
    %107 = vector.broadcast %106 : vector<4x2x8x1xf32> to vector<4x2x8x8xf32>
    %108 = arith.mulf %103, %107 : vector<4x2x8x8xf32>
    %109 = arith.truncf %108 : vector<4x2x8x8xf32> to vector<4x2x8x8xbf16>
    %110 = vector.shape_cast %109 : vector<4x2x8x8xbf16> to vector<8x8x8xbf16>
    "tpu.trace_start"() <{level = 10 : i32, message = "zqk,zkd->zqd"}> : () -> ()
    %cst_43 = arith.constant dense<0.000000e+00> : vector<8x8x8xf32>
    %111 = tpu.matmul %110, %93, %cst_43 {dimension_numbers = #tpu.dot_dimension_numbers<[2], [1], [1], [2], [0, 0, 0, 1, 1, 2], [0], [0]>} : vector<8x8x8xbf16>, vector<8x8x8xbf16>, vector<8x8x8xf32> -> vector<8x8x8xf32>
    "tpu.trace_stop"() : () -> ()
    %112 = vector.shape_cast %111 : vector<8x8x8xf32> to vector<4x16x8xf32>
    %c0_44 = arith.constant 0 : index
    %c0_45 = arith.constant 0 : index
    %c0_46 = arith.constant 0 : index
    %113 = vector.load %arg11[%c0_44, %c0_45, %c0_46] : memref<4x8x32xbf16, #tpu.memory_space<vmem>>, vector<4x8x32xbf16>
    %c0_47 = arith.constant 0 : index
    %c0_48 = arith.constant 0 : index
    %114 = vector.load %arg12[%c0_47, %c0_48] : memref<1x32xf32, #tpu.memory_space<vmem>>, vector<1x32xf32>
    %115 = arith.truncf %112 : vector<4x16x8xf32> to vector<4x16x8xbf16>
    %116 = vector.extract_strided_slice %115 {offsets = [0, 0, 0], sizes = [1, 16, 8], strides = [1, 1, 1]} : vector<4x16x8xbf16> to vector<1x16x8xbf16>
    %117 = vector.shape_cast %116 : vector<1x16x8xbf16> to vector<16x8xbf16>
    %118 = vector.extract_strided_slice %113 {offsets = [0, 0, 0], sizes = [1, 8, 32], strides = [1, 1, 1]} : vector<4x8x32xbf16> to vector<1x8x32xbf16>
    %119 = vector.shape_cast %118 : vector<1x8x32xbf16> to vector<8x32xbf16>
    %cst_49 = arith.constant dense<0.000000e+00> : vector<16x32xf32>
    %120 = tpu.matmul %117, %119, %cst_49 {dimension_numbers = #tpu.dot_dimension_numbers<[1], [0], [0], [1], [0, 0, 1, 1], [], []>} : vector<16x8xbf16>, vector<8x32xbf16>, vector<16x32xf32> -> vector<16x32xf32>
    %121 = vector.extract_strided_slice %115 {offsets = [1, 0, 0], sizes = [1, 16, 8], strides = [1, 1, 1]} : vector<4x16x8xbf16> to vector<1x16x8xbf16>
    %122 = vector.shape_cast %121 : vector<1x16x8xbf16> to vector<16x8xbf16>
    %123 = vector.extract_strided_slice %113 {offsets = [1, 0, 0], sizes = [1, 8, 32], strides = [1, 1, 1]} : vector<4x8x32xbf16> to vector<1x8x32xbf16>
    %124 = vector.shape_cast %123 : vector<1x8x32xbf16> to vector<8x32xbf16>
    %cst_50 = arith.constant dense<0.000000e+00> : vector<16x32xf32>
    %125 = tpu.matmul %122, %124, %cst_50 {dimension_numbers = #tpu.dot_dimension_numbers<[1], [0], [0], [1], [0, 0, 1, 1], [], []>} : vector<16x8xbf16>, vector<8x32xbf16>, vector<16x32xf32> -> vector<16x32xf32>
    %126 = arith.addf %120, %125 : vector<16x32xf32>
    %127 = vector.extract_strided_slice %115 {offsets = [2, 0, 0], sizes = [1, 16, 8], strides = [1, 1, 1]} : vector<4x16x8xbf16> to vector<1x16x8xbf16>
    %128 = vector.shape_cast %127 : vector<1x16x8xbf16> to vector<16x8xbf16>
    %129 = vector.extract_strided_slice %113 {offsets = [2, 0, 0], sizes = [1, 8, 32], strides = [1, 1, 1]} : vector<4x8x32xbf16> to vector<1x8x32xbf16>
    %130 = vector.shape_cast %129 : vector<1x8x32xbf16> to vector<8x32xbf16>
    %cst_51 = arith.constant dense<0.000000e+00> : vector<16x32xf32>
    %131 = tpu.matmul %128, %130, %cst_51 {dimension_numbers = #tpu.dot_dimension_numbers<[1], [0], [0], [1], [0, 0, 1, 1], [], []>} : vector<16x8xbf16>, vector<8x32xbf16>, vector<16x32xf32> -> vector<16x32xf32>
    %132 = arith.addf %126, %131 : vector<16x32xf32>
    %133 = vector.extract_strided_slice %115 {offsets = [3, 0, 0], sizes = [1, 16, 8], strides = [1, 1, 1]} : vector<4x16x8xbf16> to vector<1x16x8xbf16>
    %134 = vector.shape_cast %133 : vector<1x16x8xbf16> to vector<16x8xbf16>
    %135 = vector.extract_strided_slice %113 {offsets = [3, 0, 0], sizes = [1, 8, 32], strides = [1, 1, 1]} : vector<4x8x32xbf16> to vector<1x8x32xbf16>
    %136 = vector.shape_cast %135 : vector<1x8x32xbf16> to vector<8x32xbf16>
    %cst_52 = arith.constant dense<0.000000e+00> : vector<16x32xf32>
    %137 = tpu.matmul %134, %136, %cst_52 {dimension_numbers = #tpu.dot_dimension_numbers<[1], [0], [0], [1], [0, 0, 1, 1], [], []>} : vector<16x8xbf16>, vector<8x32xbf16>, vector<16x32xf32> -> vector<16x32xf32>
    %138 = arith.addf %132, %137 : vector<16x32xf32>
    %139 = vector.broadcast %114 : vector<1x32xf32> to vector<16x32xf32>
    %140 = arith.addf %138, %139 : vector<16x32xf32>
    %141 = arith.addf %140, %1 : vector<16x32xf32>
    %142 = vector.extract_strided_slice %14 {offsets = [2, 0], sizes = [1, 32], strides = [1, 1]} : vector<6x32xf32> to vector<1x32xf32>
    %143 = vector.extract_strided_slice %14 {offsets = [3, 0], sizes = [1, 32], strides = [1, 1]} : vector<6x32xf32> to vector<1x32xf32>
    %cst_53 = arith.constant dense<0.000000e+00> : vector<16xf32>
    %144 = vector.multi_reduction <add>, %141, %cst_53 [1] : vector<16x32xf32> to vector<16xf32>
    %145 = vector.shape_cast %144 : vector<16xf32> to vector<16x1xf32>
    %cst_54 = arith.constant 3.200000e+01 : f32
    %146 = vector.broadcast %cst_54 : f32 to vector<16x1xf32>
    %147 = arith.divf %145, %146 : vector<16x1xf32>
    %148 = vector.broadcast %147 : vector<16x1xf32> to vector<16x32xf32>
    %149 = arith.subf %141, %148 : vector<16x32xf32>
    %150 = arith.mulf %149, %149 : vector<16x32xf32>
    %cst_55 = arith.constant dense<0.000000e+00> : vector<16xf32>
    %151 = vector.multi_reduction <add>, %150, %cst_55 [1] : vector<16x32xf32> to vector<16xf32>
    %152 = vector.shape_cast %151 : vector<16xf32> to vector<16x1xf32>
    %cst_56 = arith.constant 3.200000e+01 : f32
    %153 = vector.broadcast %cst_56 : f32 to vector<16x1xf32>
    %154 = arith.divf %152, %153 : vector<16x1xf32>
    %cst_57 = arith.constant 9.99999997E-7 : f32
    %155 = vector.broadcast %cst_57 : f32 to vector<16x1xf32>
    %156 = arith.addf %154, %155 : vector<16x1xf32>
    %157 = math.rsqrt %156 : vector<16x1xf32>
    %158 = vector.broadcast %157 : vector<16x1xf32> to vector<16x32xf32>
    %159 = arith.mulf %149, %158 : vector<16x32xf32>
    %160 = vector.broadcast %142 : vector<1x32xf32> to vector<16x32xf32>
    %161 = arith.mulf %159, %160 : vector<16x32xf32>
    %162 = vector.broadcast %143 : vector<1x32xf32> to vector<16x32xf32>
    %163 = arith.addf %161, %162 : vector<16x32xf32>
    %164 = arith.truncf %163 : vector<16x32xf32> to vector<16x32xbf16>
    %c0_58 = arith.constant 0 : index
    %c0_59 = arith.constant 0 : index
    %165 = vector.load %arg13[%c0_58, %c0_59] : memref<32x64xbf16, #tpu.memory_space<vmem>>, vector<32x64xbf16>
    %cst_60 = arith.constant dense<0.000000e+00> : vector<16x64xf32>
    %166 = tpu.matmul %164, %165, %cst_60 {dimension_numbers = #tpu.dot_dimension_numbers<[1], [0], [0], [1], [0, 0, 1, 1], [], []>} : vector<16x32xbf16>, vector<32x64xbf16>, vector<16x64xf32> -> vector<16x64xf32>
    %c0_61 = arith.constant 0 : index
    %c0_62 = arith.constant 0 : index
    %167 = vector.load %arg14[%c0_61, %c0_62] : memref<1x64xf32, #tpu.memory_space<vmem>>, vector<1x64xf32>
    %168 = vector.broadcast %167 : vector<1x64xf32> to vector<16x64xf32>
    %169 = arith.addf %166, %168 : vector<16x64xf32>
    %170 = arith.truncf %3 : vector<32x32xf32> to vector<32x32xbf16>
    %c0_63 = arith.constant 0 : index
    %c0_64 = arith.constant 0 : index
    %171 = vector.load %arg15[%c0_63, %c0_64] : memref<32x64xbf16, #tpu.memory_space<vmem>>, vector<32x64xbf16>
    %cst_65 = arith.constant dense<0.000000e+00> : vector<32x64xf32>
    %172 = tpu.matmul %170, %171, %cst_65 {dimension_numbers = #tpu.dot_dimension_numbers<[1], [0], [0], [1], [0, 0, 1, 1], [], []>} : vector<32x32xbf16>, vector<32x64xbf16>, vector<32x64xf32> -> vector<32x64xf32>
    %c0_66 = arith.constant 0 : index
    %c0_67 = arith.constant 0 : index
    %173 = vector.load %arg16[%c0_66, %c0_67] : memref<1x64xf32, #tpu.memory_space<vmem>>, vector<1x64xf32>
    %174 = vector.broadcast %173 : vector<1x64xf32> to vector<32x64xf32>
    %175 = arith.addf %172, %174 : vector<32x64xf32>
    %176 = arith.truncf %5 : vector<16x32xf32> to vector<16x32xbf16>
    %c0_68 = arith.constant 0 : index
    %c0_69 = arith.constant 0 : index
    %177 = vector.load %arg17[%c0_68, %c0_69] : memref<32x64xbf16, #tpu.memory_space<vmem>>, vector<32x64xbf16>
    %cst_70 = arith.constant dense<0.000000e+00> : vector<16x64xf32>
    %178 = tpu.matmul %176, %177, %cst_70 {dimension_numbers = #tpu.dot_dimension_numbers<[1], [0], [0], [1], [0, 0, 1, 1], [], []>} : vector<16x32xbf16>, vector<32x64xbf16>, vector<16x64xf32> -> vector<16x64xf32>
    %c0_71 = arith.constant 0 : index
    %c0_72 = arith.constant 0 : index
    %179 = vector.load %arg18[%c0_71, %c0_72] : memref<1x64xf32, #tpu.memory_space<vmem>>, vector<1x64xf32>
    %180 = vector.broadcast %179 : vector<1x64xf32> to vector<16x64xf32>
    %181 = arith.addf %178, %180 : vector<16x64xf32>
    %182 = vector.extract_strided_slice %169 {offsets = [0, 0], sizes = [16, 32], strides = [1, 1]} : vector<16x64xf32> to vector<16x32xf32>
    %183 = vector.extract_strided_slice %175 {offsets = [0, 0], sizes = [32, 32], strides = [1, 1]} : vector<32x64xf32> to vector<32x32xf32>
    %184 = vector.extract_strided_slice %175 {offsets = [0, 32], sizes = [32, 32], strides = [1, 1]} : vector<32x64xf32> to vector<32x32xf32>
    %185 = arith.truncf %182 : vector<16x32xf32> to vector<16x32xbf16>
    %186 = vector.shape_cast %185 : vector<16x32xbf16> to vector<2x8x32xbf16>
    %187 = arith.truncf %183 : vector<32x32xf32> to vector<32x32xbf16>
    %188 = vector.shape_cast %187 : vector<32x32xbf16> to vector<2x16x32xbf16>
    %189 = arith.truncf %184 : vector<32x32xf32> to vector<32x32xbf16>
    %190 = vector.shape_cast %189 : vector<32x32xbf16> to vector<2x16x32xbf16>
    %191 = vector.extract_strided_slice %186 {offsets = [0, 0, 0], sizes = [2, 8, 8], strides = [1, 1, 1]} : vector<2x8x32xbf16> to vector<2x8x8xbf16>
    %192 = vector.extract_strided_slice %186 {offsets = [0, 0, 8], sizes = [2, 8, 8], strides = [1, 1, 1]} : vector<2x8x32xbf16> to vector<2x8x8xbf16>
    %193 = vector.extract_strided_slice %186 {offsets = [0, 0, 16], sizes = [2, 8, 8], strides = [1, 1, 1]} : vector<2x8x32xbf16> to vector<2x8x8xbf16>
    %194 = vector.extract_strided_slice %186 {offsets = [0, 0, 24], sizes = [2, 8, 8], strides = [1, 1, 1]} : vector<2x8x32xbf16> to vector<2x8x8xbf16>
    %195 = vector.shape_cast %191 : vector<2x8x8xbf16> to vector<1x2x8x8xbf16>
    %196 = vector.shape_cast %192 : vector<2x8x8xbf16> to vector<1x2x8x8xbf16>
    %197 = vector.shape_cast %193 : vector<2x8x8xbf16> to vector<1x2x8x8xbf16>
    %198 = vector.shape_cast %194 : vector<2x8x8xbf16> to vector<1x2x8x8xbf16>
    %199 = tpu.concatenate %195, %196, %197, %198 in 0 : vector<1x2x8x8xbf16>, vector<1x2x8x8xbf16>, vector<1x2x8x8xbf16>, vector<1x2x8x8xbf16> -> vector<4x2x8x8xbf16>
    %200 = vector.shape_cast %199 : vector<4x2x8x8xbf16> to vector<8x8x8xbf16>
    %201 = vector.extract_strided_slice %188 {offsets = [0, 0, 0], sizes = [2, 16, 8], strides = [1, 1, 1]} : vector<2x16x32xbf16> to vector<2x16x8xbf16>
    %202 = vector.extract_strided_slice %188 {offsets = [0, 0, 8], sizes = [2, 16, 8], strides = [1, 1, 1]} : vector<2x16x32xbf16> to vector<2x16x8xbf16>
    %203 = vector.extract_strided_slice %188 {offsets = [0, 0, 16], sizes = [2, 16, 8], strides = [1, 1, 1]} : vector<2x16x32xbf16> to vector<2x16x8xbf16>
    %204 = vector.extract_strided_slice %188 {offsets = [0, 0, 24], sizes = [2, 16, 8], strides = [1, 1, 1]} : vector<2x16x32xbf16> to vector<2x16x8xbf16>
    %205 = vector.shape_cast %201 : vector<2x16x8xbf16> to vector<1x2x16x8xbf16>
    %206 = vector.shape_cast %202 : vector<2x16x8xbf16> to vector<1x2x16x8xbf16>
    %207 = vector.shape_cast %203 : vector<2x16x8xbf16> to vector<1x2x16x8xbf16>
    %208 = vector.shape_cast %204 : vector<2x16x8xbf16> to vector<1x2x16x8xbf16>
    %209 = tpu.concatenate %205, %206, %207, %208 in 0 : vector<1x2x16x8xbf16>, vector<1x2x16x8xbf16>, vector<1x2x16x8xbf16>, vector<1x2x16x8xbf16> -> vector<4x2x16x8xbf16>
    %210 = vector.shape_cast %209 : vector<4x2x16x8xbf16> to vector<8x16x8xbf16>
    %211 = vector.extract_strided_slice %190 {offsets = [0, 0, 0], sizes = [2, 16, 8], strides = [1, 1, 1]} : vector<2x16x32xbf16> to vector<2x16x8xbf16>
    %212 = vector.extract_strided_slice %190 {offsets = [0, 0, 8], sizes = [2, 16, 8], strides = [1, 1, 1]} : vector<2x16x32xbf16> to vector<2x16x8xbf16>
    %213 = vector.extract_strided_slice %190 {offsets = [0, 0, 16], sizes = [2, 16, 8], strides = [1, 1, 1]} : vector<2x16x32xbf16> to vector<2x16x8xbf16>
    %214 = vector.extract_strided_slice %190 {offsets = [0, 0, 24], sizes = [2, 16, 8], strides = [1, 1, 1]} : vector<2x16x32xbf16> to vector<2x16x8xbf16>
    %215 = vector.shape_cast %211 : vector<2x16x8xbf16> to vector<1x2x16x8xbf16>
    %216 = vector.shape_cast %212 : vector<2x16x8xbf16> to vector<1x2x16x8xbf16>
    %217 = vector.shape_cast %213 : vector<2x16x8xbf16> to vector<1x2x16x8xbf16>
    %218 = vector.shape_cast %214 : vector<2x16x8xbf16> to vector<1x2x16x8xbf16>
    %219 = tpu.concatenate %215, %216, %217, %218 in 0 : vector<1x2x16x8xbf16>, vector<1x2x16x8xbf16>, vector<1x2x16x8xbf16>, vector<1x2x16x8xbf16> -> vector<4x2x16x8xbf16>
    %220 = vector.shape_cast %219 : vector<4x2x16x8xbf16> to vector<8x16x8xbf16>
    "tpu.trace_start"() <{level = 10 : i32, message = "zqd,zkd->zqk"}> : () -> ()
    %cst_73 = arith.constant dense<0.000000e+00> : vector<8x8x16xf32>
    %221 = tpu.matmul %200, %210, %cst_73 {dimension_numbers = #tpu.dot_dimension_numbers<[2], [2], [1], [1], [0, 0, 0, 1, 1, 1], [0], [0]>} : vector<8x8x8xbf16>, vector<8x16x8xbf16>, vector<8x8x16xf32> -> vector<8x8x16xf32>
    "tpu.trace_stop"() : () -> ()
    %222 = vector.shape_cast %221 : vector<8x8x16xf32> to vector<4x2x8x16xf32>
    %223 = vector.shape_cast %11 : vector<2x8x16xf32> to vector<1x2x8x16xf32>
    %224 = vector.broadcast %223 : vector<1x2x8x16xf32> to vector<4x2x8x16xf32>
    %225 = arith.addf %222, %224 : vector<4x2x8x16xf32>
    %cst_74 = arith.constant dense<0xFF800000> : vector<4x2x8xf32>
    %226 = vector.multi_reduction <maximumf>, %225, %cst_74 [3] : vector<4x2x8x16xf32> to vector<4x2x8xf32>
    %227 = vector.shape_cast %226 : vector<4x2x8xf32> to vector<4x2x8x1xf32>
    %228 = vector.broadcast %227 : vector<4x2x8x1xf32> to vector<4x2x8x16xf32>
    %229 = arith.subf %225, %228 : vector<4x2x8x16xf32>
    %230 = math.exp %229 : vector<4x2x8x16xf32>
    %cst_75 = arith.constant dense<0.000000e+00> : vector<4x2x8xf32>
    %231 = vector.multi_reduction <add>, %230, %cst_75 [3] : vector<4x2x8x16xf32> to vector<4x2x8xf32>
    %232 = vector.shape_cast %231 : vector<4x2x8xf32> to vector<4x2x8x1xf32>
    %233 = tpu.reciprocal %232 {approx = true} : vector<4x2x8x1xf32> -> vector<4x2x8x1xf32>
    %234 = vector.broadcast %233 : vector<4x2x8x1xf32> to vector<4x2x8x16xf32>
    %235 = arith.mulf %230, %234 : vector<4x2x8x16xf32>
    %236 = arith.truncf %235 : vector<4x2x8x16xf32> to vector<4x2x8x16xbf16>
    %237 = vector.shape_cast %236 : vector<4x2x8x16xbf16> to vector<8x8x16xbf16>
    "tpu.trace_start"() <{level = 10 : i32, message = "zqk,zkd->zqd"}> : () -> ()
    %cst_76 = arith.constant dense<0.000000e+00> : vector<8x8x8xf32>
    %238 = tpu.matmul %237, %220, %cst_76 {dimension_numbers = #tpu.dot_dimension_numbers<[2], [1], [1], [2], [0, 0, 0, 1, 1, 2], [0], [0]>} : vector<8x8x16xbf16>, vector<8x16x8xbf16>, vector<8x8x8xf32> -> vector<8x8x8xf32>
    "tpu.trace_stop"() : () -> ()
    %239 = vector.shape_cast %238 : vector<8x8x8xf32> to vector<4x16x8xf32>
    %240 = vector.extract_strided_slice %169 {offsets = [0, 32], sizes = [16, 32], strides = [1, 1]} : vector<16x64xf32> to vector<16x32xf32>
    %241 = vector.extract_strided_slice %181 {offsets = [0, 0], sizes = [16, 32], strides = [1, 1]} : vector<16x64xf32> to vector<16x32xf32>
    %242 = vector.extract_strided_slice %181 {offsets = [0, 32], sizes = [16, 32], strides = [1, 1]} : vector<16x64xf32> to vector<16x32xf32>
    %243 = arith.truncf %240 : vector<16x32xf32> to vector<16x32xbf16>
    %244 = vector.shape_cast %243 : vector<16x32xbf16> to vector<2x8x32xbf16>
    %245 = arith.truncf %241 : vector<16x32xf32> to vector<16x32xbf16>
    %246 = vector.shape_cast %245 : vector<16x32xbf16> to vector<2x8x32xbf16>
    %247 = arith.truncf %242 : vector<16x32xf32> to vector<16x32xbf16>
    %248 = vector.shape_cast %247 : vector<16x32xbf16> to vector<2x8x32xbf16>
    %249 = vector.extract_strided_slice %244 {offsets = [0, 0, 0], sizes = [2, 8, 8], strides = [1, 1, 1]} : vector<2x8x32xbf16> to vector<2x8x8xbf16>
    %250 = vector.extract_strided_slice %244 {offsets = [0, 0, 8], sizes = [2, 8, 8], strides = [1, 1, 1]} : vector<2x8x32xbf16> to vector<2x8x8xbf16>
    %251 = vector.extract_strided_slice %244 {offsets = [0, 0, 16], sizes = [2, 8, 8], strides = [1, 1, 1]} : vector<2x8x32xbf16> to vector<2x8x8xbf16>
    %252 = vector.extract_strided_slice %244 {offsets = [0, 0, 24], sizes = [2, 8, 8], strides = [1, 1, 1]} : vector<2x8x32xbf16> to vector<2x8x8xbf16>
    %253 = vector.shape_cast %249 : vector<2x8x8xbf16> to vector<1x2x8x8xbf16>
    %254 = vector.shape_cast %250 : vector<2x8x8xbf16> to vector<1x2x8x8xbf16>
    %255 = vector.shape_cast %251 : vector<2x8x8xbf16> to vector<1x2x8x8xbf16>
    %256 = vector.shape_cast %252 : vector<2x8x8xbf16> to vector<1x2x8x8xbf16>
    %257 = tpu.concatenate %253, %254, %255, %256 in 0 : vector<1x2x8x8xbf16>, vector<1x2x8x8xbf16>, vector<1x2x8x8xbf16>, vector<1x2x8x8xbf16> -> vector<4x2x8x8xbf16>
    %258 = vector.shape_cast %257 : vector<4x2x8x8xbf16> to vector<8x8x8xbf16>
    %259 = vector.extract_strided_slice %246 {offsets = [0, 0, 0], sizes = [2, 8, 8], strides = [1, 1, 1]} : vector<2x8x32xbf16> to vector<2x8x8xbf16>
    %260 = vector.extract_strided_slice %246 {offsets = [0, 0, 8], sizes = [2, 8, 8], strides = [1, 1, 1]} : vector<2x8x32xbf16> to vector<2x8x8xbf16>
    %261 = vector.extract_strided_slice %246 {offsets = [0, 0, 16], sizes = [2, 8, 8], strides = [1, 1, 1]} : vector<2x8x32xbf16> to vector<2x8x8xbf16>
    %262 = vector.extract_strided_slice %246 {offsets = [0, 0, 24], sizes = [2, 8, 8], strides = [1, 1, 1]} : vector<2x8x32xbf16> to vector<2x8x8xbf16>
    %263 = vector.shape_cast %259 : vector<2x8x8xbf16> to vector<1x2x8x8xbf16>
    %264 = vector.shape_cast %260 : vector<2x8x8xbf16> to vector<1x2x8x8xbf16>
    %265 = vector.shape_cast %261 : vector<2x8x8xbf16> to vector<1x2x8x8xbf16>
    %266 = vector.shape_cast %262 : vector<2x8x8xbf16> to vector<1x2x8x8xbf16>
    %267 = tpu.concatenate %263, %264, %265, %266 in 0 : vector<1x2x8x8xbf16>, vector<1x2x8x8xbf16>, vector<1x2x8x8xbf16>, vector<1x2x8x8xbf16> -> vector<4x2x8x8xbf16>
    %268 = vector.shape_cast %267 : vector<4x2x8x8xbf16> to vector<8x8x8xbf16>
    %269 = vector.extract_strided_slice %248 {offsets = [0, 0, 0], sizes = [2, 8, 8], strides = [1, 1, 1]} : vector<2x8x32xbf16> to vector<2x8x8xbf16>
    %270 = vector.extract_strided_slice %248 {offsets = [0, 0, 8], sizes = [2, 8, 8], strides = [1, 1, 1]} : vector<2x8x32xbf16> to vector<2x8x8xbf16>
    %271 = vector.extract_strided_slice %248 {offsets = [0, 0, 16], sizes = [2, 8, 8], strides = [1, 1, 1]} : vector<2x8x32xbf16> to vector<2x8x8xbf16>
    %272 = vector.extract_strided_slice %248 {offsets = [0, 0, 24], sizes = [2, 8, 8], strides = [1, 1, 1]} : vector<2x8x32xbf16> to vector<2x8x8xbf16>
    %273 = vector.shape_cast %269 : vector<2x8x8xbf16> to vector<1x2x8x8xbf16>
    %274 = vector.shape_cast %270 : vector<2x8x8xbf16> to vector<1x2x8x8xbf16>
    %275 = vector.shape_cast %271 : vector<2x8x8xbf16> to vector<1x2x8x8xbf16>
    %276 = vector.shape_cast %272 : vector<2x8x8xbf16> to vector<1x2x8x8xbf16>
    %277 = tpu.concatenate %273, %274, %275, %276 in 0 : vector<1x2x8x8xbf16>, vector<1x2x8x8xbf16>, vector<1x2x8x8xbf16>, vector<1x2x8x8xbf16> -> vector<4x2x8x8xbf16>
    %278 = vector.shape_cast %277 : vector<4x2x8x8xbf16> to vector<8x8x8xbf16>
    "tpu.trace_start"() <{level = 10 : i32, message = "zqd,zkd->zqk"}> : () -> ()
    %cst_77 = arith.constant dense<0.000000e+00> : vector<8x8x8xf32>
    %279 = tpu.matmul %258, %268, %cst_77 {dimension_numbers = #tpu.dot_dimension_numbers<[2], [2], [1], [1], [0, 0, 0, 1, 1, 1], [0], [0]>} : vector<8x8x8xbf16>, vector<8x8x8xbf16>, vector<8x8x8xf32> -> vector<8x8x8xf32>
    "tpu.trace_stop"() : () -> ()
    %280 = vector.shape_cast %279 : vector<8x8x8xf32> to vector<4x2x8x8xf32>
    %281 = vector.shape_cast %13 : vector<2x8x8xf32> to vector<1x2x8x8xf32>
    %282 = vector.broadcast %281 : vector<1x2x8x8xf32> to vector<4x2x8x8xf32>
    %283 = arith.addf %280, %282 : vector<4x2x8x8xf32>
    %cst_78 = arith.constant dense<0xFF800000> : vector<4x2x8xf32>
    %284 = vector.multi_reduction <maximumf>, %283, %cst_78 [3] : vector<4x2x8x8xf32> to vector<4x2x8xf32>
    %285 = vector.shape_cast %284 : vector<4x2x8xf32> to vector<4x2x8x1xf32>
    %286 = vector.broadcast %285 : vector<4x2x8x1xf32> to vector<4x2x8x8xf32>
    %287 = arith.subf %283, %286 : vector<4x2x8x8xf32>
    %288 = math.exp %287 : vector<4x2x8x8xf32>
    %cst_79 = arith.constant dense<0.000000e+00> : vector<4x2x8xf32>
    %289 = vector.multi_reduction <add>, %288, %cst_79 [3] : vector<4x2x8x8xf32> to vector<4x2x8xf32>
    %290 = vector.shape_cast %289 : vector<4x2x8xf32> to vector<4x2x8x1xf32>
    %291 = tpu.reciprocal %290 {approx = true} : vector<4x2x8x1xf32> -> vector<4x2x8x1xf32>
    %292 = vector.broadcast %291 : vector<4x2x8x1xf32> to vector<4x2x8x8xf32>
    %293 = arith.mulf %288, %292 : vector<4x2x8x8xf32>
    %294 = vector.shape_cast %7 : vector<2x1x8xf32> to vector<1x2x1x8xf32>
    %295 = vector.broadcast %294 : vector<1x2x1x8xf32> to vector<4x2x8x8xf32>
    %296 = arith.mulf %293, %295 : vector<4x2x8x8xf32>
    %297 = arith.truncf %296 : vector<4x2x8x8xf32> to vector<4x2x8x8xbf16>
    %298 = vector.shape_cast %297 : vector<4x2x8x8xbf16> to vector<8x8x8xbf16>
    "tpu.trace_start"() <{level = 10 : i32, message = "zqk,zkd->zqd"}> : () -> ()
    %cst_80 = arith.constant dense<0.000000e+00> : vector<8x8x8xf32>
    %299 = tpu.matmul %298, %278, %cst_80 {dimension_numbers = #tpu.dot_dimension_numbers<[2], [1], [1], [2], [0, 0, 0, 1, 1, 2], [0], [0]>} : vector<8x8x8xbf16>, vector<8x8x8xbf16>, vector<8x8x8xf32> -> vector<8x8x8xf32>
    "tpu.trace_stop"() : () -> ()
    %300 = vector.shape_cast %299 : vector<8x8x8xf32> to vector<4x16x8xf32>
    %c0_81 = arith.constant 0 : index
    %c0_82 = arith.constant 0 : index
    %c0_83 = arith.constant 0 : index
    %301 = vector.load %arg19[%c0_81, %c0_82, %c0_83] : memref<4x8x32xbf16, #tpu.memory_space<vmem>>, vector<4x8x32xbf16>
    %c0_84 = arith.constant 0 : index
    %c0_85 = arith.constant 0 : index
    %302 = vector.load %arg20[%c0_84, %c0_85] : memref<1x32xf32, #tpu.memory_space<vmem>>, vector<1x32xf32>
    %303 = arith.truncf %239 : vector<4x16x8xf32> to vector<4x16x8xbf16>
    %304 = vector.extract_strided_slice %303 {offsets = [0, 0, 0], sizes = [1, 16, 8], strides = [1, 1, 1]} : vector<4x16x8xbf16> to vector<1x16x8xbf16>
    %305 = vector.shape_cast %304 : vector<1x16x8xbf16> to vector<16x8xbf16>
    %306 = vector.extract_strided_slice %301 {offsets = [0, 0, 0], sizes = [1, 8, 32], strides = [1, 1, 1]} : vector<4x8x32xbf16> to vector<1x8x32xbf16>
    %307 = vector.shape_cast %306 : vector<1x8x32xbf16> to vector<8x32xbf16>
    %cst_86 = arith.constant dense<0.000000e+00> : vector<16x32xf32>
    %308 = tpu.matmul %305, %307, %cst_86 {dimension_numbers = #tpu.dot_dimension_numbers<[1], [0], [0], [1], [0, 0, 1, 1], [], []>} : vector<16x8xbf16>, vector<8x32xbf16>, vector<16x32xf32> -> vector<16x32xf32>
    %309 = vector.extract_strided_slice %303 {offsets = [1, 0, 0], sizes = [1, 16, 8], strides = [1, 1, 1]} : vector<4x16x8xbf16> to vector<1x16x8xbf16>
    %310 = vector.shape_cast %309 : vector<1x16x8xbf16> to vector<16x8xbf16>
    %311 = vector.extract_strided_slice %301 {offsets = [1, 0, 0], sizes = [1, 8, 32], strides = [1, 1, 1]} : vector<4x8x32xbf16> to vector<1x8x32xbf16>
    %312 = vector.shape_cast %311 : vector<1x8x32xbf16> to vector<8x32xbf16>
    %cst_87 = arith.constant dense<0.000000e+00> : vector<16x32xf32>
    %313 = tpu.matmul %310, %312, %cst_87 {dimension_numbers = #tpu.dot_dimension_numbers<[1], [0], [0], [1], [0, 0, 1, 1], [], []>} : vector<16x8xbf16>, vector<8x32xbf16>, vector<16x32xf32> -> vector<16x32xf32>
    %314 = arith.addf %308, %313 : vector<16x32xf32>
    %315 = vector.extract_strided_slice %303 {offsets = [2, 0, 0], sizes = [1, 16, 8], strides = [1, 1, 1]} : vector<4x16x8xbf16> to vector<1x16x8xbf16>
    %316 = vector.shape_cast %315 : vector<1x16x8xbf16> to vector<16x8xbf16>
    %317 = vector.extract_strided_slice %301 {offsets = [2, 0, 0], sizes = [1, 8, 32], strides = [1, 1, 1]} : vector<4x8x32xbf16> to vector<1x8x32xbf16>
    %318 = vector.shape_cast %317 : vector<1x8x32xbf16> to vector<8x32xbf16>
    %cst_88 = arith.constant dense<0.000000e+00> : vector<16x32xf32>
    %319 = tpu.matmul %316, %318, %cst_88 {dimension_numbers = #tpu.dot_dimension_numbers<[1], [0], [0], [1], [0, 0, 1, 1], [], []>} : vector<16x8xbf16>, vector<8x32xbf16>, vector<16x32xf32> -> vector<16x32xf32>
    %320 = arith.addf %314, %319 : vector<16x32xf32>
    %321 = vector.extract_strided_slice %303 {offsets = [3, 0, 0], sizes = [1, 16, 8], strides = [1, 1, 1]} : vector<4x16x8xbf16> to vector<1x16x8xbf16>
    %322 = vector.shape_cast %321 : vector<1x16x8xbf16> to vector<16x8xbf16>
    %323 = vector.extract_strided_slice %301 {offsets = [3, 0, 0], sizes = [1, 8, 32], strides = [1, 1, 1]} : vector<4x8x32xbf16> to vector<1x8x32xbf16>
    %324 = vector.shape_cast %323 : vector<1x8x32xbf16> to vector<8x32xbf16>
    %cst_89 = arith.constant dense<0.000000e+00> : vector<16x32xf32>
    %325 = tpu.matmul %322, %324, %cst_89 {dimension_numbers = #tpu.dot_dimension_numbers<[1], [0], [0], [1], [0, 0, 1, 1], [], []>} : vector<16x8xbf16>, vector<8x32xbf16>, vector<16x32xf32> -> vector<16x32xf32>
    %326 = arith.addf %320, %325 : vector<16x32xf32>
    %327 = vector.broadcast %302 : vector<1x32xf32> to vector<16x32xf32>
    %328 = arith.addf %326, %327 : vector<16x32xf32>
    %c0_90 = arith.constant 0 : index
    %c0_91 = arith.constant 0 : index
    %c0_92 = arith.constant 0 : index
    %329 = vector.load %arg21[%c0_90, %c0_91, %c0_92] : memref<4x8x32xbf16, #tpu.memory_space<vmem>>, vector<4x8x32xbf16>
    %c0_93 = arith.constant 0 : index
    %c0_94 = arith.constant 0 : index
    %330 = vector.load %arg22[%c0_93, %c0_94] : memref<1x32xf32, #tpu.memory_space<vmem>>, vector<1x32xf32>
    %331 = arith.truncf %300 : vector<4x16x8xf32> to vector<4x16x8xbf16>
    %332 = vector.extract_strided_slice %331 {offsets = [0, 0, 0], sizes = [1, 16, 8], strides = [1, 1, 1]} : vector<4x16x8xbf16> to vector<1x16x8xbf16>
    %333 = vector.shape_cast %332 : vector<1x16x8xbf16> to vector<16x8xbf16>
    %334 = vector.extract_strided_slice %329 {offsets = [0, 0, 0], sizes = [1, 8, 32], strides = [1, 1, 1]} : vector<4x8x32xbf16> to vector<1x8x32xbf16>
    %335 = vector.shape_cast %334 : vector<1x8x32xbf16> to vector<8x32xbf16>
    %cst_95 = arith.constant dense<0.000000e+00> : vector<16x32xf32>
    %336 = tpu.matmul %333, %335, %cst_95 {dimension_numbers = #tpu.dot_dimension_numbers<[1], [0], [0], [1], [0, 0, 1, 1], [], []>} : vector<16x8xbf16>, vector<8x32xbf16>, vector<16x32xf32> -> vector<16x32xf32>
    %337 = vector.extract_strided_slice %331 {offsets = [1, 0, 0], sizes = [1, 16, 8], strides = [1, 1, 1]} : vector<4x16x8xbf16> to vector<1x16x8xbf16>
    %338 = vector.shape_cast %337 : vector<1x16x8xbf16> to vector<16x8xbf16>
    %339 = vector.extract_strided_slice %329 {offsets = [1, 0, 0], sizes = [1, 8, 32], strides = [1, 1, 1]} : vector<4x8x32xbf16> to vector<1x8x32xbf16>
    %340 = vector.shape_cast %339 : vector<1x8x32xbf16> to vector<8x32xbf16>
    %cst_96 = arith.constant dense<0.000000e+00> : vector<16x32xf32>
    %341 = tpu.matmul %338, %340, %cst_96 {dimension_numbers = #tpu.dot_dimension_numbers<[1], [0], [0], [1], [0, 0, 1, 1], [], []>} : vector<16x8xbf16>, vector<8x32xbf16>, vector<16x32xf32> -> vector<16x32xf32>
    %342 = arith.addf %336, %341 : vector<16x32xf32>
    %343 = vector.extract_strided_slice %331 {offsets = [2, 0, 0], sizes = [1, 16, 8], strides = [1, 1, 1]} : vector<4x16x8xbf16> to vector<1x16x8xbf16>
    %344 = vector.shape_cast %343 : vector<1x16x8xbf16> to vector<16x8xbf16>
    %345 = vector.extract_strided_slice %329 {offsets = [2, 0, 0], sizes = [1, 8, 32], strides = [1, 1, 1]} : vector<4x8x32xbf16> to vector<1x8x32xbf16>
    %346 = vector.shape_cast %345 : vector<1x8x32xbf16> to vector<8x32xbf16>
    %cst_97 = arith.constant dense<0.000000e+00> : vector<16x32xf32>
    %347 = tpu.matmul %344, %346, %cst_97 {dimension_numbers = #tpu.dot_dimension_numbers<[1], [0], [0], [1], [0, 0, 1, 1], [], []>} : vector<16x8xbf16>, vector<8x32xbf16>, vector<16x32xf32> -> vector<16x32xf32>
    %348 = arith.addf %342, %347 : vector<16x32xf32>
    %349 = vector.extract_strided_slice %331 {offsets = [3, 0, 0], sizes = [1, 16, 8], strides = [1, 1, 1]} : vector<4x16x8xbf16> to vector<1x16x8xbf16>
    %350 = vector.shape_cast %349 : vector<1x16x8xbf16> to vector<16x8xbf16>
    %351 = vector.extract_strided_slice %329 {offsets = [3, 0, 0], sizes = [1, 8, 32], strides = [1, 1, 1]} : vector<4x8x32xbf16> to vector<1x8x32xbf16>
    %352 = vector.shape_cast %351 : vector<1x8x32xbf16> to vector<8x32xbf16>
    %cst_98 = arith.constant dense<0.000000e+00> : vector<16x32xf32>
    %353 = tpu.matmul %350, %352, %cst_98 {dimension_numbers = #tpu.dot_dimension_numbers<[1], [0], [0], [1], [0, 0, 1, 1], [], []>} : vector<16x8xbf16>, vector<8x32xbf16>, vector<16x32xf32> -> vector<16x32xf32>
    %354 = arith.addf %348, %353 : vector<16x32xf32>
    %355 = vector.broadcast %330 : vector<1x32xf32> to vector<16x32xf32>
    %356 = arith.addf %354, %355 : vector<16x32xf32>
    %c0_99 = arith.constant 0 : index
    %c0_100 = arith.constant 0 : index
    %357 = vector.load %arg23[%c0_99, %c0_100] : memref<1x64xf32, #tpu.memory_space<vmem>>, vector<1x64xf32>
    %358 = vector.extract_strided_slice %357 {offsets = [0, 0], sizes = [1, 32], strides = [1, 1]} : vector<1x64xf32> to vector<1x32xf32>
    %359 = vector.broadcast %358 : vector<1x32xf32> to vector<16x32xf32>
    %360 = arith.mulf %328, %359 : vector<16x32xf32>
    %cst_101 = arith.constant dense<0.000000e+00> : vector<16xf32>
    %361 = vector.multi_reduction <add>, %360, %cst_101 [1] : vector<16x32xf32> to vector<16xf32>
    %362 = vector.shape_cast %361 : vector<16xf32> to vector<16x1xf32>
    %363 = vector.extract_strided_slice %357 {offsets = [0, 32], sizes = [1, 32], strides = [1, 1]} : vector<1x64xf32> to vector<1x32xf32>
    %364 = vector.broadcast %363 : vector<1x32xf32> to vector<16x32xf32>
    %365 = arith.mulf %356, %364 : vector<16x32xf32>
    %cst_102 = arith.constant dense<0.000000e+00> : vector<16xf32>
    %366 = vector.multi_reduction <add>, %365, %cst_102 [1] : vector<16x32xf32> to vector<16xf32>
    %367 = vector.shape_cast %366 : vector<16xf32> to vector<16x1xf32>
    %368 = arith.addf %362, %367 : vector<16x1xf32>
    %c0_103 = arith.constant 0 : index
    %c0_104 = arith.constant 0 : index
    %369 = vector.load %arg24[%c0_103, %c0_104] : memref<1x1xf32, #tpu.memory_space<vmem>>, vector<1x1xf32>
    %370 = vector.broadcast %369 : vector<1x1xf32> to vector<16x1xf32>
    %371 = arith.addf %368, %370 : vector<16x1xf32>
    %372 = arith.negf %371 : vector<16x1xf32>
    %373 = math.exp %372 : vector<16x1xf32>
    %cst_105 = arith.constant 1.000000e+00 : f32
    %374 = vector.broadcast %cst_105 : f32 to vector<16x1xf32>
    %375 = arith.addf %374, %373 : vector<16x1xf32>
    %376 = arith.divf %374, %375 : vector<16x1xf32>
    %377 = vector.broadcast %376 : vector<16x1xf32> to vector<16x32xf32>
    %378 = arith.mulf %377, %328 : vector<16x32xf32>
    %cst_106 = arith.constant 1.000000e+00 : f32
    %379 = vector.broadcast %cst_106 : f32 to vector<16x1xf32>
    %380 = arith.subf %379, %376 : vector<16x1xf32>
    %381 = vector.broadcast %380 : vector<16x1xf32> to vector<16x32xf32>
    %382 = arith.mulf %381, %356 : vector<16x32xf32>
    %383 = arith.addf %378, %382 : vector<16x32xf32>
    %384 = arith.addf %383, %141 : vector<16x32xf32>
    %385 = vector.extract_strided_slice %14 {offsets = [4, 0], sizes = [1, 32], strides = [1, 1]} : vector<6x32xf32> to vector<1x32xf32>
    %386 = vector.extract_strided_slice %14 {offsets = [5, 0], sizes = [1, 32], strides = [1, 1]} : vector<6x32xf32> to vector<1x32xf32>
    %cst_107 = arith.constant dense<0.000000e+00> : vector<16xf32>
    %387 = vector.multi_reduction <add>, %384, %cst_107 [1] : vector<16x32xf32> to vector<16xf32>
    %388 = vector.shape_cast %387 : vector<16xf32> to vector<16x1xf32>
    %cst_108 = arith.constant 3.200000e+01 : f32
    %389 = vector.broadcast %cst_108 : f32 to vector<16x1xf32>
    %390 = arith.divf %388, %389 : vector<16x1xf32>
    %391 = vector.broadcast %390 : vector<16x1xf32> to vector<16x32xf32>
    %392 = arith.subf %384, %391 : vector<16x32xf32>
    %393 = arith.mulf %392, %392 : vector<16x32xf32>
    %cst_109 = arith.constant dense<0.000000e+00> : vector<16xf32>
    %394 = vector.multi_reduction <add>, %393, %cst_109 [1] : vector<16x32xf32> to vector<16xf32>
    %395 = vector.shape_cast %394 : vector<16xf32> to vector<16x1xf32>
    %cst_110 = arith.constant 3.200000e+01 : f32
    %396 = vector.broadcast %cst_110 : f32 to vector<16x1xf32>
    %397 = arith.divf %395, %396 : vector<16x1xf32>
    %cst_111 = arith.constant 9.99999997E-7 : f32
    %398 = vector.broadcast %cst_111 : f32 to vector<16x1xf32>
    %399 = arith.addf %397, %398 : vector<16x1xf32>
    %400 = math.rsqrt %399 : vector<16x1xf32>
    %401 = vector.broadcast %400 : vector<16x1xf32> to vector<16x32xf32>
    %402 = arith.mulf %392, %401 : vector<16x32xf32>
    %403 = vector.broadcast %385 : vector<1x32xf32> to vector<16x32xf32>
    %404 = arith.mulf %402, %403 : vector<16x32xf32>
    %405 = vector.broadcast %386 : vector<1x32xf32> to vector<16x32xf32>
    %406 = arith.addf %404, %405 : vector<16x32xf32>
    %407 = arith.truncf %406 : vector<16x32xf32> to vector<16x32xbf16>
    %c0_112 = arith.constant 0 : index
    %c0_113 = arith.constant 0 : index
    %408 = vector.load %arg25[%c0_112, %c0_113] : memref<32x64xbf16, #tpu.memory_space<vmem>>, vector<32x64xbf16>
    %cst_114 = arith.constant dense<0.000000e+00> : vector<16x64xf32>
    %409 = tpu.matmul %407, %408, %cst_114 {dimension_numbers = #tpu.dot_dimension_numbers<[1], [0], [0], [1], [0, 0, 1, 1], [], []>} : vector<16x32xbf16>, vector<32x64xbf16>, vector<16x64xf32> -> vector<16x64xf32>
    %c0_115 = arith.constant 0 : index
    %c0_116 = arith.constant 0 : index
    %410 = vector.load %arg26[%c0_115, %c0_116] : memref<1x64xf32, #tpu.memory_space<vmem>>, vector<1x64xf32>
    %411 = vector.broadcast %410 : vector<1x64xf32> to vector<16x64xf32>
    %412 = arith.addf %409, %411 : vector<16x64xf32>
    %cst_117 = arith.constant 0.000000e+00 : f32
    %413 = vector.broadcast %cst_117 : f32 to vector<16x64xf32>
    %414 = arith.maximumf %412, %413 : vector<16x64xf32>
    %415 = arith.truncf %414 : vector<16x64xf32> to vector<16x64xbf16>
    %c0_118 = arith.constant 0 : index
    %c0_119 = arith.constant 0 : index
    %416 = vector.load %arg27[%c0_118, %c0_119] : memref<64x32xbf16, #tpu.memory_space<vmem>>, vector<64x32xbf16>
    %cst_120 = arith.constant dense<0.000000e+00> : vector<16x32xf32>
    %417 = tpu.matmul %415, %416, %cst_120 {dimension_numbers = #tpu.dot_dimension_numbers<[1], [0], [0], [1], [0, 0, 1, 1], [], []>} : vector<16x64xbf16>, vector<64x32xbf16>, vector<16x32xf32> -> vector<16x32xf32>
    %c0_121 = arith.constant 0 : index
    %c0_122 = arith.constant 0 : index
    %418 = vector.load %arg28[%c0_121, %c0_122] : memref<1x32xf32, #tpu.memory_space<vmem>>, vector<1x32xf32>
    %419 = vector.broadcast %418 : vector<1x32xf32> to vector<16x32xf32>
    %420 = arith.addf %417, %419 : vector<16x32xf32>
    %421 = arith.addf %420, %384 : vector<16x32xf32>
    %c0_123 = arith.constant 0 : index
    %c0_124 = arith.constant 0 : index
    %c0_125 = arith.constant 0 : index
    %422 = vector.load %arg29[%c0_123, %c0_124, %c0_125] : memref<1x16x32xf32, #tpu.memory_space<vmem>>, vector<1x16x32xf32>
    %423 = vector.shape_cast %422 : vector<1x16x32xf32> to vector<16x32xf32>
    %424 = vector.shape_cast %421 : vector<16x32xf32> to vector<1x16x32xf32>
    tpu.vector_store %arg29[%c0_123, %c0_124, %c0_125], %424 {strides = array<i32>} : memref<1x16x32xf32, #tpu.memory_space<vmem>>, vector<1x16x32xf32>,
    return
  }
  func.func @transform_0(%arg0: i32) -> (i32, i32, i32) {
    %c0_i32 = arith.constant 0 : i32
    %c0_i32_0 = arith.constant 0 : i32
    %c0_i32_1 = arith.constant 0 : i32
    return %arg0, %c0_i32, %c0_i32_0 : i32, i32, i32
  }
  func.func @transform_1(%arg0: i32) -> (i32, i32, i32) {
    %c0_i32 = arith.constant 0 : i32
    %c0_i32_0 = arith.constant 0 : i32
    %c0_i32_1 = arith.constant 0 : i32
    return %arg0, %c0_i32, %c0_i32_0 : i32, i32, i32
  }
  func.func @transform_2(%arg0: i32) -> (i32, i32, i32) {
    %c0_i32 = arith.constant 0 : i32
    %c0_i32_0 = arith.constant 0 : i32
    %c0_i32_1 = arith.constant 0 : i32
    return %arg0, %c0_i32, %c0_i32_0 : i32, i32, i32
  }
  func.func @transform_3(%arg0: i32) -> (i32, i32, i32, i32) {
    %c0_i32 = arith.constant 0 : i32
    %c0_i32_0 = arith.constant 0 : i32
    %c0_i32_1 = arith.constant 0 : i32
    %c0_i32_2 = arith.constant 0 : i32
    return %arg0, %c0_i32, %c0_i32_0, %c0_i32_1 : i32, i32, i32, i32
  }
  func.func @transform_4(%arg0: i32) -> (i32, i32, i32, i32) {
    %c0_i32 = arith.constant 0 : i32
    %c0_i32_0 = arith.constant 0 : i32
    %c0_i32_1 = arith.constant 0 : i32
    %c0_i32_2 = arith.constant 0 : i32
    return %arg0, %c0_i32, %c0_i32_0, %c0_i32_1 : i32, i32, i32, i32
  }
  func.func @transform_5(%arg0: i32) -> (i32, i32, i32, i32) {
    %c0_i32 = arith.constant 0 : i32
    %c0_i32_0 = arith.constant 0 : i32
    %c0_i32_1 = arith.constant 0 : i32
    %c0_i32_2 = arith.constant 0 : i32
    return %arg0, %c0_i32, %c0_i32_0, %c0_i32_1 : i32, i32, i32, i32
  }
  func.func @transform_6(%arg0: i32) -> (i32, i32, i32, i32) {
    %c0_i32 = arith.constant 0 : i32
    %c0_i32_0 = arith.constant 0 : i32
    %c0_i32_1 = arith.constant 0 : i32
    %c0_i32_2 = arith.constant 0 : i32
    return %arg0, %c0_i32, %c0_i32_0, %c0_i32_1 : i32, i32, i32, i32
  }
  func.func @transform_7(%arg0: i32) -> (i32, i32) {
    %c0_i32 = arith.constant 0 : i32
    %c0_i32_0 = arith.constant 0 : i32
    %c0_i32_1 = arith.constant 0 : i32
    return %c0_i32, %c0_i32_0 : i32, i32
  }
  func.func @transform_8(%arg0: i32) -> (i32, i32) {
    %c0_i32 = arith.constant 0 : i32
    %c0_i32_0 = arith.constant 0 : i32
    %c0_i32_1 = arith.constant 0 : i32
    return %c0_i32, %c0_i32_0 : i32, i32
  }
  func.func @transform_9(%arg0: i32) -> (i32, i32) {
    %c0_i32 = arith.constant 0 : i32
    %c0_i32_0 = arith.constant 0 : i32
    %c0_i32_1 = arith.constant 0 : i32
    return %c0_i32, %c0_i32_0 : i32, i32
  }
  func.func @transform_10(%arg0: i32) -> (i32, i32, i32) {
    %c0_i32 = arith.constant 0 : i32
    %c0_i32_0 = arith.constant 0 : i32
    %c0_i32_1 = arith.constant 0 : i32
    %c0_i32_2 = arith.constant 0 : i32
    return %c0_i32, %c0_i32_0, %c0_i32_1 : i32, i32, i32
  }
  func.func @transform_11(%arg0: i32) -> (i32, i32) {
    %c0_i32 = arith.constant 0 : i32
    %c0_i32_0 = arith.constant 0 : i32
    %c0_i32_1 = arith.constant 0 : i32
    return %c0_i32, %c0_i32_0 : i32, i32
  }
  func.func @transform_12(%arg0: i32) -> (i32, i32) {
    %c0_i32 = arith.constant 0 : i32
    %c0_i32_0 = arith.constant 0 : i32
    %c0_i32_1 = arith.constant 0 : i32
    return %c0_i32, %c0_i32_0 : i32, i32
  }
  func.func @transform_13(%arg0: i32) -> (i32, i32) {
    %c0_i32 = arith.constant 0 : i32
    %c0_i32_0 = arith.constant 0 : i32
    %c0_i32_1 = arith.constant 0 : i32
    return %c0_i32, %c0_i32_0 : i32, i32
  }
  func.func @transform_14(%arg0: i32) -> (i32, i32) {
    %c0_i32 = arith.constant 0 : i32
    %c0_i32_0 = arith.constant 0 : i32
    %c0_i32_1 = arith.constant 0 : i32
    return %c0_i32, %c0_i32_0 : i32, i32
  }
  func.func @transform_15(%arg0: i32) -> (i32, i32) {
    %c0_i32 = arith.constant 0 : i32
    %c0_i32_0 = arith.constant 0 : i32
    %c0_i32_1 = arith.constant 0 : i32
    return %c0_i32, %c0_i32_0 : i32, i32
  }
  func.func @transform_16(%arg0: i32) -> (i32, i32) {
    %c0_i32 = arith.constant 0 : i32
    %c0_i32_0 = arith.constant 0 : i32
    %c0_i32_1 = arith.constant 0 : i32
    return %c0_i32, %c0_i32_0 : i32, i32
  }
  func.func @transform_17(%arg0: i32) -> (i32, i32) {
    %c0_i32 = arith.constant 0 : i32
    %c0_i32_0 = arith.constant 0 : i32
    %c0_i32_1 = arith.constant 0 : i32
    return %c0_i32, %c0_i32_0 : i32, i32
  }
  func.func @transform_18(%arg0: i32) -> (i32, i32, i32) {
    %c0_i32 = arith.constant 0 : i32
    %c0_i32_0 = arith.constant 0 : i32
    %c0_i32_1 = arith.constant 0 : i32
    %c0_i32_2 = arith.constant 0 : i32
    return %c0_i32, %c0_i32_0, %c0_i32_1 : i32, i32, i32
  }
  func.func @transform_19(%arg0: i32) -> (i32, i32) {
    %c0_i32 = arith.constant 0 : i32
    %c0_i32_0 = arith.constant 0 : i32
    %c0_i32_1 = arith.constant 0 : i32
    return %c0_i32, %c0_i32_0 : i32, i32
  }
  func.func @transform_20(%arg0: i32) -> (i32, i32, i32) {
    %c0_i32 = arith.constant 0 : i32
    %c0_i32_0 = arith.constant 0 : i32
    %c0_i32_1 = arith.constant 0 : i32
    %c0_i32_2 = arith.constant 0 : i32
    return %c0_i32, %c0_i32_0, %c0_i32_1 : i32, i32, i32
  }
  func.func @transform_21(%arg0: i32) -> (i32, i32) {
    %c0_i32 = arith.constant 0 : i32
    %c0_i32_0 = arith.constant 0 : i32
    %c0_i32_1 = arith.constant 0 : i32
    return %c0_i32, %c0_i32_0 : i32, i32
  }
  func.func @transform_22(%arg0: i32) -> (i32, i32) {
    %c0_i32 = arith.constant 0 : i32
    %c0_i32_0 = arith.constant 0 : i32
    %c0_i32_1 = arith.constant 0 : i32
    return %c0_i32, %c0_i32_0 : i32, i32
  }
  func.func @transform_23(%arg0: i32) -> (i32, i32) {
    %c0_i32 = arith.constant 0 : i32
    %c0_i32_0 = arith.constant 0 : i32
    %c0_i32_1 = arith.constant 0 : i32
    return %c0_i32, %c0_i32_0 : i32, i32
  }
  func.func @transform_24(%arg0: i32) -> (i32, i32) {
    %c0_i32 = arith.constant 0 : i32
    %c0_i32_0 = arith.constant 0 : i32
    %c0_i32_1 = arith.constant 0 : i32
    return %c0_i32, %c0_i32_0 : i32, i32
  }
  func.func @transform_25(%arg0: i32) -> (i32, i32) {
    %c0_i32 = arith.constant 0 : i32
    %c0_i32_0 = arith.constant 0 : i32
    %c0_i32_1 = arith.constant 0 : i32
    return %c0_i32, %c0_i32_0 : i32, i32
  }
  func.func @transform_26(%arg0: i32) -> (i32, i32) {
    %c0_i32 = arith.constant 0 : i32
    %c0_i32_0 = arith.constant 0 : i32
    %c0_i32_1 = arith.constant 0 : i32
    return %c0_i32, %c0_i32_0 : i32, i32
  }
  func.func @transform_27(%arg0: i32) -> (i32, i32) {
    %c0_i32 = arith.constant 0 : i32
    %c0_i32_0 = arith.constant 0 : i32
    %c0_i32_1 = arith.constant 0 : i32
    return %c0_i32, %c0_i32_0 : i32, i32
  }
  func.func @transform_28(%arg0: i32) -> (i32, i32, i32) {
    %c0_i32 = arith.constant 0 : i32
    %c0_i32_0 = arith.constant 0 : i32
    %c0_i32_1 = arith.constant 0 : i32
    return %arg0, %c0_i32, %c0_i32_0 : i32, i32, i32
  }
  func.func @transform_29(%arg0: i32) -> (i32, i32, i32) {
    %c0_i32 = arith.constant 0 : i32
    %c0_i32_0 = arith.constant 0 : i32
    %c0_i32_1 = arith.constant 0 : i32
    return %arg0, %c0_i32, %c0_i32_0 : i32, i32, i32
  }
}

</mosaic_0001>

<llo_original>
// kernel: tpu_custom_call.1
$region0: #{tpu_custom_call.1}
  #allocation0 [shape = 'u32[]', space=smem, size = 0x4, offset = 0x4, fixed_abs, tag = 'smem constant byte address 0x4 - core index']
  #allocation1 [shape = 'u32[144,128]{1,0:T(1,128)}', space=vmem, size = 0x12000, scoped, tag = 'internal scratch']
  #allocation2 [shape = 'f32[1,1]{1,0:T(1,128)S(1)}', space=vmem, size = 0x200, scoped, tag = 'scoped memory for tpu_custom_call.1']
  %s0 = inlined_call_operand.smem [shape: u32[30], index: -1, kind: input, shape index: {}]
  %s1 = sld [smem:[%s0]]
  %s2 = scalar_lea.smem %s0, 1
  %s3 = sld [smem:[%s2]]
  %s4 = scalar_lea.smem %s0, 2
  %s5 = sld [smem:[%s4]]
  %s6 = scalar_lea.smem %s0, 3
  %s7 = sld [smem:[%s6]]
  %s8 = scalar_lea.smem %s0, 4
  %s9 = sld [smem:[%s8]]
  %s10 = scalar_lea.smem %s0, 5
  %s11 = sld [smem:[%s10]]
  %s12 = scalar_lea.smem %s0, 6
  %s13 = sld [smem:[%s12]]
  %s14 = scalar_lea.smem %s0, 7
  %s15 = sld [smem:[%s14]]
  %s16 = scalar_lea.smem %s0, 8
  %s17 = sld [smem:[%s16]]
  %s18 = scalar_lea.smem %s0, 9
  %s19 = sld [smem:[%s18]]
  %s20 = scalar_lea.smem %s0, 10
  %s21 = sld [smem:[%s20]]
  %s22 = scalar_lea.smem %s0, 11
  %s23 = sld [smem:[%s22]]
  %s24 = scalar_lea.smem %s0, 12
  %s25 = sld [smem:[%s24]]
  %s26 = scalar_lea.smem %s0, 13
  %s27 = sld [smem:[%s26]]
  %s28 = scalar_lea.smem %s0, 14
  %s29 = sld [smem:[%s28]]
  %s30 = scalar_lea.smem %s0, 15
  %s31 = sld [smem:[%s30]]
  %s32 = scalar_lea.smem %s0, 16
  %s33 = sld [smem:[%s32]]
  %s34 = scalar_lea.smem %s0, 17
  %s35 = sld [smem:[%s34]]
  %s36 = scalar_lea.smem %s0, 18
  %s37 = sld [smem:[%s36]]
  %s38 = scalar_lea.smem %s0, 19
  %s39 = sld [smem:[%s38]]
  %s40 = scalar_lea.smem %s0, 20
  %s41 = sld [smem:[%s40]]
  %s42 = scalar_lea.smem %s0, 21
  %s43 = sld [smem:[%s42]]
  %s44 = scalar_lea.smem %s0, 22
  %s45 = sld [smem:[%s44]]
  %s46 = scalar_lea.smem %s0, 23
  %s47 = sld [smem:[%s46]]
  %s48 = scalar_lea.smem %s0, 24
  %s49 = sld [smem:[%s48]]
  %s50 = scalar_lea.smem %s0, 25
  %s51 = sld [smem:[%s50]]
  %s52 = scalar_lea.smem %s0, 26
  %s53 = sld [smem:[%s52]]
  %s54 = scalar_lea.smem %s0, 27
  %s55 = sld [smem:[%s54]]
  %s56 = scalar_lea.smem %s0, 28
  %s57 = sld [smem:[%s56]]
  %s58 = scalar_lea.smem %s0, 29
  %s59 = sld [smem:[%s58]]
  %60 = xla_tuple %s57, %s59
  %s61 = sld [smem:[#allocation0]]
  $region198: #{tpu_custom_call.1} parent=0
    _
  %s63 = ssub.s32 1, %s61
  %s64 = scalar_select 0, %s63, %s61
  %v65 = vstv %s47
  %66 = vst [vmem:[#allocation2] sm:$0x1] %v65
  $region1: #{tpu_custom_call.1} parent=0
    #allocation3 [shape = 'u8[8192]{0}', space=vmem, size = 0x2000, scoped, tag = 'input window, operand 2, single buffered']
    #allocation4 [shape = 's32[1]{0}', space=sflag, size = 0x4, scoped, tag = 'scoped memory for tpu_custom_call.1']
    #allocation5 [shape = 's32[1]{0}', space=sflag, size = 0x4, scoped, tag = 'scoped memory for tpu_custom_call.1']
    #allocation6 [shape = 'u8[1024]{0}', space=vmem, size = 0x400, scoped, tag = 'input window, operand 3, single buffered']
    #allocation7 [shape = 's32[1]{0}', space=sflag, size = 0x4, scoped, tag = 'scoped memory for tpu_custom_call.1']
    #allocation8 [shape = 'u8[8192]{0}', space=vmem, size = 0x2000, scoped, tag = 'input window, operand 4, single buffered']
    #allocation9 [shape = 'u8[8192]{0}', space=vmem, size = 0x2000, scoped, tag = 'input window, operand 5, single buffered']
    #allocation10 [shape = 's32[1]{0}', space=sflag, size = 0x4, scoped, tag = 'scoped memory for tpu_custom_call.1']
    #allocation11 [shape = 'u8[8192]{0}', space=vmem, size = 0x2000, scoped, tag = 'input window, operand 6, single buffered']
    #allocation12 [shape = 'u8[4096]{0}', space=vmem, size = 0x1000, scoped, tag = 'input window, operand 7, single buffered']
    #allocation13 [shape = 's32[1]{0}', space=sflag, size = 0x4, scoped, tag = 'scoped memory for tpu_custom_call.1']
    #allocation14 [shape = 'u8[8192]{0}', space=vmem, size = 0x2000, scoped, tag = 'input window, operand 8, single buffered']
    #allocation15 [shape = 'u8[8192]{0}', space=vmem, size = 0x2000, scoped, tag = 'input window, operand 10, single buffered']
    #allocation16 [shape = 's32[1]{0}', space=sflag, size = 0x4, scoped, tag = 'scoped memory for tpu_custom_call.1']
    #allocation17 [shape = 'u8[512]{0}', space=vmem, size = 0x400, scoped, tag = 'input window, operand 11, single buffered']
    #allocation18 [shape = 'u8[8192]{0}', space=vmem, size = 0x2000, scoped, tag = 'input window, operand 12, single buffered']
    #allocation19 [shape = 's32[1]{0}', space=sflag, size = 0x4, scoped, tag = 'scoped memory for tpu_custom_call.1']
    #allocation20 [shape = 'u8[512]{0}', space=vmem, size = 0x400, scoped, tag = 'input window, operand 13, single buffered']
    #allocation21 [shape = 'u8[8192]{0}', space=vmem, size = 0x2000, scoped, tag = 'input window, operand 14, single buffered']
    #allocation22 [shape = 's32[1]{0}', space=sflag, size = 0x4, scoped, tag = 'scoped memory for tpu_custom_call.1']
    #allocation23 [shape = 'u8[512]{0}', space=vmem, size = 0x400, scoped, tag = 'input window, operand 15, single buffered']
    #allocation24 [shape = 'u8[8192]{0}', space=vmem, size = 0x2000, scoped, tag = 'input window, operand 16, single buffered']
    #allocation25 [shape = 's32[1]{0}', space=sflag, size = 0x4, scoped, tag = 'scoped memory for tpu_custom_call.1']
    #allocation26 [shape = 'u8[512]{0}', space=vmem, size = 0x400, scoped, tag = 'input window, operand 17, single buffered']
    #allocation27 [shape = 'u8[8192]{0}', space=vmem, size = 0x2000, scoped, tag = 'input window, operand 20, single buffered']
    #allocation28 [shape = 's32[1]{0}', space=sflag, size = 0x4, scoped, tag = 'scoped memory for tpu_custom_call.1']
    #allocation29 [shape = 'u8[8192]{0}', space=vmem, size = 0x2000, scoped, tag = 'input window, operand 24, single buffered']
    #allocation30 [shape = 'u8[8192]{0}', space=vmem, size = 0x2000, scoped, tag = 'output window, operand 0, single buffered']
    #allocation31 [shape = 'u8[8192]{0}', space=vmem, size = 0x2000, scoped, tag = 'output window, operand 1, single buffered']
    #allocation32 [shape = 's32[1]{0}', space=sflag, size = 0x4, scoped, tag = 'scoped memory for tpu_custom_call.1']
    %67 = vsyncpa [#allocation4], 0
    %68 = vsyncpa [#allocation7], 0
    %69 = vsyncpa [#allocation10], 0
    %70 = vsyncpa [#allocation13], 0
    %71 = vsyncpa [#allocation16], 0
    %72 = vsyncpa [#allocation19], 0
    %73 = vsyncpa [#allocation22], 0
    %74 = vsyncpa [#allocation25], 0
    %75 = vsyncpa [#allocation28], 0
    %76 = vsyncpa [#allocation5], 0
    %77 = vsyncpa [#allocation32], 0
    // Predicated region
    $region2: #{tpu_custom_call.1} parent=1 // pred_check
      _
    $region3: #{tpu_custom_call.1} parent=1 // pred_check_branch
      %79 = sbr.rel (0) target = $region5
    $region4: #{tpu_custom_call.1} parent=1 // pred_region
      _
    $region5: #{tpu_custom_call.1} parent=1 // pred_fallthru
      _
    // Predicated region
    $region6: #{tpu_custom_call.1} parent=1 // pred_check
      _
    $region7: #{tpu_custom_call.1} parent=1 // pred_check_branch
      %81 = sbr.rel (0) target = $region9
    $region8: #{tpu_custom_call.1} parent=1 // pred_region
      _
    $region9: #{tpu_custom_call.1} parent=1 // pred_fallthru
      _
    // Predicated region
    $region10: #{tpu_custom_call.1} parent=1 // pred_check
      _
    $region11: #{tpu_custom_call.1} parent=1 // pred_check_branch
      %83 = sbr.rel (0) target = $region13
    $region12: #{tpu_custom_call.1} parent=1 // pred_region
      %s85 = ssub.s32 256, 256
      %86 = vsyncadd [#allocation4], %s85
      %s87 = sshll.u32 [#allocation3], 4
      %s88 = int_to_ptr.vmem [resolvable:$true] %s87
      %93 = dma.hbm_to_vmem [thread:$0]  %s5, 256, %s88, [#allocation4], 128, 128, 8
    $region13: #{tpu_custom_call.1} parent=1 // pred_fallthru
      _
    // Predicated region
    $region14: #{tpu_custom_call.1} parent=1 // pred_check
      _
    $region15: #{tpu_custom_call.1} parent=1 // pred_check_branch
      %95 = sbr.rel (0) target = $region17
    $region16: #{tpu_custom_call.1} parent=1 // pred_region
      %s97 = ssub.s32 32, 32
      %98 = vsyncadd [#allocation7], %s97
      %s99 = sshll.u32 [#allocation6], 4
      %s100 = int_to_ptr.vmem [resolvable:$true] %s99
      %105 = dma.hbm_to_vmem [thread:$0]  %s7, 32, %s100, [#allocation7], 16, 16, 1
    $region17: #{tpu_custom_call.1} parent=1 // pred_fallthru
      _
    // Predicated region
    $region18: #{tpu_custom_call.1} parent=1 // pred_check
      _
    $region19: #{tpu_custom_call.1} parent=1 // pred_check_branch
      %107 = sbr.rel (0) target = $region21
    $region20: #{tpu_custom_call.1} parent=1 // pred_region
      %s109 = ssub.s32 256, 256
      %110 = vsyncadd [#allocation7], %s109
      %s111 = sshll.u32 [#allocation8], 4
      %s112 = int_to_ptr.vmem [resolvable:$true] %s111
      %117 = dma.hbm_to_vmem [thread:$0]  %s9, 256, %s112, [#allocation7], 128, 128, 8
    $region21: #{tpu_custom_call.1} parent=1 // pred_fallthru
      _
    // Predicated region
    $region22: #{tpu_custom_call.1} parent=1 // pred_check
      _
    $region23: #{tpu_custom_call.1} parent=1 // pred_check_branch
      %119 = sbr.rel (0) target = $region25
    $region24: #{tpu_custom_call.1} parent=1 // pred_region
      %s121 = ssub.s32 256, 256
      %122 = vsyncadd [#allocation10], %s121
      %s123 = sshll.u32 [#allocation9], 4
      %s124 = int_to_ptr.vmem [resolvable:$true] %s123
      %129 = dma.hbm_to_vmem [thread:$0]  %s11, 256, %s124, [#allocation10], 128, 128, 8
    $region25: #{tpu_custom_call.1} parent=1 // pred_fallthru
      _
    // Predicated region
    $region26: #{tpu_custom_call.1} parent=1 // pred_check
      _
    $region27: #{tpu_custom_call.1} parent=1 // pred_check_branch
      %131 = sbr.rel (0) target = $region29
    $region28: #{tpu_custom_call.1} parent=1 // pred_region
      %s133 = ssub.s32 256, 256
      %134 = vsyncadd [#allocation10], %s133
      %s135 = sshll.u32 [#allocation11], 4
      %s136 = int_to_ptr.vmem [resolvable:$true] %s135
      %141 = dma.hbm_to_vmem [thread:$0]  %s13, 256, %s136, [#allocation10], 128, 128, 8
    $region29: #{tpu_custom_call.1} parent=1 // pred_fallthru
      _
    // Predicated region
    $region30: #{tpu_custom_call.1} parent=1 // pred_check
      _
    $region31: #{tpu_custom_call.1} parent=1 // pred_check_branch
      %143 = sbr.rel (0) target = $region33
    $region32: #{tpu_custom_call.1} parent=1 // pred_region
      %s145 = ssub.s32 128, 128
      %146 = vsyncadd [#allocation13], %s145
      %s148 = sshll.u32 [#allocation12], 4
      %s149 = int_to_ptr.vmem [resolvable:$true] %s148
      %151 = dma.hbm_to_vmem [thread:$0]  %s15, 128, %s149, [#allocation13]
    $region33: #{tpu_custom_call.1} parent=1 // pred_fallthru
      _
    // Predicated region
    $region34: #{tpu_custom_call.1} parent=1 // pred_check
      _
    $region35: #{tpu_custom_call.1} parent=1 // pred_check_branch
      %153 = sbr.rel (0) target = $region37
    $region36: #{tpu_custom_call.1} parent=1 // pred_region
      %s155 = ssub.s32 256, 256
      %156 = vsyncadd [#allocation13], %s155
      %s157 = sshll.u32 [#allocation14], 4
      %s158 = int_to_ptr.vmem [resolvable:$true] %s157
      %163 = dma.hbm_to_vmem [thread:$0]  %s17, 256, %s158, [#allocation13], 64, 64, 4
    $region37: #{tpu_custom_call.1} parent=1 // pred_fallthru
      _
    // Predicated region
    $region38: #{tpu_custom_call.1} parent=1 // pred_check
      _
    $region39: #{tpu_custom_call.1} parent=1 // pred_check_branch
      %165 = sbr.rel (0) target = $region41
    $region40: #{tpu_custom_call.1} parent=1 // pred_region
      _
    $region41: #{tpu_custom_call.1} parent=1 // pred_fallthru
      _
    // Predicated region
    $region42: #{tpu_custom_call.1} parent=1 // pred_check
      _
    $region43: #{tpu_custom_call.1} parent=1 // pred_check_branch
      %167 = sbr.rel (0) target = $region45
    $region44: #{tpu_custom_call.1} parent=1 // pred_region
      %s169 = ssub.s32 256, 256
      %170 = vsyncadd [#allocation16], %s169
      %s171 = sshll.u32 [#allocation15], 4
      %s172 = int_to_ptr.vmem [resolvable:$true] %s171
      %177 = dma.hbm_to_vmem [thread:$0]  %s21, 256, %s172, [#allocation16], 64, 64, 4
    $region45: #{tpu_custom_call.1} parent=1 // pred_fallthru
      _
    // Predicated region
    $region46: #{tpu_custom_call.1} parent=1 // pred_check
      _
    $region47: #{tpu_custom_call.1} parent=1 // pred_check_branch
      %179 = sbr.rel (0) target = $region49
    $region48: #{tpu_custom_call.1} parent=1 // pred_region
      %s181 = ssub.s32 16, 16
      %182 = vsyncadd [#allocation16], %s181
      %s184 = sshll.u32 [#allocation17], 4
      %s185 = int_to_ptr.vmem [resolvable:$true] %s184
      %187 = dma.hbm_to_vmem [thread:$0]  %s23, 16, %s185, [#allocation16]
    $region49: #{tpu_custom_call.1} parent=1 // pred_fallthru
      _
    // Predicated region
    $region50: #{tpu_custom_call.1} parent=1 // pred_check
      _
    $region51: #{tpu_custom_call.1} parent=1 // pred_check_branch
      %189 = sbr.rel (0) target = $region53
    $region52: #{tpu_custom_call.1} parent=1 // pred_region
      %s191 = ssub.s32 256, 256
      %192 = vsyncadd [#allocation19], %s191
      %s193 = sshll.u32 [#allocation18], 4
      %s194 = int_to_ptr.vmem [resolvable:$true] %s193
      %199 = dma.hbm_to_vmem [thread:$0]  %s25, 256, %s194, [#allocation19], 64, 64, 4
    $region53: #{tpu_custom_call.1} parent=1 // pred_fallthru
      _
    // Predicated region
    $region54: #{tpu_custom_call.1} parent=1 // pred_check
      _
    $region55: #{tpu_custom_call.1} parent=1 // pred_check_branch
      %201 = sbr.rel (0) target = $region57
    $region56: #{tpu_custom_call.1} parent=1 // pred_region
      %s203 = ssub.s32 16, 16
      %204 = vsyncadd [#allocation19], %s203
      %s206 = sshll.u32 [#allocation20], 4
      %s207 = int_to_ptr.vmem [resolvable:$true] %s206
      %209 = dma.hbm_to_vmem [thread:$0]  %s27, 16, %s207, [#allocation19]
    $region57: #{tpu_custom_call.1} parent=1 // pred_fallthru
      _
    // Predicated region
    $region58: #{tpu_custom_call.1} parent=1 // pred_check
      _
    $region59: #{tpu_custom_call.1} parent=1 // pred_check_branch
      %211 = sbr.rel (0) target = $region61
    $region60: #{tpu_custom_call.1} parent=1 // pred_region
      %s213 = ssub.s32 256, 256
      %214 = vsyncadd [#allocation22], %s213
      %s215 = sshll.u32 [#allocation21], 4
      %s216 = int_to_ptr.vmem [resolvable:$true] %s215
      %221 = dma.hbm_to_vmem [thread:$0]  %s29, 256, %s216, [#allocation22], 64, 64, 4
    $region61: #{tpu_custom_call.1} parent=1 // pred_fallthru
      _
    // Predicated region
    $region62: #{tpu_custom_call.1} parent=1 // pred_check
      _
    $region63: #{tpu_custom_call.1} parent=1 // pred_check_branch
      %223 = sbr.rel (0) target = $region65
    $region64: #{tpu_custom_call.1} parent=1 // pred_region
      %s225 = ssub.s32 16, 16
      %226 = vsyncadd [#allocation22], %s225
      %s228 = sshll.u32 [#allocation23], 4
      %s229 = int_to_ptr.vmem [resolvable:$true] %s228
      %231 = dma.hbm_to_vmem [thread:$0]  %s31, 16, %s229, [#allocation22]
    $region65: #{tpu_custom_call.1} parent=1 // pred_fallthru
      _
    // Predicated region
    $region66: #{tpu_custom_call.1} parent=1 // pred_check
      _
    $region67: #{tpu_custom_call.1} parent=1 // pred_check_branch
      %233 = sbr.rel (0) target = $region69
    $region68: #{tpu_custom_call.1} parent=1 // pred_region
      %s235 = ssub.s32 256, 256
      %236 = vsyncadd [#allocation25], %s235
      %s237 = sshll.u32 [#allocation24], 4
      %s238 = int_to_ptr.vmem [resolvable:$true] %s237
      %243 = dma.hbm_to_vmem [thread:$0]  %s33, 256, %s238, [#allocation25], 64, 64, 4
    $region69: #{tpu_custom_call.1} parent=1 // pred_fallthru
      _
    // Predicated region
    $region70: #{tpu_custom_call.1} parent=1 // pred_check
      _
    $region71: #{tpu_custom_call.1} parent=1 // pred_check_branch
      %245 = sbr.rel (0) target = $region73
    $region72: #{tpu_custom_call.1} parent=1 // pred_region
      %s247 = ssub.s32 16, 16
      %248 = vsyncadd [#allocation25], %s247
      %s250 = sshll.u32 [#allocation26], 4
      %s251 = int_to_ptr.vmem [resolvable:$true] %s250
      %253 = dma.hbm_to_vmem [thread:$0]  %s35, 16, %s251, [#allocation25]
    $region73: #{tpu_custom_call.1} parent=1 // pred_fallthru
      _
    // Predicated region
    $region74: #{tpu_custom_call.1} parent=1 // pred_check
      _
    $region75: #{tpu_custom_call.1} parent=1 // pred_check_branch
      %255 = sbr.rel (0) target = $region77
    $region76: #{tpu_custom_call.1} parent=1 // pred_region
      _
    $region77: #{tpu_custom_call.1} parent=1 // pred_fallthru
      _
    // Predicated region
    $region78: #{tpu_custom_call.1} parent=1 // pred_check
      _
    $region79: #{tpu_custom_call.1} parent=1 // pred_check_branch
      %257 = sbr.rel (0) target = $region81
    $region80: #{tpu_custom_call.1} parent=1 // pred_region
      _
    $region81: #{tpu_custom_call.1} parent=1 // pred_fallthru
      _
    // Predicated region
    $region82: #{tpu_custom_call.1} parent=1 // pred_check
      _
    $region83: #{tpu_custom_call.1} parent=1 // pred_check_branch
      %259 = sbr.rel (0) target = $region85
    $region84: #{tpu_custom_call.1} parent=1 // pred_region
      %s261 = ssub.s32 256, 256
      %262 = vsyncadd [#allocation28], %s261
      %s263 = sshll.u32 [#allocation27], 4
      %s264 = int_to_ptr.vmem [resolvable:$true] %s263
      %269 = dma.hbm_to_vmem [thread:$0]  %s41, 256, %s264, [#allocation28], 64, 64, 4
    $region85: #{tpu_custom_call.1} parent=1 // pred_fallthru
      _
    // Predicated region
    $region86: #{tpu_custom_call.1} parent=1 // pred_check
      _
    $region87: #{tpu_custom_call.1} parent=1 // pred_check_branch
      %271 = sbr.rel (0) target = $region89
    $region88: #{tpu_custom_call.1} parent=1 // pred_region
      _
    $region89: #{tpu_custom_call.1} parent=1 // pred_fallthru
      _
    // Predicated region
    $region90: #{tpu_custom_call.1} parent=1 // pred_check
      _
    $region91: #{tpu_custom_call.1} parent=1 // pred_check_branch
      %273 = sbr.rel (0) target = $region93
    $region92: #{tpu_custom_call.1} parent=1 // pred_region
      _
    $region93: #{tpu_custom_call.1} parent=1 // pred_fallthru
      _
    // Predicated region
    $region94: #{tpu_custom_call.1} parent=1 // pred_check
      _
    $region95: #{tpu_custom_call.1} parent=1 // pred_check_branch
      %275 = sbr.rel (0) target = $region97
    $region96: #{tpu_custom_call.1} parent=1 // pred_region
      _
    $region97: #{tpu_custom_call.1} parent=1 // pred_fallthru
      _
    // Predicated region
    $region98: #{tpu_custom_call.1} parent=1 // pred_check
      _
    $region99: #{tpu_custom_call.1} parent=1 // pred_check_branch
      %277 = sbr.rel (0) target = $region101
    $region100: #{tpu_custom_call.1} parent=1 // pred_region
      %s279 = ssub.s32 256, 256
      %280 = vsyncadd [#allocation28], %s279
      %s281 = sshll.u32 [#allocation29], 4
      %s282 = int_to_ptr.vmem [resolvable:$true] %s281
      %287 = dma.hbm_to_vmem [thread:$0]  %s49, 256, %s282, [#allocation28], 64, 64, 4
    $region101: #{tpu_custom_call.1} parent=1 // pred_fallthru
      _
    // Predicated region
    $region102: #{tpu_custom_call.1} parent=1 // pred_check
      _
    $region103: #{tpu_custom_call.1} parent=1 // pred_check_branch
      %289 = sbr.rel (0) target = $region105
    $region104: #{tpu_custom_call.1} parent=1 // pred_region
      _
    $region105: #{tpu_custom_call.1} parent=1 // pred_fallthru
      _
    // Predicated region
    $region106: #{tpu_custom_call.1} parent=1 // pred_check
      _
    $region107: #{tpu_custom_call.1} parent=1 // pred_check_branch
      %291 = sbr.rel (0) target = $region109
    $region108: #{tpu_custom_call.1} parent=1 // pred_region
      _
    $region109: #{tpu_custom_call.1} parent=1 // pred_fallthru
      _
    // Predicated region
    $region110: #{tpu_custom_call.1} parent=1 // pred_check
      _
    $region111: #{tpu_custom_call.1} parent=1 // pred_check_branch
      %293 = sbr.rel (0) target = $region113
    $region112: #{tpu_custom_call.1} parent=1 // pred_region
      _
    $region113: #{tpu_custom_call.1} parent=1 // pred_fallthru
      _
    // Predicated region
    $region114: #{tpu_custom_call.1} parent=1 // pred_check
      _
    $region115: #{tpu_custom_call.1} parent=1 // pred_check_branch
      %295 = sbr.rel (0) target = $region117
    $region116: #{tpu_custom_call.1} parent=1 // pred_region
      %296 = dma.done [#allocation4], 256
    $region117: #{tpu_custom_call.1} parent=1 // pred_fallthru
      _
    // Predicated region
    $region118: #{tpu_custom_call.1} parent=1 // pred_check
      _
    $region119: #{tpu_custom_call.1} parent=1 // pred_check_branch
      %298 = sbr.rel (0) target = $region121
    $region120: #{tpu_custom_call.1} parent=1 // pred_region
      %299 = dma.done [#allocation7], 32
    $region121: #{tpu_custom_call.1} parent=1 // pred_fallthru
      _
    // Predicated region
    $region122: #{tpu_custom_call.1} parent=1 // pred_check
      _
    $region123: #{tpu_custom_call.1} parent=1 // pred_check_branch
      %301 = sbr.rel (0) target = $region125
    $region124: #{tpu_custom_call.1} parent=1 // pred_region
      %302 = dma.done [#allocation7], 256
    $region125: #{tpu_custom_call.1} parent=1 // pred_fallthru
      _
    // Predicated region
    $region126: #{tpu_custom_call.1} parent=1 // pred_check
      _
    $region127: #{tpu_custom_call.1} parent=1 // pred_check_branch
      %304 = sbr.rel (0) target = $region129
    $region128: #{tpu_custom_call.1} parent=1 // pred_region
      %305 = dma.done [#allocation10], 256
    $region129: #{tpu_custom_call.1} parent=1 // pred_fallthru
      _
    // Predicated region
    $region130: #{tpu_custom_call.1} parent=1 // pred_check
      _
    $region131: #{tpu_custom_call.1} parent=1 // pred_check_branch
      %307 = sbr.rel (0) target = $region133
    $region132: #{tpu_custom_call.1} parent=1 // pred_region
      %308 = dma.done [#allocation10], 256
    $region133: #{tpu_custom_call.1} parent=1 // pred_fallthru
      _
    // Predicated region
    $region134: #{tpu_custom_call.1} parent=1 // pred_check
      _
    $region135: #{tpu_custom_call.1} parent=1 // pred_check_branch
      %310 = sbr.rel (0) target = $region137
    $region136: #{tpu_custom_call.1} parent=1 // pred_region
      %311 = dma.done [#allocation13], 128
    $region137: #{tpu_custom_call.1} parent=1 // pred_fallthru
      _
    // Predicated region
    $region138: #{tpu_custom_call.1} parent=1 // pred_check
      _
    $region139: #{tpu_custom_call.1} parent=1 // pred_check_branch
      %313 = sbr.rel (0) target = $region141
    $region140: #{tpu_custom_call.1} parent=1 // pred_region
      %314 = dma.done [#allocation13], 256
    $region141: #{tpu_custom_call.1} parent=1 // pred_fallthru
      _
    // Predicated region
    $region142: #{tpu_custom_call.1} parent=1 // pred_check
      _
    $region143: #{tpu_custom_call.1} parent=1 // pred_check_branch
      %316 = sbr.rel (0) target = $region145
    $region144: #{tpu_custom_call.1} parent=1 // pred_region
      %317 = dma.done [#allocation16], 256
    $region145: #{tpu_custom_call.1} parent=1 // pred_fallthru
      _
    // Predicated region
    $region146: #{tpu_custom_call.1} parent=1 // pred_check
      _
    $region147: #{tpu_custom_call.1} parent=1 // pred_check_branch
      %319 = sbr.rel (0) target = $region149
    $region148: #{tpu_custom_call.1} parent=1 // pred_region
      %320 = dma.done [#allocation16], 16
    $region149: #{tpu_custom_call.1} parent=1 // pred_fallthru
      _
    // Predicated region
    $region150: #{tpu_custom_call.1} parent=1 // pred_check
      _
    $region151: #{tpu_custom_call.1} parent=1 // pred_check_branch
      %322 = sbr.rel (0) target = $region153
    $region152: #{tpu_custom_call.1} parent=1 // pred_region
      %323 = dma.done [#allocation19], 256
    $region153: #{tpu_custom_call.1} parent=1 // pred_fallthru
      _
    // Predicated region
    $region154: #{tpu_custom_call.1} parent=1 // pred_check
      _
    $region155: #{tpu_custom_call.1} parent=1 // pred_check_branch
      %325 = sbr.rel (0) target = $region157
    $region156: #{tpu_custom_call.1} parent=1 // pred_region
      %326 = dma.done [#allocation19], 16
    $region157: #{tpu_custom_call.1} parent=1 // pred_fallthru
      _
    // Predicated region
    $region158: #{tpu_custom_call.1} parent=1 // pred_check
      _
    $region159: #{tpu_custom_call.1} parent=1 // pred_check_branch
      %328 = sbr.rel (0) target = $region161
    $region160: #{tpu_custom_call.1} parent=1 // pred_region
      %329 = dma.done [#allocation22], 256
    $region161: #{tpu_custom_call.1} parent=1 // pred_fallthru
      _
    // Predicated region
    $region162: #{tpu_custom_call.1} parent=1 // pred_check
      _
    $region163: #{tpu_custom_call.1} parent=1 // pred_check_branch
      %331 = sbr.rel (0) target = $region165
    $region164: #{tpu_custom_call.1} parent=1 // pred_region
      %332 = dma.done [#allocation22], 16
    $region165: #{tpu_custom_call.1} parent=1 // pred_fallthru
      _
    // Predicated region
    $region166: #{tpu_custom_call.1} parent=1 // pred_check
      _
    $region167: #{tpu_custom_call.1} parent=1 // pred_check_branch
      %334 = sbr.rel (0) target = $region169
    $region168: #{tpu_custom_call.1} parent=1 // pred_region
      %335 = dma.done [#allocation25], 256
    $region169: #{tpu_custom_call.1} parent=1 // pred_fallthru
      _
    // Predicated region
    $region170: #{tpu_custom_call.1} parent=1 // pred_check
      _
    $region171: #{tpu_custom_call.1} parent=1 // pred_check_branch
      %337 = sbr.rel (0) target = $region173
    $region172: #{tpu_custom_call.1} parent=1 // pred_region
      %338 = dma.done [#allocation25], 16
    $region173: #{tpu_custom_call.1} parent=1 // pred_fallthru
      _
    // Predicated region
    $region174: #{tpu_custom_call.1} parent=1 // pred_check
      _
    $region175: #{tpu_custom_call.1} parent=1 // pred_check_branch
      %340 = sbr.rel (0) target = $region177
    $region176: #{tpu_custom_call.1} parent=1 // pred_region
      %341 = dma.done [#allocation28], 256
    $region177: #{tpu_custom_call.1} parent=1 // pred_fallthru
      _
    // Predicated region
    $region178: #{tpu_custom_call.1} parent=1 // pred_check
      _
    $region179: #{tpu_custom_call.1} parent=1 // pred_check_branch
      %343 = sbr.rel (0) target = $region181
    $region180: #{tpu_custom_call.1} parent=1 // pred_region
      %344 = dma.done [#allocation28], 256
    $region181: #{tpu_custom_call.1} parent=1 // pred_fallthru
      _
    %v346 = vld [vmem:[%s1] sm:$0xff]
    %v347 = vld [vmem:[%s1 + $0x8] sm:$0xff]
    %v348 = vld [vmem:[%s3] sm:$0xff]
    %v349 = vld [vmem:[%s3 + $0x8] sm:$0xff]
    %v350 = vld [vmem:[%s3 + $0x10] sm:$0xff]
    %v351 = vld [vmem:[%s3 + $0x18] sm:$0xff]
    %v352 = vld [vmem:[#allocation3] sm:$0xff]
    %v353 = vld [vmem:[#allocation3 + $0x8] sm:$0xff]
    %v354 = vld [vmem:[#allocation6] sm:$0x1]
    %v355 = vld [vmem:[#allocation6 + $0x1] sm:$0x1]
    %v356 = vld [vmem:[#allocation8] sm:$0xff]
    %v357 = vld [vmem:[#allocation8 + $0x8] sm:$0xff]
    %v358 = vld [vmem:[#allocation9] sm:$0xff]
    %v359 = vld [vmem:[#allocation9 + $0x8] sm:$0xff]
    %v360 = vld [vmem:[#allocation11] sm:$0xff]
    %v361 = vld [vmem:[#allocation11 + $0x8] sm:$0xff]
    %v362 = vld [vmem:[#allocation12] sm:$0x3f]
    %vm363 = vcmask 261120
    %v364 = vsel %vm363, %v346, 0.0
    %365 = vadd.xlane.f32.xlu0 %v364
    %v366 = vpop.xlane.xlu0 %365
    %v367 = vsel %vm363, %v347, 0.0
    %368 = vadd.xlane.f32.xlu0 %v367
    %v369 = vpop.xlane.xlu0 %368
    %v370 = vrcp.pop 32.0
    %v371 = vmul.f32 %v366, %v370
    %v372 = vmul.f32 %v369, %v370
    %v373 = vsub.f32 %v346, %v371
    %v374 = vsub.f32 %v347, %v372
    %v375 = vmul.f32 %v373, %v373
    %v376 = vmul.f32 %v374, %v374
    %v377 = vsel %vm363, %v375, 0.0
    %378 = vadd.xlane.f32.xlu0 %v377
    %v379 = vpop.xlane.xlu0 %378
    %v380 = vsel %vm363, %v376, 0.0
    %381 = vadd.xlane.f32.xlu0 %v380
    %v382 = vpop.xlane.xlu0 %381
    %v383 = vmul.f32 %v379, %v370
    %v384 = vmul.f32 %v382, %v370
    %v385 = vadd.f32 %v383, 1e-06
    %v386 = vadd.f32 %v384, 1e-06
    %v387 = vrsqrt.pop %v385
    %v388 = vrsqrt.pop %v386
    %v389 = vmul.f32 %v373, %v387
    %v390 = vmul.f32 %v374, %v388
    %v391 = vlaneseq
    %v392 = vshrl.u32 %v391, 7
    %v393 = vsub.s32 0, %v392
    %v394 = vrot.slane %v362, %v393
    %v395 = vmul.f32 %v389, %v394
    %v396 = vmul.f32 %v390, %v394
    %v397 = vlaneseq
    %v398 = vshrl.u32 %v397, 7
    %v399 = vsub.s32 1, %v398
    %v400 = vrot.slane %v362, %v399
    %v401 = vadd.f32 %v395, %v400
    %v402 = vadd.f32 %v396, %v400
    %403 = vst.msk [vmem:[#allocation31] sm:$0xff] %vm363, %v401
    %404 = vst.msk [vmem:[#allocation31 + $0x8] sm:$0xff] %vm363, %v402
    %v405 = vlaneseq
    %v406 = vshrl.u32 %v405, 7
    %v407 = vlaneseq
    %v408 = vand.u32 %v407, 127
    %vm409 = vcmp.gt.s32.totalorder %v408, %v406
    %v410 = vsel %vm409, -1e+18, 0.0
    %v411 = vadd.f32 %v356, %v410
    %v412 = vadd.f32 %v357, %v410
    %v413 = vpack.c.bf16 %v402, %v401
    %v414 = vld [vmem:[#allocation14] sm:$0xf]
    %v415 = vld [vmem:[#allocation14 + $0x4] sm:$0xf]
    %v416 = vld [vmem:[#allocation14 + $0x8] sm:$0xf]
    %v417 = vld [vmem:[#allocation14 + $0xc] sm:$0xf]
    %v418 = vld [vmem:[%s19] sm:$0x1]
    %v420 = vlaneseq
    %v421 = vshrl.u32 %v420, 7
    %v422 = vsub.s32 0, %v421
    %v423 = vrot.slane %v418, %v422
    %v429 = vunpack.c.l.b16 %v414
    %v430 = vunpack.c.l.b16 %v415
    %v431 = vunpack.c.l.b16 %v416
    %v432 = vunpack.c.l.b16 %v417
    %v433 = vpack.c.b16 %v430, %v429
    %v434 = vpack.c.b16 %v432, %v431
    %v438 = vsel %vm363, %v413, 0
    %440 = vmatprep.subr.bf16.mxu0 0
    %441 = vmatpush1.bf16.msra.mxu0 0
    %442 = vmatprep.subr.bf16.mxu0 0
    %443 = vmatpush1.bf16.msra.mxu0 0
    %444 = vmatprep.subr.bf16.mxu0 0
    %445 = vmatpush1.bf16.msra.mxu0 0
    %446 = vmatprep.subr.bf16.mxu0 0
    %447 = vmatpush1.bf16.msra.mxu0 0
    %448 = vmatprep.subr.bf16.mxu0 0
    %449 = vmatpush1.bf16.msra.mxu0 0
    %450 = vmatprep.subr.bf16.mxu0 0
    %451 = vmatpush1.bf16.msra.mxu0 0
    %452 = vmatprep.subr.bf16.mxu0 0
    %453 = vmatpush1.bf16.msra.mxu0 %v434
    %454 = vmatprep.subr.bf16.mxu0 0
    %455 = vmatpush1.bf16.msra.mxu0 %v433
    %456 = vmatprep.subr.bf16.mxu0 0
    %457 = vmatpush2.bf16.msra.mxu0 0
    %458 = vmatprep.subr.bf16.mxu0 0
    %459 = vmatpush2.bf16.msra.mxu0 0
    %460 = vmatprep.subr.bf16.mxu0 0
    %461 = vmatpush2.bf16.msra.mxu0 0
    %462 = vmatprep.subr.bf16.mxu0 0
    %463 = vmatpush2.bf16.msra.mxu0 0
    %464 = vmatprep.subr.bf16.mxu0 0
    %465 = vmatpush2.bf16.msra.mxu0 0
    %466 = vmatprep.subr.bf16.mxu0 0
    %467 = vmatpush2.bf16.msra.mxu0 0
    %468 = vmatprep.subr.bf16.mxu0 0
    %469 = vmatpush2.bf16.msra.mxu0 0
    %470 = vmatprep.subr.bf16.mxu0 0
    %471 = vmatpush2.bf16.msra.mxu0 0
    %472 = vmatprep.mubr.bf16.mxu0 0
    %473 = vmatmul.mubr.bf16.gmra.mxu0 %v438
    %v474 = vpop.f32.mrf.mxu0
    %v475 = vadd.f32 %v423, %v474
    %v476 = vpop.f32.mrf.mxu0
    %v477 = vpop.f32.mrf.mxu0
    %v478 = vadd.f32 %v423, %v477
    %v479 = vpop.f32.mrf.mxu0
    %480 = vdwg.mxu0
    %v481 = vpack.c.bf16 %v478, %v475
    %v483 = vunpack.c.l.b16 %v481
    %v484 = vunpack.c.h.b16 %v481
    %v485 = vpack.c.b16 %v483, %v483
    %v486 = vpack.c.b16 %v484, %v484
    %487 = vrot.lane.b32.xlu0 %v485, 120
    %v488 = vpop.permute.xlu0 %487
    %489 = vrot.lane.b32.xlu0 %v486, 120
    %v490 = vpop.permute.xlu0 %489
    %491 = vrot.lane.b32.xlu0 %v485, 112
    %v492 = vpop.permute.xlu0 %491
    %493 = vrot.lane.b32.xlu0 %v486, 112
    %v494 = vpop.permute.xlu0 %493
    %495 = vrot.lane.b32.xlu0 %v485, 104
    %v496 = vpop.permute.xlu0 %495
    %497 = vrot.lane.b32.xlu0 %v486, 104
    %v498 = vpop.permute.xlu0 %497
    %499 = vrot.lane.b32.xlu0 %v485, 96
    %v500 = vpop.permute.xlu0 %499
    %vm501 = vcmask 64512
    %v503 = vsel %vm501, %v485, 0
    %v506 = vsel %vm501, %v500, 0
    %508 = vmatprep.subr.bf16.mxu0 0
    %509 = vmatpush1.bf16.xpose.msra.mxu0 0
    %510 = vmatprep.subr.bf16.mxu0 0
    %511 = vmatpush1.bf16.xpose.msra.mxu0 0
    %512 = vmatprep.subr.bf16.mxu0 0
    %513 = vmatpush1.bf16.xpose.msra.mxu0 0
    %514 = vmatprep.subr.bf16.mxu0 0
    %515 = vmatpush1.bf16.xpose.msra.mxu0 0
    %516 = vmatprep.subr.bf16.mxu0 0
    %517 = vmatpush1.bf16.xpose.msra.mxu0 0
    %518 = vmatprep.subr.bf16.mxu0 0
    %519 = vmatpush1.bf16.xpose.msra.mxu0 0
    %520 = vmatprep.subr.bf16.mxu0 0
    %521 = vmatpush1.bf16.xpose.msra.mxu0 0
    %522 = vmatprep.subr.bf16.mxu0 0
    %523 = vmatpush1.bf16.xpose.msra.mxu0 %v506
    %524 = vmatprep.subr.bf16.mxu0 0
    %525 = vmatpush2.bf16.xpose.msra.mxu0 0
    %526 = vmatprep.subr.bf16.mxu0 0
    %527 = vmatpush2.bf16.xpose.msra.mxu0 0
    %528 = vmatprep.subr.bf16.mxu0 0
    %529 = vmatpush2.bf16.xpose.msra.mxu0 0
    %530 = vmatprep.subr.bf16.mxu0 0
    %531 = vmatpush2.bf16.xpose.msra.mxu0 0
    %532 = vmatprep.subr.bf16.mxu0 0
    %533 = vmatpush2.bf16.xpose.msra.mxu0 0
    %534 = vmatprep.subr.bf16.mxu0 0
    %535 = vmatpush2.bf16.xpose.msra.mxu0 0
    %536 = vmatprep.subr.bf16.mxu0 0
    %537 = vmatpush2.bf16.xpose.msra.mxu0 0
    %538 = vmatprep.subr.bf16.mxu0 0
    %539 = vmatpush2.bf16.xpose.msra.mxu0 0
    %540 = vmatprep.mubr.bf16.mxu0 0
    %541 = vmatmul.mubr.bf16.gmra.mxu0 %v503
    %v542 = vpop.f32.mrf.mxu0
    %v543 = vadd.f32 0.0, %v542
    %v544 = vpop.f32.mrf.mxu0
    %v545 = vpop.f32.mrf.mxu0
    %v546 = vpop.f32.mrf.mxu0
    %547 = vdwg.mxu0
    %548 = vrot.lane.b32.xlu0 %v486, 96
    %v549 = vpop.permute.xlu0 %548
    %v551 = vsel %vm501, %v486, 0
    %v554 = vsel %vm501, %v549, 0
    %556 = vmatprep.subr.bf16.mxu0 0
    %557 = vmatpush1.bf16.xpose.msra.mxu0 0
    %558 = vmatprep.subr.bf16.mxu0 0
    %559 = vmatpush1.bf16.xpose.msra.mxu0 0
    %560 = vmatprep.subr.bf16.mxu0 0
    %561 = vmatpush1.bf16.xpose.msra.mxu0 0
    %562 = vmatprep.subr.bf16.mxu0 0
    %563 = vmatpush1.bf16.xpose.msra.mxu0 0
    %564 = vmatprep.subr.bf16.mxu0 0
    %565 = vmatpush1.bf16.xpose.msra.mxu0 0
    %566 = vmatprep.subr.bf16.mxu0 0
    %567 = vmatpush1.bf16.xpose.msra.mxu0 0
    %568 = vmatprep.subr.bf16.mxu0 0
    %569 = vmatpush1.bf16.xpose.msra.mxu0 0
    %570 = vmatprep.subr.bf16.mxu0 0
    %571 = vmatpush1.bf16.xpose.msra.mxu0 %v554
    %572 = vmatprep.subr.bf16.mxu0 0
    %573 = vmatpush2.bf16.xpose.msra.mxu0 0
    %574 = vmatprep.subr.bf16.mxu0 0
    %575 = vmatpush2.bf16.xpose.msra.mxu0 0
    %576 = vmatprep.subr.bf16.mxu0 0
    %577 = vmatpush2.bf16.xpose.msra.mxu0 0
    %578 = vmatprep.subr.bf16.mxu0 0
    %579 = vmatpush2.bf16.xpose.msra.mxu0 0
    %580 = vmatprep.subr.bf16.mxu0 0
    %581 = vmatpush2.bf16.xpose.msra.mxu0 0
    %582 = vmatprep.subr.bf16.mxu0 0
    %583 = vmatpush2.bf16.xpose.msra.mxu0 0
    %584 = vmatprep.subr.bf16.mxu0 0
    %585 = vmatpush2.bf16.xpose.msra.mxu0 0
    %586 = vmatprep.subr.bf16.mxu0 0
    %587 = vmatpush2.bf16.xpose.msra.mxu0 0
    %588 = vmatprep.mubr.bf16.mxu0 0
    %589 = vmatmul.mubr.bf16.gmra.mxu0 %v551
    %v590 = vpop.f32.mrf.mxu0
    %v591 = vadd.f32 0.0, %v590
    %v592 = vpop.f32.mrf.mxu0
    %v593 = vpop.f32.mrf.mxu0
    %v594 = vpop.f32.mrf.mxu0
    %595 = vdwg.mxu0
    %v596 = vunpack.c.l.b16 %v488
    %v597 = vpack.c.b16 %v596, %v596
    %598 = vrot.lane.b32.xlu0 %v597, 96
    %v599 = vpop.permute.xlu0 %598
    %v601 = vsel %vm501, %v488, 0
    %v604 = vsel %vm501, %v599, 0
    %606 = vmatprep.subr.bf16.mxu0 0
    %607 = vmatpush1.bf16.xpose.msra.mxu0 0
    %608 = vmatprep.subr.bf16.mxu0 0
    %609 = vmatpush1.bf16.xpose.msra.mxu0 0
    %610 = vmatprep.subr.bf16.mxu0 0
    %611 = vmatpush1.bf16.xpose.msra.mxu0 0
    %612 = vmatprep.subr.bf16.mxu0 0
    %613 = vmatpush1.bf16.xpose.msra.mxu0 0
    %614 = vmatprep.subr.bf16.mxu0 0
    %615 = vmatpush1.bf16.xpose.msra.mxu0 0
    %616 = vmatprep.subr.bf16.mxu0 0
    %617 = vmatpush1.bf16.xpose.msra.mxu0 0
    %618 = vmatprep.subr.bf16.mxu0 0
    %619 = vmatpush1.bf16.xpose.msra.mxu0 0
    %620 = vmatprep.subr.bf16.mxu0 0
    %621 = vmatpush1.bf16.xpose.msra.mxu0 %v604
    %622 = vmatprep.subr.bf16.mxu0 0
    %623 = vmatpush2.bf16.xpose.msra.mxu0 0
    %624 = vmatprep.subr.bf16.mxu0 0
    %625 = vmatpush2.bf16.xpose.msra.mxu0 0
    %626 = vmatprep.subr.bf16.mxu0 0
    %627 = vmatpush2.bf16.xpose.msra.mxu0 0
    %628 = vmatprep.subr.bf16.mxu0 0
    %629 = vmatpush2.bf16.xpose.msra.mxu0 0
    %630 = vmatprep.subr.bf16.mxu0 0
    %631 = vmatpush2.bf16.xpose.msra.mxu0 0
    %632 = vmatprep.subr.bf16.mxu0 0
    %633 = vmatpush2.bf16.xpose.msra.mxu0 0
    %634 = vmatprep.subr.bf16.mxu0 0
    %635 = vmatpush2.bf16.xpose.msra.mxu0 0
    %636 = vmatprep.subr.bf16.mxu0 0
    %637 = vmatpush2.bf16.xpose.msra.mxu0 0
    %638 = vmatprep.mubr.bf16.mxu0 0
    %639 = vmatmul.mubr.bf16.gmra.mxu0 %v601
    %v640 = vpop.f32.mrf.mxu0
    %v641 = vadd.f32 0.0, %v640
    %v642 = vpop.f32.mrf.mxu0
    %v643 = vpop.f32.mrf.mxu0
    %v644 = vpop.f32.mrf.mxu0
    %645 = vdwg.mxu0
    %v646 = vunpack.c.l.b16 %v490
    %v647 = vpack.c.b16 %v646, %v646
    %648 = vrot.lane.b32.xlu0 %v647, 96
    %v649 = vpop.permute.xlu0 %648
    %v651 = vsel %vm501, %v490, 0
    %v654 = vsel %vm501, %v649, 0
    %656 = vmatprep.subr.bf16.mxu0 0
    %657 = vmatpush1.bf16.xpose.msra.mxu0 0
    %658 = vmatprep.subr.bf16.mxu0 0
    %659 = vmatpush1.bf16.xpose.msra.mxu0 0
    %660 = vmatprep.subr.bf16.mxu0 0
    %661 = vmatpush1.bf16.xpose.msra.mxu0 0
    %662 = vmatprep.subr.bf16.mxu0 0
    %663 = vmatpush1.bf16.xpose.msra.mxu0 0
    %664 = vmatprep.subr.bf16.mxu0 0
    %665 = vmatpush1.bf16.xpose.msra.mxu0 0
    %666 = vmatprep.subr.bf16.mxu0 0
    %667 = vmatpush1.bf16.xpose.msra.mxu0 0
    %668 = vmatprep.subr.bf16.mxu0 0
    %669 = vmatpush1.bf16.xpose.msra.mxu0 0
    %670 = vmatprep.subr.bf16.mxu0 0
    %671 = vmatpush1.bf16.xpose.msra.mxu0 %v654
    %672 = vmatprep.subr.bf16.mxu0 0
    %673 = vmatpush2.bf16.xpose.msra.mxu0 0
    %674 = vmatprep.subr.bf16.mxu0 0
    %675 = vmatpush2.bf16.xpose.msra.mxu0 0
    %676 = vmatprep.subr.bf16.mxu0 0
    %677 = vmatpush2.bf16.xpose.msra.mxu0 0
    %678 = vmatprep.subr.bf16.mxu0 0
    %679 = vmatpush2.bf16.xpose.msra.mxu0 0
    %680 = vmatprep.subr.bf16.mxu0 0
    %681 = vmatpush2.bf16.xpose.msra.mxu0 0
    %682 = vmatprep.subr.bf16.mxu0 0
    %683 = vmatpush2.bf16.xpose.msra.mxu0 0
    %684 = vmatprep.subr.bf16.mxu0 0
    %685 = vmatpush2.bf16.xpose.msra.mxu0 0
    %686 = vmatprep.subr.bf16.mxu0 0
    %687 = vmatpush2.bf16.xpose.msra.mxu0 0
    %688 = vmatprep.mubr.bf16.mxu0 0
    %689 = vmatmul.mubr.bf16.gmra.mxu0 %v651
    %v690 = vpop.f32.mrf.mxu0
    %v691 = vadd.f32 0.0, %v690
    %v692 = vpop.f32.mrf.mxu0
    %v693 = vpop.f32.mrf.mxu0
    %v694 = vpop.f32.mrf.mxu0
    %695 = vdwg.mxu0
    %v696 = vunpack.c.l.b16 %v492
    %v697 = vpack.c.b16 %v696, %v696
    %698 = vrot.lane.b32.xlu0 %v697, 96
    %v699 = vpop.permute.xlu0 %698
    %v701 = vsel %vm501, %v492, 0
    %v704 = vsel %vm501, %v699, 0
    %706 = vmatprep.subr.bf16.mxu0 0
    %707 = vmatpush1.bf16.xpose.msra.mxu0 0
    %708 = vmatprep.subr.bf16.mxu0 0
    %709 = vmatpush1.bf16.xpose.msra.mxu0 0
    %710 = vmatprep.subr.bf16.mxu0 0
    %711 = vmatpush1.bf16.xpose.msra.mxu0 0
    %712 = vmatprep.subr.bf16.mxu0 0
    %713 = vmatpush1.bf16.xpose.msra.mxu0 0
    %714 = vmatprep.subr.bf16.mxu0 0
    %715 = vmatpush1.bf16.xpose.msra.mxu0 0
    %716 = vmatprep.subr.bf16.mxu0 0
    %717 = vmatpush1.bf16.xpose.msra.mxu0 0
    %718 = vmatprep.subr.bf16.mxu0 0
    %719 = vmatpush1.bf16.xpose.msra.mxu0 0
    %720 = vmatprep.subr.bf16.mxu0 0
    %721 = vmatpush1.bf16.xpose.msra.mxu0 %v704
    %722 = vmatprep.subr.bf16.mxu0 0
    %723 = vmatpush2.bf16.xpose.msra.mxu0 0
    %724 = vmatprep.subr.bf16.mxu0 0
    %725 = vmatpush2.bf16.xpose.msra.mxu0 0
    %726 = vmatprep.subr.bf16.mxu0 0
    %727 = vmatpush2.bf16.xpose.msra.mxu0 0
    %728 = vmatprep.subr.bf16.mxu0 0
    %729 = vmatpush2.bf16.xpose.msra.mxu0 0
    %730 = vmatprep.subr.bf16.mxu0 0
    %731 = vmatpush2.bf16.xpose.msra.mxu0 0
    %732 = vmatprep.subr.bf16.mxu0 0
    %733 = vmatpush2.bf16.xpose.msra.mxu0 0
    %734 = vmatprep.subr.bf16.mxu0 0
    %735 = vmatpush2.bf16.xpose.msra.mxu0 0
    %736 = vmatprep.subr.bf16.mxu0 0
    %737 = vmatpush2.bf16.xpose.msra.mxu0 0
    %738 = vmatprep.mubr.bf16.mxu0 0
    %739 = vmatmul.mubr.bf16.gmra.mxu0 %v701
    %v740 = vpop.f32.mrf.mxu0
    %v741 = vadd.f32 0.0, %v740
    %v742 = vpop.f32.mrf.mxu0
    %v743 = vpop.f32.mrf.mxu0
    %v744 = vpop.f32.mrf.mxu0
    %745 = vdwg.mxu0
    %v746 = vunpack.c.l.b16 %v494
    %v747 = vpack.c.b16 %v746, %v746
    %748 = vrot.lane.b32.xlu0 %v747, 96
    %v749 = vpop.permute.xlu0 %748
    %v751 = vsel %vm501, %v494, 0
    %v754 = vsel %vm501, %v749, 0
    %756 = vmatprep.subr.bf16.mxu0 0
    %757 = vmatpush1.bf16.xpose.msra.mxu0 0
    %758 = vmatprep.subr.bf16.mxu0 0
    %759 = vmatpush1.bf16.xpose.msra.mxu0 0
    %760 = vmatprep.subr.bf16.mxu0 0
    %761 = vmatpush1.bf16.xpose.msra.mxu0 0
    %762 = vmatprep.subr.bf16.mxu0 0
    %763 = vmatpush1.bf16.xpose.msra.mxu0 0
    %764 = vmatprep.subr.bf16.mxu0 0
    %765 = vmatpush1.bf16.xpose.msra.mxu0 0
    %766 = vmatprep.subr.bf16.mxu0 0
    %767 = vmatpush1.bf16.xpose.msra.mxu0 0
    %768 = vmatprep.subr.bf16.mxu0 0
    %769 = vmatpush1.bf16.xpose.msra.mxu0 0
    %770 = vmatprep.subr.bf16.mxu0 0
    %771 = vmatpush1.bf16.xpose.msra.mxu0 %v754
    %772 = vmatprep.subr.bf16.mxu0 0
    %773 = vmatpush2.bf16.xpose.msra.mxu0 0
    %774 = vmatprep.subr.bf16.mxu0 0
    %775 = vmatpush2.bf16.xpose.msra.mxu0 0
    %776 = vmatprep.subr.bf16.mxu0 0
    %777 = vmatpush2.bf16.xpose.msra.mxu0 0
    %778 = vmatprep.subr.bf16.mxu0 0
    %779 = vmatpush2.bf16.xpose.msra.mxu0 0
    %780 = vmatprep.subr.bf16.mxu0 0
    %781 = vmatpush2.bf16.xpose.msra.mxu0 0
    %782 = vmatprep.subr.bf16.mxu0 0
    %783 = vmatpush2.bf16.xpose.msra.mxu0 0
    %784 = vmatprep.subr.bf16.mxu0 0
    %785 = vmatpush2.bf16.xpose.msra.mxu0 0
    %786 = vmatprep.subr.bf16.mxu0 0
    %787 = vmatpush2.bf16.xpose.msra.mxu0 0
    %788 = vmatprep.mubr.bf16.mxu0 0
    %789 = vmatmul.mubr.bf16.gmra.mxu0 %v751
    %v790 = vpop.f32.mrf.mxu0
    %v791 = vadd.f32 0.0, %v790
    %v792 = vpop.f32.mrf.mxu0
    %v793 = vpop.f32.mrf.mxu0
    %v794 = vpop.f32.mrf.mxu0
    %795 = vdwg.mxu0
    %v796 = vunpack.c.l.b16 %v496
    %v797 = vpack.c.b16 %v796, %v796
    %798 = vrot.lane.b32.xlu0 %v797, 96
    %v799 = vpop.permute.xlu0 %798
    %v801 = vsel %vm501, %v496, 0
    %v804 = vsel %vm501, %v799, 0
    %806 = vmatprep.subr.bf16.mxu0 0
    %807 = vmatpush1.bf16.xpose.msra.mxu0 0
    %808 = vmatprep.subr.bf16.mxu0 0
    %809 = vmatpush1.bf16.xpose.msra.mxu0 0
    %810 = vmatprep.subr.bf16.mxu0 0
    %811 = vmatpush1.bf16.xpose.msra.mxu0 0
    %812 = vmatprep.subr.bf16.mxu0 0
    %813 = vmatpush1.bf16.xpose.msra.mxu0 0
    %814 = vmatprep.subr.bf16.mxu0 0
    %815 = vmatpush1.bf16.xpose.msra.mxu0 0
    %816 = vmatprep.subr.bf16.mxu0 0
    %817 = vmatpush1.bf16.xpose.msra.mxu0 0
    %818 = vmatprep.subr.bf16.mxu0 0
    %819 = vmatpush1.bf16.xpose.msra.mxu0 0
    %820 = vmatprep.subr.bf16.mxu0 0
    %821 = vmatpush1.bf16.xpose.msra.mxu0 %v804
    %822 = vmatprep.subr.bf16.mxu0 0
    %823 = vmatpush2.bf16.xpose.msra.mxu0 0
    %824 = vmatprep.subr.bf16.mxu0 0
    %825 = vmatpush2.bf16.xpose.msra.mxu0 0
    %826 = vmatprep.subr.bf16.mxu0 0
    %827 = vmatpush2.bf16.xpose.msra.mxu0 0
    %828 = vmatprep.subr.bf16.mxu0 0
    %829 = vmatpush2.bf16.xpose.msra.mxu0 0
    %830 = vmatprep.subr.bf16.mxu0 0
    %831 = vmatpush2.bf16.xpose.msra.mxu0 0
    %832 = vmatprep.subr.bf16.mxu0 0
    %833 = vmatpush2.bf16.xpose.msra.mxu0 0
    %834 = vmatprep.subr.bf16.mxu0 0
    %835 = vmatpush2.bf16.xpose.msra.mxu0 0
    %836 = vmatprep.subr.bf16.mxu0 0
    %837 = vmatpush2.bf16.xpose.msra.mxu0 0
    %838 = vmatprep.mubr.bf16.mxu0 0
    %839 = vmatmul.mubr.bf16.gmra.mxu0 %v801
    %v840 = vpop.f32.mrf.mxu0
    %v841 = vadd.f32 0.0, %v840
    %v842 = vpop.f32.mrf.mxu0
    %v843 = vpop.f32.mrf.mxu0
    %v844 = vpop.f32.mrf.mxu0
    %845 = vdwg.mxu0
    %v846 = vunpack.c.l.b16 %v498
    %v847 = vpack.c.b16 %v846, %v846
    %848 = vrot.lane.b32.xlu0 %v847, 96
    %v849 = vpop.permute.xlu0 %848
    %v851 = vsel %vm501, %v498, 0
    %v854 = vsel %vm501, %v849, 0
    %856 = vmatprep.subr.bf16.mxu0 0
    %857 = vmatpush1.bf16.xpose.msra.mxu0 0
    %858 = vmatprep.subr.bf16.mxu0 0
    %859 = vmatpush1.bf16.xpose.msra.mxu0 0
    %860 = vmatprep.subr.bf16.mxu0 0
    %861 = vmatpush1.bf16.xpose.msra.mxu0 0
    %862 = vmatprep.subr.bf16.mxu0 0
    %863 = vmatpush1.bf16.xpose.msra.mxu0 0
    %864 = vmatprep.subr.bf16.mxu0 0
    %865 = vmatpush1.bf16.xpose.msra.mxu0 0
    %866 = vmatprep.subr.bf16.mxu0 0
    %867 = vmatpush1.bf16.xpose.msra.mxu0 0
    %868 = vmatprep.subr.bf16.mxu0 0
    %869 = vmatpush1.bf16.xpose.msra.mxu0 0
    %870 = vmatprep.subr.bf16.mxu0 0
    %871 = vmatpush1.bf16.xpose.msra.mxu0 %v854
    %872 = vmatprep.subr.bf16.mxu0 0
    %873 = vmatpush2.bf16.xpose.msra.mxu0 0
    %874 = vmatprep.subr.bf16.mxu0 0
    %875 = vmatpush2.bf16.xpose.msra.mxu0 0
    %876 = vmatprep.subr.bf16.mxu0 0
    %877 = vmatpush2.bf16.xpose.msra.mxu0 0
    %878 = vmatprep.subr.bf16.mxu0 0
    %879 = vmatpush2.bf16.xpose.msra.mxu0 0
    %880 = vmatprep.subr.bf16.mxu0 0
    %881 = vmatpush2.bf16.xpose.msra.mxu0 0
    %882 = vmatprep.subr.bf16.mxu0 0
    %883 = vmatpush2.bf16.xpose.msra.mxu0 0
    %884 = vmatprep.subr.bf16.mxu0 0
    %885 = vmatpush2.bf16.xpose.msra.mxu0 0
    %886 = vmatprep.subr.bf16.mxu0 0
    %887 = vmatpush2.bf16.xpose.msra.mxu0 0
    %888 = vmatprep.mubr.bf16.mxu0 0
    %889 = vmatmul.mubr.bf16.gmra.mxu0 %v851
    %v890 = vpop.f32.mrf.mxu0
    %v891 = vadd.f32 0.0, %v890
    %v892 = vpop.f32.mrf.mxu0
    %v893 = vpop.f32.mrf.mxu0
    %v894 = vpop.f32.mrf.mxu0
    %895 = vdwg.mxu0
    %v896 = vadd.f32 %v543, %v411
    %v897 = vadd.f32 %v591, %v412
    %v898 = vadd.f32 %v641, %v411
    %v899 = vadd.f32 %v691, %v412
    %v900 = vadd.f32 %v741, %v411
    %v901 = vadd.f32 %v791, %v412
    %v902 = vadd.f32 %v841, %v411
    %v903 = vadd.f32 %v891, %v412
    %v904 = vsel %vm501, %v896, -inf
    %905 = vmax.xlane.f32.xlu0 %v904
    %v906 = vpop.xlane.xlu0 %905
    %v907 = vsel %vm501, %v897, -inf
    %908 = vmax.xlane.f32.xlu0 %v907
    %v909 = vpop.xlane.xlu0 %908
    %v910 = vsel %vm501, %v898, -inf
    %911 = vmax.xlane.f32.xlu0 %v910
    %v912 = vpop.xlane.xlu0 %911
    %v913 = vsel %vm501, %v899, -inf
    %914 = vmax.xlane.f32.xlu0 %v913
    %v915 = vpop.xlane.xlu0 %914
    %v916 = vsel %vm501, %v900, -inf
    %917 = vmax.xlane.f32.xlu0 %v916
    %v918 = vpop.xlane.xlu0 %917
    %v919 = vsel %vm501, %v901, -inf
    %920 = vmax.xlane.f32.xlu0 %v919
    %v921 = vpop.xlane.xlu0 %920
    %v922 = vsel %vm501, %v902, -inf
    %923 = vmax.xlane.f32.xlu0 %v922
    %v924 = vpop.xlane.xlu0 %923
    %v925 = vsel %vm501, %v903, -inf
    %926 = vmax.xlane.f32.xlu0 %v925
    %v927 = vpop.xlane.xlu0 %926
    %v928 = vsub.f32 %v896, %v906
    %v929 = vsub.f32 %v897, %v909
    %v930 = vsub.f32 %v898, %v912
    %v931 = vsub.f32 %v899, %v915
    %v932 = vsub.f32 %v900, %v918
    %v933 = vsub.f32 %v901, %v921
    %v934 = vsub.f32 %v902, %v924
    %v935 = vsub.f32 %v903, %v927
    %v936 = vmul.f32 %v928, 1.442695
    %v937 = vpow.pop %v936
    %v938 = vmul.f32 %v929, 1.442695
    %v939 = vpow.pop %v938
    %v940 = vmul.f32 %v930, 1.442695
    %v941 = vpow.pop %v940
    %v942 = vmul.f32 %v931, 1.442695
    %v943 = vpow.pop %v942
    %v944 = vmul.f32 %v932, 1.442695
    %v945 = vpow.pop %v944
    %v946 = vmul.f32 %v933, 1.442695
    %v947 = vpow.pop %v946
    %v948 = vmul.f32 %v934, 1.442695
    %v949 = vpow.pop %v948
    %v950 = vmul.f32 %v935, 1.442695
    %v951 = vpow.pop %v950
    %v952 = vsel %vm501, %v937, 0.0
    %953 = vadd.xlane.f32.xlu0 %v952
    %v954 = vpop.xlane.xlu0 %953
    %v955 = vsel %vm501, %v939, 0.0
    %956 = vadd.xlane.f32.xlu0 %v955
    %v957 = vpop.xlane.xlu0 %956
    %v958 = vsel %vm501, %v941, 0.0
    %959 = vadd.xlane.f32.xlu0 %v958
    %v960 = vpop.xlane.xlu0 %959
    %v961 = vsel %vm501, %v943, 0.0
    %962 = vadd.xlane.f32.xlu0 %v961
    %v963 = vpop.xlane.xlu0 %962
    %v964 = vsel %vm501, %v945, 0.0
    %965 = vadd.xlane.f32.xlu0 %v964
    %v966 = vpop.xlane.xlu0 %965
    %v967 = vsel %vm501, %v947, 0.0
    %968 = vadd.xlane.f32.xlu0 %v967
    %v969 = vpop.xlane.xlu0 %968
    %v970 = vsel %vm501, %v949, 0.0
    %971 = vadd.xlane.f32.xlu0 %v970
    %v972 = vpop.xlane.xlu0 %971
    %v973 = vsel %vm501, %v951, 0.0
    %974 = vadd.xlane.f32.xlu0 %v973
    %v975 = vpop.xlane.xlu0 %974
    %v976 = vrcp.pop %v954
    %v977 = vrcp.pop %v957
    %v978 = vrcp.pop %v960
    %v979 = vrcp.pop %v963
    %v980 = vrcp.pop %v966
    %v981 = vrcp.pop %v969
    %v982 = vrcp.pop %v972
    %v983 = vrcp.pop %v975
    %v984 = vmul.f32 %v937, %v976
    %v985 = vmul.f32 %v939, %v977
    %v986 = vmul.f32 %v941, %v978
    %v987 = vmul.f32 %v943, %v979
    %v988 = vmul.f32 %v945, %v980
    %v989 = vmul.f32 %v947, %v981
    %v990 = vmul.f32 %v949, %v982
    %v991 = vmul.f32 %v951, %v983
    %v992 = vpack.c.bf16 %v984, %v984
    %v993 = vpack.c.bf16 %v985, %v985
    %v994 = vpack.c.bf16 %v986, %v986
    %v995 = vpack.c.bf16 %v987, %v987
    %v996 = vpack.c.bf16 %v988, %v988
    %v997 = vpack.c.bf16 %v989, %v989
    %v998 = vpack.c.bf16 %v990, %v990
    %v999 = vpack.c.bf16 %v991, %v991
    %1000 = vrot.lane.b32.xlu0 %v485, 64
    %v1001 = vpop.permute.xlu0 %1000
    %v1003 = vsel %vm501, %v992, 0
    %vm1005 = vcmask 1043456
    %v1007 = vsel %vm1005, %v1001, 0
    %1009 = vmatprep.subr.bf16.mxu0 0
    %1010 = vmatpush1.bf16.msra.mxu0 0
    %1011 = vmatprep.subr.bf16.mxu0 0
    %1012 = vmatpush1.bf16.msra.mxu0 0
    %1013 = vmatprep.subr.bf16.mxu0 0
    %1014 = vmatpush1.bf16.msra.mxu0 0
    %1015 = vmatprep.subr.bf16.mxu0 0
    %1016 = vmatpush1.bf16.msra.mxu0 0
    %1017 = vmatprep.subr.bf16.mxu0 0
    %1018 = vmatpush1.bf16.msra.mxu0 0
    %1019 = vmatprep.subr.bf16.mxu0 0
    %1020 = vmatpush1.bf16.msra.mxu0 0
    %1021 = vmatprep.subr.bf16.mxu0 0
    %1022 = vmatpush1.bf16.msra.mxu0 0
    %1023 = vmatprep.subr.bf16.mxu0 0
    %1024 = vmatpush1.bf16.msra.mxu0 %v1007
    %1025 = vmatprep.subr.bf16.mxu0 0
    %1026 = vmatpush2.bf16.msra.mxu0 0
    %1027 = vmatprep.subr.bf16.mxu0 0
    %1028 = vmatpush2.bf16.msra.mxu0 0
    %1029 = vmatprep.subr.bf16.mxu0 0
    %1030 = vmatpush2.bf16.msra.mxu0 0
    %1031 = vmatprep.subr.bf16.mxu0 0
    %1032 = vmatpush2.bf16.msra.mxu0 0
    %1033 = vmatprep.subr.bf16.mxu0 0
    %1034 = vmatpush2.bf16.msra.mxu0 0
    %1035 = vmatprep.subr.bf16.mxu0 0
    %1036 = vmatpush2.bf16.msra.mxu0 0
    %1037 = vmatprep.subr.bf16.mxu0 0
    %1038 = vmatpush2.bf16.msra.mxu0 0
    %1039 = vmatprep.subr.bf16.mxu0 0
    %1040 = vmatpush2.bf16.msra.mxu0 0
    %1041 = vmatprep.mubr.bf16.mxu0 0
    %1042 = vmatmul.mubr.bf16.gmra.mxu0 %v1003
    %v1043 = vpop.f32.mrf.mxu0
    %v1044 = vadd.f32 0.0, %v1043
    %v1045 = vpop.f32.mrf.mxu0
    %v1046 = vpop.f32.mrf.mxu0
    %v1047 = vpop.f32.mrf.mxu0
    %1048 = vdwg.mxu0
    %1049 = vrot.lane.b32.xlu0 %v486, 64
    %v1050 = vpop.permute.xlu0 %1049
    %v1052 = vsel %vm501, %v993, 0
    %v1055 = vsel %vm1005, %v1050, 0
    %1057 = vmatprep.subr.bf16.mxu0 0
    %1058 = vmatpush1.bf16.msra.mxu0 0
    %1059 = vmatprep.subr.bf16.mxu0 0
    %1060 = vmatpush1.bf16.msra.mxu0 0
    %1061 = vmatprep.subr.bf16.mxu0 0
    %1062 = vmatpush1.bf16.msra.mxu0 0
    %1063 = vmatprep.subr.bf16.mxu0 0
    %1064 = vmatpush1.bf16.msra.mxu0 0
    %1065 = vmatprep.subr.bf16.mxu0 0
    %1066 = vmatpush1.bf16.msra.mxu0 0
    %1067 = vmatprep.subr.bf16.mxu0 0
    %1068 = vmatpush1.bf16.msra.mxu0 0
    %1069 = vmatprep.subr.bf16.mxu0 0
    %1070 = vmatpush1.bf16.msra.mxu0 0
    %1071 = vmatprep.subr.bf16.mxu0 0
    %1072 = vmatpush1.bf16.msra.mxu0 %v1055
    %1073 = vmatprep.subr.bf16.mxu0 0
    %1074 = vmatpush2.bf16.msra.mxu0 0
    %1075 = vmatprep.subr.bf16.mxu0 0
    %1076 = vmatpush2.bf16.msra.mxu0 0
    %1077 = vmatprep.subr.bf16.mxu0 0
    %1078 = vmatpush2.bf16.msra.mxu0 0
    %1079 = vmatprep.subr.bf16.mxu0 0
    %1080 = vmatpush2.bf16.msra.mxu0 0
    %1081 = vmatprep.subr.bf16.mxu0 0
    %1082 = vmatpush2.bf16.msra.mxu0 0
    %1083 = vmatprep.subr.bf16.mxu0 0
    %1084 = vmatpush2.bf16.msra.mxu0 0
    %1085 = vmatprep.subr.bf16.mxu0 0
    %1086 = vmatpush2.bf16.msra.mxu0 0
    %1087 = vmatprep.subr.bf16.mxu0 0
    %1088 = vmatpush2.bf16.msra.mxu0 0
    %1089 = vmatprep.mubr.bf16.mxu0 0
    %1090 = vmatmul.mubr.bf16.gmra.mxu0 %v1052
    %v1091 = vpop.f32.mrf.mxu0
    %v1092 = vadd.f32 0.0, %v1091
    %v1093 = vpop.f32.mrf.mxu0
    %v1094 = vpop.f32.mrf.mxu0
    %v1095 = vpop.f32.mrf.mxu0
    %1096 = vdwg.mxu0
    %1097 = vrot.lane.b32.xlu0 %v597, 64
    %v1098 = vpop.permute.xlu0 %1097
    %v1100 = vsel %vm501, %v994, 0
    %v1103 = vsel %vm1005, %v1098, 0
    %1105 = vmatprep.subr.bf16.mxu0 0
    %1106 = vmatpush1.bf16.msra.mxu0 0
    %1107 = vmatprep.subr.bf16.mxu0 0
    %1108 = vmatpush1.bf16.msra.mxu0 0
    %1109 = vmatprep.subr.bf16.mxu0 0
    %1110 = vmatpush1.bf16.msra.mxu0 0
    %1111 = vmatprep.subr.bf16.mxu0 0
    %1112 = vmatpush1.bf16.msra.mxu0 0
    %1113 = vmatprep.subr.bf16.mxu0 0
    %1114 = vmatpush1.bf16.msra.mxu0 0
    %1115 = vmatprep.subr.bf16.mxu0 0
    %1116 = vmatpush1.bf16.msra.mxu0 0
    %1117 = vmatprep.subr.bf16.mxu0 0
    %1118 = vmatpush1.bf16.msra.mxu0 0
    %1119 = vmatprep.subr.bf16.mxu0 0
    %1120 = vmatpush1.bf16.msra.mxu0 %v1103
    %1121 = vmatprep.subr.bf16.mxu0 0
    %1122 = vmatpush2.bf16.msra.mxu0 0
    %1123 = vmatprep.subr.bf16.mxu0 0
    %1124 = vmatpush2.bf16.msra.mxu0 0
    %1125 = vmatprep.subr.bf16.mxu0 0
    %1126 = vmatpush2.bf16.msra.mxu0 0
    %1127 = vmatprep.subr.bf16.mxu0 0
    %1128 = vmatpush2.bf16.msra.mxu0 0
    %1129 = vmatprep.subr.bf16.mxu0 0
    %1130 = vmatpush2.bf16.msra.mxu0 0
    %1131 = vmatprep.subr.bf16.mxu0 0
    %1132 = vmatpush2.bf16.msra.mxu0 0
    %1133 = vmatprep.subr.bf16.mxu0 0
    %1134 = vmatpush2.bf16.msra.mxu0 0
    %1135 = vmatprep.subr.bf16.mxu0 0
    %1136 = vmatpush2.bf16.msra.mxu0 0
    %1137 = vmatprep.mubr.bf16.mxu0 0
    %1138 = vmatmul.mubr.bf16.gmra.mxu0 %v1100
    %v1139 = vpop.f32.mrf.mxu0
    %v1140 = vadd.f32 0.0, %v1139
    %v1141 = vpop.f32.mrf.mxu0
    %v1142 = vpop.f32.mrf.mxu0
    %v1143 = vpop.f32.mrf.mxu0
    %1144 = vdwg.mxu0
    %1145 = vrot.lane.b32.xlu0 %v647, 64
    %v1146 = vpop.permute.xlu0 %1145
    %v1148 = vsel %vm501, %v995, 0
    %v1151 = vsel %vm1005, %v1146, 0
    %1153 = vmatprep.subr.bf16.mxu0 0
    %1154 = vmatpush1.bf16.msra.mxu0 0
    %1155 = vmatprep.subr.bf16.mxu0 0
    %1156 = vmatpush1.bf16.msra.mxu0 0
    %1157 = vmatprep.subr.bf16.mxu0 0
    %1158 = vmatpush1.bf16.msra.mxu0 0
    %1159 = vmatprep.subr.bf16.mxu0 0
    %1160 = vmatpush1.bf16.msra.mxu0 0
    %1161 = vmatprep.subr.bf16.mxu0 0
    %1162 = vmatpush1.bf16.msra.mxu0 0
    %1163 = vmatprep.subr.bf16.mxu0 0
    %1164 = vmatpush1.bf16.msra.mxu0 0
    %1165 = vmatprep.subr.bf16.mxu0 0
    %1166 = vmatpush1.bf16.msra.mxu0 0
    %1167 = vmatprep.subr.bf16.mxu0 0
    %1168 = vmatpush1.bf16.msra.mxu0 %v1151
    %1169 = vmatprep.subr.bf16.mxu0 0
    %1170 = vmatpush2.bf16.msra.mxu0 0
    %1171 = vmatprep.subr.bf16.mxu0 0
    %1172 = vmatpush2.bf16.msra.mxu0 0
    %1173 = vmatprep.subr.bf16.mxu0 0
    %1174 = vmatpush2.bf16.msra.mxu0 0
    %1175 = vmatprep.subr.bf16.mxu0 0
    %1176 = vmatpush2.bf16.msra.mxu0 0
    %1177 = vmatprep.subr.bf16.mxu0 0
    %1178 = vmatpush2.bf16.msra.mxu0 0
    %1179 = vmatprep.subr.bf16.mxu0 0
    %1180 = vmatpush2.bf16.msra.mxu0 0
    %1181 = vmatprep.subr.bf16.mxu0 0
    %1182 = vmatpush2.bf16.msra.mxu0 0
    %1183 = vmatprep.subr.bf16.mxu0 0
    %1184 = vmatpush2.bf16.msra.mxu0 0
    %1185 = vmatprep.mubr.bf16.mxu0 0
    %1186 = vmatmul.mubr.bf16.gmra.mxu0 %v1148
    %v1187 = vpop.f32.mrf.mxu0
    %v1188 = vadd.f32 0.0, %v1187
    %v1189 = vpop.f32.mrf.mxu0
    %v1190 = vpop.f32.mrf.mxu0
    %v1191 = vpop.f32.mrf.mxu0
    %1192 = vdwg.mxu0
    %1193 = vrot.lane.b32.xlu0 %v697, 64
    %v1194 = vpop.permute.xlu0 %1193
    %v1196 = vsel %vm501, %v996, 0
    %v1199 = vsel %vm1005, %v1194, 0
    %1201 = vmatprep.subr.bf16.mxu0 0
    %1202 = vmatpush1.bf16.msra.mxu0 0
    %1203 = vmatprep.subr.bf16.mxu0 0
    %1204 = vmatpush1.bf16.msra.mxu0 0
    %1205 = vmatprep.subr.bf16.mxu0 0
    %1206 = vmatpush1.bf16.msra.mxu0 0
    %1207 = vmatprep.subr.bf16.mxu0 0
    %1208 = vmatpush1.bf16.msra.mxu0 0
    %1209 = vmatprep.subr.bf16.mxu0 0
    %1210 = vmatpush1.bf16.msra.mxu0 0
    %1211 = vmatprep.subr.bf16.mxu0 0
    %1212 = vmatpush1.bf16.msra.mxu0 0
    %1213 = vmatprep.subr.bf16.mxu0 0
    %1214 = vmatpush1.bf16.msra.mxu0 0
    %1215 = vmatprep.subr.bf16.mxu0 0
    %1216 = vmatpush1.bf16.msra.mxu0 %v1199
    %1217 = vmatprep.subr.bf16.mxu0 0
    %1218 = vmatpush2.bf16.msra.mxu0 0
    %1219 = vmatprep.subr.bf16.mxu0 0
    %1220 = vmatpush2.bf16.msra.mxu0 0
    %1221 = vmatprep.subr.bf16.mxu0 0
    %1222 = vmatpush2.bf16.msra.mxu0 0
    %1223 = vmatprep.subr.bf16.mxu0 0
    %1224 = vmatpush2.bf16.msra.mxu0 0
    %1225 = vmatprep.subr.bf16.mxu0 0
    %1226 = vmatpush2.bf16.msra.mxu0 0
    %1227 = vmatprep.subr.bf16.mxu0 0
    %1228 = vmatpush2.bf16.msra.mxu0 0
    %1229 = vmatprep.subr.bf16.mxu0 0
    %1230 = vmatpush2.bf16.msra.mxu0 0
    %1231 = vmatprep.subr.bf16.mxu0 0
    %1232 = vmatpush2.bf16.msra.mxu0 0
    %1233 = vmatprep.mubr.bf16.mxu0 0
    %1234 = vmatmul.mubr.bf16.gmra.mxu0 %v1196
    %v1235 = vpop.f32.mrf.mxu0
    %v1236 = vadd.f32 0.0, %v1235
    %v1237 = vpop.f32.mrf.mxu0
    %v1238 = vpop.f32.mrf.mxu0
    %v1239 = vpop.f32.mrf.mxu0
    %1240 = vdwg.mxu0
    %1241 = vrot.lane.b32.xlu0 %v747, 64
    %v1242 = vpop.permute.xlu0 %1241
    %v1244 = vsel %vm501, %v997, 0
    %v1247 = vsel %vm1005, %v1242, 0
    %1249 = vmatprep.subr.bf16.mxu0 0
    %1250 = vmatpush1.bf16.msra.mxu0 0
    %1251 = vmatprep.subr.bf16.mxu0 0
    %1252 = vmatpush1.bf16.msra.mxu0 0
    %1253 = vmatprep.subr.bf16.mxu0 0
    %1254 = vmatpush1.bf16.msra.mxu0 0
    %1255 = vmatprep.subr.bf16.mxu0 0
    %1256 = vmatpush1.bf16.msra.mxu0 0
    %1257 = vmatprep.subr.bf16.mxu0 0
    %1258 = vmatpush1.bf16.msra.mxu0 0
    %1259 = vmatprep.subr.bf16.mxu0 0
    %1260 = vmatpush1.bf16.msra.mxu0 0
    %1261 = vmatprep.subr.bf16.mxu0 0
    %1262 = vmatpush1.bf16.msra.mxu0 0
    %1263 = vmatprep.subr.bf16.mxu0 0
    %1264 = vmatpush1.bf16.msra.mxu0 %v1247
    %1265 = vmatprep.subr.bf16.mxu0 0
    %1266 = vmatpush2.bf16.msra.mxu0 0
    %1267 = vmatprep.subr.bf16.mxu0 0
    %1268 = vmatpush2.bf16.msra.mxu0 0
    %1269 = vmatprep.subr.bf16.mxu0 0
    %1270 = vmatpush2.bf16.msra.mxu0 0
    %1271 = vmatprep.subr.bf16.mxu0 0
    %1272 = vmatpush2.bf16.msra.mxu0 0
    %1273 = vmatprep.subr.bf16.mxu0 0
    %1274 = vmatpush2.bf16.msra.mxu0 0
    %1275 = vmatprep.subr.bf16.mxu0 0
    %1276 = vmatpush2.bf16.msra.mxu0 0
    %1277 = vmatprep.subr.bf16.mxu0 0
    %1278 = vmatpush2.bf16.msra.mxu0 0
    %1279 = vmatprep.subr.bf16.mxu0 0
    %1280 = vmatpush2.bf16.msra.mxu0 0
    %1281 = vmatprep.mubr.bf16.mxu0 0
    %1282 = vmatmul.mubr.bf16.gmra.mxu0 %v1244
    %v1283 = vpop.f32.mrf.mxu0
    %v1284 = vadd.f32 0.0, %v1283
    %v1285 = vpop.f32.mrf.mxu0
    %v1286 = vpop.f32.mrf.mxu0
    %v1287 = vpop.f32.mrf.mxu0
    %1288 = vdwg.mxu0
    %1289 = vrot.lane.b32.xlu0 %v797, 64
    %v1290 = vpop.permute.xlu0 %1289
    %v1292 = vsel %vm501, %v998, 0
    %v1295 = vsel %vm1005, %v1290, 0
    %1297 = vmatprep.subr.bf16.mxu0 0
    %1298 = vmatpush1.bf16.msra.mxu0 0
    %1299 = vmatprep.subr.bf16.mxu0 0
    %1300 = vmatpush1.bf16.msra.mxu0 0
    %1301 = vmatprep.subr.bf16.mxu0 0
    %1302 = vmatpush1.bf16.msra.mxu0 0
    %1303 = vmatprep.subr.bf16.mxu0 0
    %1304 = vmatpush1.bf16.msra.mxu0 0
    %1305 = vmatprep.subr.bf16.mxu0 0
    %1306 = vmatpush1.bf16.msra.mxu0 0
    %1307 = vmatprep.subr.bf16.mxu0 0
    %1308 = vmatpush1.bf16.msra.mxu0 0
    %1309 = vmatprep.subr.bf16.mxu0 0
    %1310 = vmatpush1.bf16.msra.mxu0 0
    %1311 = vmatprep.subr.bf16.mxu0 0
    %1312 = vmatpush1.bf16.msra.mxu0 %v1295
    %1313 = vmatprep.subr.bf16.mxu0 0
    %1314 = vmatpush2.bf16.msra.mxu0 0
    %1315 = vmatprep.subr.bf16.mxu0 0
    %1316 = vmatpush2.bf16.msra.mxu0 0
    %1317 = vmatprep.subr.bf16.mxu0 0
    %1318 = vmatpush2.bf16.msra.mxu0 0
    %1319 = vmatprep.subr.bf16.mxu0 0
    %1320 = vmatpush2.bf16.msra.mxu0 0
    %1321 = vmatprep.subr.bf16.mxu0 0
    %1322 = vmatpush2.bf16.msra.mxu0 0
    %1323 = vmatprep.subr.bf16.mxu0 0
    %1324 = vmatpush2.bf16.msra.mxu0 0
    %1325 = vmatprep.subr.bf16.mxu0 0
    %1326 = vmatpush2.bf16.msra.mxu0 0
    %1327 = vmatprep.subr.bf16.mxu0 0
    %1328 = vmatpush2.bf16.msra.mxu0 0
    %1329 = vmatprep.mubr.bf16.mxu0 0
    %1330 = vmatmul.mubr.bf16.gmra.mxu0 %v1292
    %v1331 = vpop.f32.mrf.mxu0
    %v1332 = vadd.f32 0.0, %v1331
    %v1333 = vpop.f32.mrf.mxu0
    %v1334 = vpop.f32.mrf.mxu0
    %v1335 = vpop.f32.mrf.mxu0
    %1336 = vdwg.mxu0
    %1337 = vrot.lane.b32.xlu0 %v847, 64
    %v1338 = vpop.permute.xlu0 %1337
    %v1340 = vsel %vm501, %v999, 0
    %v1343 = vsel %vm1005, %v1338, 0
    %1345 = vmatprep.subr.bf16.mxu0 0
    %1346 = vmatpush1.bf16.msra.mxu0 0
    %1347 = vmatprep.subr.bf16.mxu0 0
    %1348 = vmatpush1.bf16.msra.mxu0 0
    %1349 = vmatprep.subr.bf16.mxu0 0
    %1350 = vmatpush1.bf16.msra.mxu0 0
    %1351 = vmatprep.subr.bf16.mxu0 0
    %1352 = vmatpush1.bf16.msra.mxu0 0
    %1353 = vmatprep.subr.bf16.mxu0 0
    %1354 = vmatpush1.bf16.msra.mxu0 0
    %1355 = vmatprep.subr.bf16.mxu0 0
    %1356 = vmatpush1.bf16.msra.mxu0 0
    %1357 = vmatprep.subr.bf16.mxu0 0
    %1358 = vmatpush1.bf16.msra.mxu0 0
    %1359 = vmatprep.subr.bf16.mxu0 0
    %1360 = vmatpush1.bf16.msra.mxu0 %v1343
    %1361 = vmatprep.subr.bf16.mxu0 0
    %1362 = vmatpush2.bf16.msra.mxu0 0
    %1363 = vmatprep.subr.bf16.mxu0 0
    %1364 = vmatpush2.bf16.msra.mxu0 0
    %1365 = vmatprep.subr.bf16.mxu0 0
    %1366 = vmatpush2.bf16.msra.mxu0 0
    %1367 = vmatprep.subr.bf16.mxu0 0
    %1368 = vmatpush2.bf16.msra.mxu0 0
    %1369 = vmatprep.subr.bf16.mxu0 0
    %1370 = vmatpush2.bf16.msra.mxu0 0
    %1371 = vmatprep.subr.bf16.mxu0 0
    %1372 = vmatpush2.bf16.msra.mxu0 0
    %1373 = vmatprep.subr.bf16.mxu0 0
    %1374 = vmatpush2.bf16.msra.mxu0 0
    %1375 = vmatprep.subr.bf16.mxu0 0
    %1376 = vmatpush2.bf16.msra.mxu0 0
    %1377 = vmatprep.mubr.bf16.mxu0 0
    %1378 = vmatmul.mubr.bf16.gmra.mxu0 %v1340
    %v1379 = vpop.f32.mrf.mxu0
    %v1380 = vadd.f32 0.0, %v1379
    %v1381 = vpop.f32.mrf.mxu0
    %v1382 = vpop.f32.mrf.mxu0
    %v1383 = vpop.f32.mrf.mxu0
    %1384 = vdwg.mxu0
    %v1385 = vld [vmem:[#allocation15] sm:$0xf]
    %v1386 = vld [vmem:[#allocation15 + $0x4] sm:$0xf]
    %v1387 = vld [vmem:[#allocation15 + $0x8] sm:$0xf]
    %v1388 = vld [vmem:[#allocation15 + $0xc] sm:$0xf]
    %v1389 = vld [vmem:[#allocation17] sm:$0x1]
    %v1390 = vpack.c.bf16 %v1092, %v1044
    %v1391 = vpack.c.bf16 %v1188, %v1140
    %v1392 = vpack.c.bf16 %v1284, %v1236
    %v1393 = vpack.c.bf16 %v1380, %v1332
    %v1395 = vsel %vm501, %v1391, 0
    %v1398 = vsel %vm1005, %v1386, 0
    %1400 = vmatprep.subr.bf16.mxu0 0
    %1401 = vmatpush1.bf16.msra.mxu0 0
    %1402 = vmatprep.subr.bf16.mxu0 0
    %1403 = vmatpush1.bf16.msra.mxu0 0
    %1404 = vmatprep.subr.bf16.mxu0 0
    %1405 = vmatpush1.bf16.msra.mxu0 0
    %1406 = vmatprep.subr.bf16.mxu0 0
    %1407 = vmatpush1.bf16.msra.mxu0 0
    %1408 = vmatprep.subr.bf16.mxu0 0
    %1409 = vmatpush1.bf16.msra.mxu0 0
    %1410 = vmatprep.subr.bf16.mxu0 0
    %1411 = vmatpush1.bf16.msra.mxu0 0
    %1412 = vmatprep.subr.bf16.mxu0 0
    %1413 = vmatpush1.bf16.msra.mxu0 0
    %1414 = vmatprep.subr.bf16.mxu0 0
    %1415 = vmatpush1.bf16.msra.mxu0 %v1398
    %1416 = vmatprep.subr.bf16.mxu0 0
    %1417 = vmatpush2.bf16.msra.mxu0 0
    %1418 = vmatprep.subr.bf16.mxu0 0
    %1419 = vmatpush2.bf16.msra.mxu0 0
    %1420 = vmatprep.subr.bf16.mxu0 0
    %1421 = vmatpush2.bf16.msra.mxu0 0
    %1422 = vmatprep.subr.bf16.mxu0 0
    %1423 = vmatpush2.bf16.msra.mxu0 0
    %1424 = vmatprep.subr.bf16.mxu0 0
    %1425 = vmatpush2.bf16.msra.mxu0 0
    %1426 = vmatprep.subr.bf16.mxu0 0
    %1427 = vmatpush2.bf16.msra.mxu0 0
    %1428 = vmatprep.subr.bf16.mxu0 0
    %1429 = vmatpush2.bf16.msra.mxu0 0
    %1430 = vmatprep.subr.bf16.mxu0 0
    %1431 = vmatpush2.bf16.msra.mxu0 0
    %1432 = vmatprep.mubr.bf16.mxu0 0
    %1433 = vmatmul.mubr.bf16.gmra.mxu0 %v1395
    %v1434 = vpop.f32.mrf.mxu0
    %v1435 = vadd.f32 0.0, %v1434
    %v1436 = vpop.f32.mrf.mxu0
    %v1437 = vpop.f32.mrf.mxu0
    %v1438 = vadd.f32 0.0, %v1437
    %v1439 = vpop.f32.mrf.mxu0
    %1440 = vdwg.mxu0
    %v1442 = vsel %vm501, %v1390, 0
    %v1445 = vsel %vm1005, %v1385, 0
    %1447 = vmatprep.subr.bf16.mxu0 0
    %1448 = vmatpush1.bf16.msra.mxu0 0
    %1449 = vmatprep.subr.bf16.mxu0 0
    %1450 = vmatpush1.bf16.msra.mxu0 0
    %1451 = vmatprep.subr.bf16.mxu0 0
    %1452 = vmatpush1.bf16.msra.mxu0 0
    %1453 = vmatprep.subr.bf16.mxu0 0
    %1454 = vmatpush1.bf16.msra.mxu0 0
    %1455 = vmatprep.subr.bf16.mxu0 0
    %1456 = vmatpush1.bf16.msra.mxu0 0
    %1457 = vmatprep.subr.bf16.mxu0 0
    %1458 = vmatpush1.bf16.msra.mxu0 0
    %1459 = vmatprep.subr.bf16.mxu0 0
    %1460 = vmatpush1.bf16.msra.mxu0 0
    %1461 = vmatprep.subr.bf16.mxu0 0
    %1462 = vmatpush1.bf16.msra.mxu0 %v1445
    %1463 = vmatprep.subr.bf16.mxu0 0
    %1464 = vmatpush2.bf16.msra.mxu0 0
    %1465 = vmatprep.subr.bf16.mxu0 0
    %1466 = vmatpush2.bf16.msra.mxu0 0
    %1467 = vmatprep.subr.bf16.mxu0 0
    %1468 = vmatpush2.bf16.msra.mxu0 0
    %1469 = vmatprep.subr.bf16.mxu0 0
    %1470 = vmatpush2.bf16.msra.mxu0 0
    %1471 = vmatprep.subr.bf16.mxu0 0
    %1472 = vmatpush2.bf16.msra.mxu0 0
    %1473 = vmatprep.subr.bf16.mxu0 0
    %1474 = vmatpush2.bf16.msra.mxu0 0
    %1475 = vmatprep.subr.bf16.mxu0 0
    %1476 = vmatpush2.bf16.msra.mxu0 0
    %1477 = vmatprep.subr.bf16.mxu0 0
    %1478 = vmatpush2.bf16.msra.mxu0 0
    %1479 = vmatprep.mubr.bf16.mxu0 0
    %1480 = vmatmul.mubr.bf16.gmra.mxu0 %v1442
    %v1481 = vpop.f32.mrf.mxu0
    %v1482 = vadd.f32 %v1435, %v1481
    %v1483 = vpop.f32.mrf.mxu0
    %v1484 = vpop.f32.mrf.mxu0
    %v1485 = vadd.f32 %v1438, %v1484
    %v1486 = vpop.f32.mrf.mxu0
    %1487 = vdwg.mxu0
    %v1489 = vsel %vm501, %v1392, 0
    %v1492 = vsel %vm1005, %v1387, 0
    %1494 = vmatprep.subr.bf16.mxu0 0
    %1495 = vmatpush1.bf16.msra.mxu0 0
    %1496 = vmatprep.subr.bf16.mxu0 0
    %1497 = vmatpush1.bf16.msra.mxu0 0
    %1498 = vmatprep.subr.bf16.mxu0 0
    %1499 = vmatpush1.bf16.msra.mxu0 0
    %1500 = vmatprep.subr.bf16.mxu0 0
    %1501 = vmatpush1.bf16.msra.mxu0 0
    %1502 = vmatprep.subr.bf16.mxu0 0
    %1503 = vmatpush1.bf16.msra.mxu0 0
    %1504 = vmatprep.subr.bf16.mxu0 0
    %1505 = vmatpush1.bf16.msra.mxu0 0
    %1506 = vmatprep.subr.bf16.mxu0 0
    %1507 = vmatpush1.bf16.msra.mxu0 0
    %1508 = vmatprep.subr.bf16.mxu0 0
    %1509 = vmatpush1.bf16.msra.mxu0 %v1492
    %1510 = vmatprep.subr.bf16.mxu0 0
    %1511 = vmatpush2.bf16.msra.mxu0 0
    %1512 = vmatprep.subr.bf16.mxu0 0
    %1513 = vmatpush2.bf16.msra.mxu0 0
    %1514 = vmatprep.subr.bf16.mxu0 0
    %1515 = vmatpush2.bf16.msra.mxu0 0
    %1516 = vmatprep.subr.bf16.mxu0 0
    %1517 = vmatpush2.bf16.msra.mxu0 0
    %1518 = vmatprep.subr.bf16.mxu0 0
    %1519 = vmatpush2.bf16.msra.mxu0 0
    %1520 = vmatprep.subr.bf16.mxu0 0
    %1521 = vmatpush2.bf16.msra.mxu0 0
    %1522 = vmatprep.subr.bf16.mxu0 0
    %1523 = vmatpush2.bf16.msra.mxu0 0
    %1524 = vmatprep.subr.bf16.mxu0 0
    %1525 = vmatpush2.bf16.msra.mxu0 0
    %1526 = vmatprep.mubr.bf16.mxu0 0
    %1527 = vmatmul.mubr.bf16.gmra.mxu0 %v1489
    %v1528 = vpop.f32.mrf.mxu0
    %v1529 = vadd.f32 0.0, %v1528
    %v1530 = vpop.f32.mrf.mxu0
    %v1531 = vpop.f32.mrf.mxu0
    %v1532 = vadd.f32 0.0, %v1531
    %v1533 = vpop.f32.mrf.mxu0
    %1534 = vdwg.mxu0
    %v1535 = vadd.f32 %v1482, %v1529
    %v1536 = vadd.f32 %v1485, %v1532
    %v1538 = vsel %vm501, %v1393, 0
    %v1541 = vsel %vm1005, %v1388, 0
    %1543 = vmatprep.subr.bf16.mxu0 0
    %1544 = vmatpush1.bf16.msra.mxu0 0
    %1545 = vmatprep.subr.bf16.mxu0 0
    %1546 = vmatpush1.bf16.msra.mxu0 0
    %1547 = vmatprep.subr.bf16.mxu0 0
    %1548 = vmatpush1.bf16.msra.mxu0 0
    %1549 = vmatprep.subr.bf16.mxu0 0
    %1550 = vmatpush1.bf16.msra.mxu0 0
    %1551 = vmatprep.subr.bf16.mxu0 0
    %1552 = vmatpush1.bf16.msra.mxu0 0
    %1553 = vmatprep.subr.bf16.mxu0 0
    %1554 = vmatpush1.bf16.msra.mxu0 0
    %1555 = vmatprep.subr.bf16.mxu0 0
    %1556 = vmatpush1.bf16.msra.mxu0 0
    %1557 = vmatprep.subr.bf16.mxu0 0
    %1558 = vmatpush1.bf16.msra.mxu0 %v1541
    %1559 = vmatprep.subr.bf16.mxu0 0
    %1560 = vmatpush2.bf16.msra.mxu0 0
    %1561 = vmatprep.subr.bf16.mxu0 0
    %1562 = vmatpush2.bf16.msra.mxu0 0
    %1563 = vmatprep.subr.bf16.mxu0 0
    %1564 = vmatpush2.bf16.msra.mxu0 0
    %1565 = vmatprep.subr.bf16.mxu0 0
    %1566 = vmatpush2.bf16.msra.mxu0 0
    %1567 = vmatprep.subr.bf16.mxu0 0
    %1568 = vmatpush2.bf16.msra.mxu0 0
    %1569 = vmatprep.subr.bf16.mxu0 0
    %1570 = vmatpush2.bf16.msra.mxu0 0
    %1571 = vmatprep.subr.bf16.mxu0 0
    %1572 = vmatpush2.bf16.msra.mxu0 0
    %1573 = vmatprep.subr.bf16.mxu0 0
    %1574 = vmatpush2.bf16.msra.mxu0 0
    %1575 = vmatprep.mubr.bf16.mxu0 0
    %1576 = vmatmul.mubr.bf16.gmra.mxu0 %v1538
    %v1577 = vpop.f32.mrf.mxu0
    %v1578 = vadd.f32 0.0, %v1577
    %v1579 = vpop.f32.mrf.mxu0
    %v1580 = vpop.f32.mrf.mxu0
    %v1581 = vadd.f32 0.0, %v1580
    %v1582 = vpop.f32.mrf.mxu0
    %1583 = vdwg.mxu0
    %v1584 = vadd.f32 %v1535, %v1578
    %v1585 = vadd.f32 %v1536, %v1581
    %v1587 = vlaneseq
    %v1588 = vshrl.u32 %v1587, 7
    %v1589 = vsub.s32 0, %v1588
    %v1590 = vrot.slane %v1389, %v1589
    %v1592 = vadd.f32 %v1584, %v1590
    %v1593 = vadd.f32 %v1585, %v1590
    %v1594 = vadd.f32 %v1592, %v346
    %v1595 = vadd.f32 %v1593, %v347
    %v1596 = vsel %vm363, %v1594, 0.0
    %1597 = vadd.xlane.f32.xlu0 %v1596
    %v1598 = vpop.xlane.xlu0 %1597
    %v1599 = vsel %vm363, %v1595, 0.0
    %1600 = vadd.xlane.f32.xlu0 %v1599
    %v1601 = vpop.xlane.xlu0 %1600
    %v1602 = vmul.f32 %v1598, %v370
    %v1603 = vmul.f32 %v1601, %v370
    %v1604 = vsub.f32 %v1594, %v1602
    %v1605 = vsub.f32 %v1595, %v1603
    %v1606 = vmul.f32 %v1604, %v1604
    %v1607 = vmul.f32 %v1605, %v1605
    %v1608 = vsel %vm363, %v1606, 0.0
    %1609 = vadd.xlane.f32.xlu0 %v1608
    %v1610 = vpop.xlane.xlu0 %1609
    %v1611 = vsel %vm363, %v1607, 0.0
    %1612 = vadd.xlane.f32.xlu0 %v1611
    %v1613 = vpop.xlane.xlu0 %1612
    %v1614 = vmul.f32 %v1610, %v370
    %v1615 = vmul.f32 %v1613, %v370
    %v1616 = vadd.f32 %v1614, 1e-06
    %v1617 = vadd.f32 %v1615, 1e-06
    %v1618 = vrsqrt.pop %v1616
    %v1619 = vrsqrt.pop %v1617
    %v1620 = vmul.f32 %v1604, %v1618
    %v1621 = vmul.f32 %v1605, %v1619
    %v1622 = vlaneseq
    %v1623 = vshrl.u32 %v1622, 7
    %v1624 = vsub.s32 2, %v1623
    %v1625 = vrot.slane %v362, %v1624
    %v1626 = vmul.f32 %v1620, %v1625
    %v1627 = vmul.f32 %v1621, %v1625
    %v1628 = vlaneseq
    %v1629 = vshrl.u32 %v1628, 7
    %v1630 = vsub.s32 3, %v1629
    %v1631 = vrot.slane %v362, %v1630
    %v1632 = vadd.f32 %v1626, %v1631
    %v1633 = vadd.f32 %v1627, %v1631
    %v1634 = vpack.c.bf16 %v1633, %v1632
    %v1635 = vld [vmem:[#allocation18] sm:$0xf]
    %v1636 = vld [vmem:[#allocation18 + $0x4] sm:$0xf]
    %v1637 = vld [vmem:[#allocation18 + $0x8] sm:$0xf]
    %v1638 = vld [vmem:[#allocation18 + $0xc] sm:$0xf]
    %v1639 = vld [vmem:[#allocation20] sm:$0x1]
    %v1641 = vlaneseq
    %v1642 = vshrl.u32 %v1641, 7
    %v1643 = vsub.s32 0, %v1642
    %v1644 = vrot.slane %v1639, %v1643
    %v1650 = vunpack.c.l.b16 %v1635
    %v1651 = vunpack.c.l.b16 %v1636
    %v1652 = vunpack.c.l.b16 %v1637
    %v1653 = vunpack.c.l.b16 %v1638
    %v1654 = vpack.c.b16 %v1651, %v1650
    %v1655 = vpack.c.b16 %v1653, %v1652
    %v1659 = vsel %vm363, %v1634, 0
    %1661 = vmatprep.subr.bf16.mxu0 0
    %1662 = vmatpush1.bf16.msra.mxu0 0
    %1663 = vmatprep.subr.bf16.mxu0 0
    %1664 = vmatpush1.bf16.msra.mxu0 0
    %1665 = vmatprep.subr.bf16.mxu0 0
    %1666 = vmatpush1.bf16.msra.mxu0 0
    %1667 = vmatprep.subr.bf16.mxu0 0
    %1668 = vmatpush1.bf16.msra.mxu0 0
    %1669 = vmatprep.subr.bf16.mxu0 0
    %1670 = vmatpush1.bf16.msra.mxu0 0
    %1671 = vmatprep.subr.bf16.mxu0 0
    %1672 = vmatpush1.bf16.msra.mxu0 0
    %1673 = vmatprep.subr.bf16.mxu0 0
    %1674 = vmatpush1.bf16.msra.mxu0 %v1655
    %1675 = vmatprep.subr.bf16.mxu0 0
    %1676 = vmatpush1.bf16.msra.mxu0 %v1654
    %1677 = vmatprep.subr.bf16.mxu0 0
    %1678 = vmatpush2.bf16.msra.mxu0 0
    %1679 = vmatprep.subr.bf16.mxu0 0
    %1680 = vmatpush2.bf16.msra.mxu0 0
    %1681 = vmatprep.subr.bf16.mxu0 0
    %1682 = vmatpush2.bf16.msra.mxu0 0
    %1683 = vmatprep.subr.bf16.mxu0 0
    %1684 = vmatpush2.bf16.msra.mxu0 0
    %1685 = vmatprep.subr.bf16.mxu0 0
    %1686 = vmatpush2.bf16.msra.mxu0 0
    %1687 = vmatprep.subr.bf16.mxu0 0
    %1688 = vmatpush2.bf16.msra.mxu0 0
    %1689 = vmatprep.subr.bf16.mxu0 0
    %1690 = vmatpush2.bf16.msra.mxu0 0
    %1691 = vmatprep.subr.bf16.mxu0 0
    %1692 = vmatpush2.bf16.msra.mxu0 0
    %1693 = vmatprep.mubr.bf16.mxu0 0
    %1694 = vmatmul.mubr.bf16.gmra.mxu0 %v1659
    %v1695 = vpop.f32.mrf.mxu0
    %v1696 = vadd.f32 %v1644, %v1695
    %v1697 = vpop.f32.mrf.mxu0
    %v1698 = vpop.f32.mrf.mxu0
    %v1699 = vadd.f32 %v1644, %v1698
    %v1700 = vpop.f32.mrf.mxu0
    %1701 = vdwg.mxu0
    %v1702 = vpack.c.bf16 %v349, %v348
    %v1703 = vpack.c.bf16 %v351, %v350
    %v1704 = vld [vmem:[#allocation21] sm:$0xf]
    %v1705 = vld [vmem:[#allocation21 + $0x4] sm:$0xf]
    %v1706 = vld [vmem:[#allocation21 + $0x8] sm:$0xf]
    %v1707 = vld [vmem:[#allocation21 + $0xc] sm:$0xf]
    %v1708 = vld [vmem:[#allocation23] sm:$0x1]
    %v1710 = vlaneseq
    %v1711 = vshrl.u32 %v1710, 7
    %v1712 = vsub.s32 0, %v1711
    %v1713 = vrot.slane %v1708, %v1712
    %v1719 = vunpack.c.l.b16 %v1704
    %v1720 = vunpack.c.l.b16 %v1705
    %v1721 = vunpack.c.l.b16 %v1706
    %v1722 = vunpack.c.l.b16 %v1707
    %v1723 = vpack.c.b16 %v1720, %v1719
    %v1724 = vpack.c.b16 %v1722, %v1721
    %v1728 = vsel %vm363, %v1702, 0
    %v1731 = vsel %vm363, %v1703, 0
    %1733 = vmatprep.subr.bf16.mxu0 0
    %1734 = vmatpush1.bf16.msra.mxu0 0
    %1735 = vmatprep.subr.bf16.mxu0 0
    %1736 = vmatpush1.bf16.msra.mxu0 0
    %1737 = vmatprep.subr.bf16.mxu0 0
    %1738 = vmatpush1.bf16.msra.mxu0 0
    %1739 = vmatprep.subr.bf16.mxu0 0
    %1740 = vmatpush1.bf16.msra.mxu0 0
    %1741 = vmatprep.subr.bf16.mxu0 0
    %1742 = vmatpush1.bf16.msra.mxu0 0
    %1743 = vmatprep.subr.bf16.mxu0 0
    %1744 = vmatpush1.bf16.msra.mxu0 0
    %1745 = vmatprep.subr.bf16.mxu0 0
    %1746 = vmatpush1.bf16.msra.mxu0 %v1724
    %1747 = vmatprep.subr.bf16.mxu0 0
    %1748 = vmatpush1.bf16.msra.mxu0 %v1723
    %1749 = vmatprep.subr.bf16.mxu0 0
    %1750 = vmatpush2.bf16.msra.mxu0 0
    %1751 = vmatprep.subr.bf16.mxu0 0
    %1752 = vmatpush2.bf16.msra.mxu0 0
    %1753 = vmatprep.subr.bf16.mxu0 0
    %1754 = vmatpush2.bf16.msra.mxu0 0
    %1755 = vmatprep.subr.bf16.mxu0 0
    %1756 = vmatpush2.bf16.msra.mxu0 0
    %1757 = vmatprep.subr.bf16.mxu0 0
    %1758 = vmatpush2.bf16.msra.mxu0 0
    %1759 = vmatprep.subr.bf16.mxu0 0
    %1760 = vmatpush2.bf16.msra.mxu0 0
    %1761 = vmatprep.subr.bf16.mxu0 0
    %1762 = vmatpush2.bf16.msra.mxu0 0
    %1763 = vmatprep.subr.bf16.mxu0 0
    %1764 = vmatpush2.bf16.msra.mxu0 0
    %1765 = vmatprep.mubr.bf16.mxu0 0
    %1766 = vmatmul.mubr.bf16.gmra.mxu0 %v1728
    %v1767 = vpop.f32.mrf.mxu0
    %v1768 = vadd.f32 %v1713, %v1767
    %v1769 = vpop.f32.mrf.mxu0
    %v1770 = vpop.f32.mrf.mxu0
    %v1771 = vadd.f32 %v1713, %v1770
    %v1772 = vpop.f32.mrf.mxu0
    %1773 = vmatprep.mubr.bf16.mxu0 0
    %1774 = vmatmul.mubr.bf16.gmra.mxu0 %v1731
    %v1775 = vpop.f32.mrf.mxu0
    %v1776 = vadd.f32 %v1713, %v1775
    %v1777 = vpop.f32.mrf.mxu0
    %v1778 = vpop.f32.mrf.mxu0
    %v1779 = vadd.f32 %v1713, %v1778
    %v1780 = vpop.f32.mrf.mxu0
    %1781 = vdwg.mxu0
    %v1782 = vpack.c.bf16 %v353, %v352
    %v1783 = vld [vmem:[#allocation24] sm:$0xf]
    %v1784 = vld [vmem:[#allocation24 + $0x4] sm:$0xf]
    %v1785 = vld [vmem:[#allocation24 + $0x8] sm:$0xf]
    %v1786 = vld [vmem:[#allocation24 + $0xc] sm:$0xf]
    %v1787 = vld [vmem:[#allocation26] sm:$0x1]
    %v1789 = vlaneseq
    %v1790 = vshrl.u32 %v1789, 7
    %v1791 = vsub.s32 0, %v1790
    %v1792 = vrot.slane %v1787, %v1791
    %v1798 = vunpack.c.l.b16 %v1783
    %v1799 = vunpack.c.l.b16 %v1784
    %v1800 = vunpack.c.l.b16 %v1785
    %v1801 = vunpack.c.l.b16 %v1786
    %v1802 = vpack.c.b16 %v1799, %v1798
    %v1803 = vpack.c.b16 %v1801, %v1800
    %v1807 = vsel %vm363, %v1782, 0
    %1809 = vmatprep.subr.bf16.mxu0 0
    %1810 = vmatpush1.bf16.msra.mxu0 0
    %1811 = vmatprep.subr.bf16.mxu0 0
    %1812 = vmatpush1.bf16.msra.mxu0 0
    %1813 = vmatprep.subr.bf16.mxu0 0
    %1814 = vmatpush1.bf16.msra.mxu0 0
    %1815 = vmatprep.subr.bf16.mxu0 0
    %1816 = vmatpush1.bf16.msra.mxu0 0
    %1817 = vmatprep.subr.bf16.mxu0 0
    %1818 = vmatpush1.bf16.msra.mxu0 0
    %1819 = vmatprep.subr.bf16.mxu0 0
    %1820 = vmatpush1.bf16.msra.mxu0 0
    %1821 = vmatprep.subr.bf16.mxu0 0
    %1822 = vmatpush1.bf16.msra.mxu0 %v1803
    %1823 = vmatprep.subr.bf16.mxu0 0
    %1824 = vmatpush1.bf16.msra.mxu0 %v1802
    %1825 = vmatprep.subr.bf16.mxu0 0
    %1826 = vmatpush2.bf16.msra.mxu0 0
    %1827 = vmatprep.subr.bf16.mxu0 0
    %1828 = vmatpush2.bf16.msra.mxu0 0
    %1829 = vmatprep.subr.bf16.mxu0 0
    %1830 = vmatpush2.bf16.msra.mxu0 0
    %1831 = vmatprep.subr.bf16.mxu0 0
    %1832 = vmatpush2.bf16.msra.mxu0 0
    %1833 = vmatprep.subr.bf16.mxu0 0
    %1834 = vmatpush2.bf16.msra.mxu0 0
    %1835 = vmatprep.subr.bf16.mxu0 0
    %1836 = vmatpush2.bf16.msra.mxu0 0
    %1837 = vmatprep.subr.bf16.mxu0 0
    %1838 = vmatpush2.bf16.msra.mxu0 0
    %1839 = vmatprep.subr.bf16.mxu0 0
    %1840 = vmatpush2.bf16.msra.mxu0 0
    %1841 = vmatprep.mubr.bf16.mxu0 0
    %1842 = vmatmul.mubr.bf16.gmra.mxu0 %v1807
    %v1843 = vpop.f32.mrf.mxu0
    %v1844 = vadd.f32 %v1792, %v1843
    %v1845 = vpop.f32.mrf.mxu0
    %v1846 = vpop.f32.mrf.mxu0
    %v1847 = vadd.f32 %v1792, %v1846
    %v1848 = vpop.f32.mrf.mxu0
    %1849 = vdwg.mxu0
    %v1850 = vpack.c.bf16 %v1699, %v1696
    %v1852 = vunpack.c.l.b16 %v1850
    %v1853 = vunpack.c.h.b16 %v1850
    %v1854 = vpack.c.b16 %v1852, %v1852
    %v1855 = vpack.c.b16 %v1853, %v1853
    %v1856 = vpack.c.bf16 %v1771, %v1768
    %v1857 = vpack.c.bf16 %v1779, %v1776
    %1858 = vrot.lane.b32.xlu0 %v1854, 120
    %v1859 = vpop.permute.xlu0 %1858
    %1860 = vrot.lane.b32.xlu0 %v1855, 120
    %v1861 = vpop.permute.xlu0 %1860
    %1862 = vrot.lane.b32.xlu0 %v1854, 112
    %v1863 = vpop.permute.xlu0 %1862
    %1864 = vrot.lane.b32.xlu0 %v1855, 112
    %v1865 = vpop.permute.xlu0 %1864
    %1866 = vrot.lane.b32.xlu0 %v1854, 104
    %v1867 = vpop.permute.xlu0 %1866
    %1868 = vrot.lane.b32.xlu0 %v1855, 104
    %v1869 = vpop.permute.xlu0 %1868
    %1872 = vrot.lane.b32.xlu0 %v1856, 120
    %v1873 = vpop.permute.xlu0 %1872
    %1874 = vrot.lane.b32.xlu0 %v1857, 120
    %v1875 = vpop.permute.xlu0 %1874
    %1876 = vrot.lane.b32.xlu0 %v1856, 112
    %v1877 = vpop.permute.xlu0 %1876
    %1878 = vrot.lane.b32.xlu0 %v1857, 112
    %v1879 = vpop.permute.xlu0 %1878
    %1880 = vrot.lane.b32.xlu0 %v1856, 104
    %v1881 = vpop.permute.xlu0 %1880
    %1882 = vrot.lane.b32.xlu0 %v1857, 104
    %v1883 = vpop.permute.xlu0 %1882
    %v1885 = vsel %vm501, %v1854, 0
    %v1888 = vsel %vm501, %v1856, 0
    %1890 = vmatprep.subr.bf16.mxu0 0
    %1891 = vmatpush1.bf16.xpose.msra.mxu0 0
    %1892 = vmatprep.subr.bf16.mxu0 0
    %1893 = vmatpush1.bf16.xpose.msra.mxu0 0
    %1894 = vmatprep.subr.bf16.mxu0 0
    %1895 = vmatpush1.bf16.xpose.msra.mxu0 0
    %1896 = vmatprep.subr.bf16.mxu0 0
    %1897 = vmatpush1.bf16.xpose.msra.mxu0 0
    %1898 = vmatprep.subr.bf16.mxu0 0
    %1899 = vmatpush1.bf16.xpose.msra.mxu0 0
    %1900 = vmatprep.subr.bf16.mxu0 0
    %1901 = vmatpush1.bf16.xpose.msra.mxu0 0
    %1902 = vmatprep.subr.bf16.mxu0 0
    %1903 = vmatpush1.bf16.xpose.msra.mxu0 0
    %1904 = vmatprep.subr.bf16.mxu0 0
    %1905 = vmatpush1.bf16.xpose.msra.mxu0 %v1888
    %1906 = vmatprep.subr.bf16.mxu0 0
    %1907 = vmatpush2.bf16.xpose.msra.mxu0 0
    %1908 = vmatprep.subr.bf16.mxu0 0
    %1909 = vmatpush2.bf16.xpose.msra.mxu0 0
    %1910 = vmatprep.subr.bf16.mxu0 0
    %1911 = vmatpush2.bf16.xpose.msra.mxu0 0
    %1912 = vmatprep.subr.bf16.mxu0 0
    %1913 = vmatpush2.bf16.xpose.msra.mxu0 0
    %1914 = vmatprep.subr.bf16.mxu0 0
    %1915 = vmatpush2.bf16.xpose.msra.mxu0 0
    %1916 = vmatprep.subr.bf16.mxu0 0
    %1917 = vmatpush2.bf16.xpose.msra.mxu0 0
    %1918 = vmatprep.subr.bf16.mxu0 0
    %1919 = vmatpush2.bf16.xpose.msra.mxu0 0
    %1920 = vmatprep.subr.bf16.mxu0 0
    %1921 = vmatpush2.bf16.xpose.msra.mxu0 0
    %1922 = vmatprep.mubr.bf16.mxu0 0
    %1923 = vmatmul.mubr.bf16.gmra.mxu0 %v1885
    %v1924 = vpop.f32.mrf.mxu0
    %v1925 = vadd.f32 0.0, %v1924
    %v1926 = vpop.f32.mrf.mxu0
    %v1927 = vpop.f32.mrf.mxu0
    %v1928 = vpop.f32.mrf.mxu0
    %1929 = vdwg.mxu0
    %v1931 = vsel %vm501, %v1855, 0
    %v1934 = vsel %vm501, %v1857, 0
    %1936 = vmatprep.subr.bf16.mxu0 0
    %1937 = vmatpush1.bf16.xpose.msra.mxu0 0
    %1938 = vmatprep.subr.bf16.mxu0 0
    %1939 = vmatpush1.bf16.xpose.msra.mxu0 0
    %1940 = vmatprep.subr.bf16.mxu0 0
    %1941 = vmatpush1.bf16.xpose.msra.mxu0 0
    %1942 = vmatprep.subr.bf16.mxu0 0
    %1943 = vmatpush1.bf16.xpose.msra.mxu0 0
    %1944 = vmatprep.subr.bf16.mxu0 0
    %1945 = vmatpush1.bf16.xpose.msra.mxu0 0
    %1946 = vmatprep.subr.bf16.mxu0 0
    %1947 = vmatpush1.bf16.xpose.msra.mxu0 0
    %1948 = vmatprep.subr.bf16.mxu0 0
    %1949 = vmatpush1.bf16.xpose.msra.mxu0 0
    %1950 = vmatprep.subr.bf16.mxu0 0
    %1951 = vmatpush1.bf16.xpose.msra.mxu0 %v1934
    %1952 = vmatprep.subr.bf16.mxu0 0
    %1953 = vmatpush2.bf16.xpose.msra.mxu0 0
    %1954 = vmatprep.subr.bf16.mxu0 0
    %1955 = vmatpush2.bf16.xpose.msra.mxu0 0
    %1956 = vmatprep.subr.bf16.mxu0 0
    %1957 = vmatpush2.bf16.xpose.msra.mxu0 0
    %1958 = vmatprep.subr.bf16.mxu0 0
    %1959 = vmatpush2.bf16.xpose.msra.mxu0 0
    %1960 = vmatprep.subr.bf16.mxu0 0
    %1961 = vmatpush2.bf16.xpose.msra.mxu0 0
    %1962 = vmatprep.subr.bf16.mxu0 0
    %1963 = vmatpush2.bf16.xpose.msra.mxu0 0
    %1964 = vmatprep.subr.bf16.mxu0 0
    %1965 = vmatpush2.bf16.xpose.msra.mxu0 0
    %1966 = vmatprep.subr.bf16.mxu0 0
    %1967 = vmatpush2.bf16.xpose.msra.mxu0 0
    %1968 = vmatprep.mubr.bf16.mxu0 0
    %1969 = vmatmul.mubr.bf16.gmra.mxu0 %v1931
    %v1970 = vpop.f32.mrf.mxu0
    %v1971 = vadd.f32 0.0, %v1970
    %v1972 = vpop.f32.mrf.mxu0
    %v1973 = vpop.f32.mrf.mxu0
    %v1974 = vpop.f32.mrf.mxu0
    %1975 = vdwg.mxu0
    %v1977 = vsel %vm501, %v1859, 0
    %v1980 = vsel %vm501, %v1873, 0
    %1982 = vmatprep.subr.bf16.mxu0 0
    %1983 = vmatpush1.bf16.xpose.msra.mxu0 0
    %1984 = vmatprep.subr.bf16.mxu0 0
    %1985 = vmatpush1.bf16.xpose.msra.mxu0 0
    %1986 = vmatprep.subr.bf16.mxu0 0
    %1987 = vmatpush1.bf16.xpose.msra.mxu0 0
    %1988 = vmatprep.subr.bf16.mxu0 0
    %1989 = vmatpush1.bf16.xpose.msra.mxu0 0
    %1990 = vmatprep.subr.bf16.mxu0 0
    %1991 = vmatpush1.bf16.xpose.msra.mxu0 0
    %1992 = vmatprep.subr.bf16.mxu0 0
    %1993 = vmatpush1.bf16.xpose.msra.mxu0 0
    %1994 = vmatprep.subr.bf16.mxu0 0
    %1995 = vmatpush1.bf16.xpose.msra.mxu0 0
    %1996 = vmatprep.subr.bf16.mxu0 0
    %1997 = vmatpush1.bf16.xpose.msra.mxu0 %v1980
    %1998 = vmatprep.subr.bf16.mxu0 0
    %1999 = vmatpush2.bf16.xpose.msra.mxu0 0
    %2000 = vmatprep.subr.bf16.mxu0 0
    %2001 = vmatpush2.bf16.xpose.msra.mxu0 0
    %2002 = vmatprep.subr.bf16.mxu0 0
    %2003 = vmatpush2.bf16.xpose.msra.mxu0 0
    %2004 = vmatprep.subr.bf16.mxu0 0
    %2005 = vmatpush2.bf16.xpose.msra.mxu0 0
    %2006 = vmatprep.subr.bf16.mxu0 0
    %2007 = vmatpush2.bf16.xpose.msra.mxu0 0
    %2008 = vmatprep.subr.bf16.mxu0 0
    %2009 = vmatpush2.bf16.xpose.msra.mxu0 0
    %2010 = vmatprep.subr.bf16.mxu0 0
    %2011 = vmatpush2.bf16.xpose.msra.mxu0 0
    %2012 = vmatprep.subr.bf16.mxu0 0
    %2013 = vmatpush2.bf16.xpose.msra.mxu0 0
    %2014 = vmatprep.mubr.bf16.mxu0 0
    %2015 = vmatmul.mubr.bf16.gmra.mxu0 %v1977
    %v2016 = vpop.f32.mrf.mxu0
    %v2017 = vadd.f32 0.0, %v2016
    %v2018 = vpop.f32.mrf.mxu0
    %v2019 = vpop.f32.mrf.mxu0
    %v2020 = vpop.f32.mrf.mxu0
    %2021 = vdwg.mxu0
    %v2023 = vsel %vm501, %v1861, 0
    %v2026 = vsel %vm501, %v1875, 0
    %2028 = vmatprep.subr.bf16.mxu0 0
    %2029 = vmatpush1.bf16.xpose.msra.mxu0 0
    %2030 = vmatprep.subr.bf16.mxu0 0
    %2031 = vmatpush1.bf16.xpose.msra.mxu0 0
    %2032 = vmatprep.subr.bf16.mxu0 0
    %2033 = vmatpush1.bf16.xpose.msra.mxu0 0
    %2034 = vmatprep.subr.bf16.mxu0 0
    %2035 = vmatpush1.bf16.xpose.msra.mxu0 0
    %2036 = vmatprep.subr.bf16.mxu0 0
    %2037 = vmatpush1.bf16.xpose.msra.mxu0 0
    %2038 = vmatprep.subr.bf16.mxu0 0
    %2039 = vmatpush1.bf16.xpose.msra.mxu0 0
    %2040 = vmatprep.subr.bf16.mxu0 0
    %2041 = vmatpush1.bf16.xpose.msra.mxu0 0
    %2042 = vmatprep.subr.bf16.mxu0 0
    %2043 = vmatpush1.bf16.xpose.msra.mxu0 %v2026
    %2044 = vmatprep.subr.bf16.mxu0 0
    %2045 = vmatpush2.bf16.xpose.msra.mxu0 0
    %2046 = vmatprep.subr.bf16.mxu0 0
    %2047 = vmatpush2.bf16.xpose.msra.mxu0 0
    %2048 = vmatprep.subr.bf16.mxu0 0
    %2049 = vmatpush2.bf16.xpose.msra.mxu0 0
    %2050 = vmatprep.subr.bf16.mxu0 0
    %2051 = vmatpush2.bf16.xpose.msra.mxu0 0
    %2052 = vmatprep.subr.bf16.mxu0 0
    %2053 = vmatpush2.bf16.xpose.msra.mxu0 0
    %2054 = vmatprep.subr.bf16.mxu0 0
    %2055 = vmatpush2.bf16.xpose.msra.mxu0 0
    %2056 = vmatprep.subr.bf16.mxu0 0
    %2057 = vmatpush2.bf16.xpose.msra.mxu0 0
    %2058 = vmatprep.subr.bf16.mxu0 0
    %2059 = vmatpush2.bf16.xpose.msra.mxu0 0
    %2060 = vmatprep.mubr.bf16.mxu0 0
    %2061 = vmatmul.mubr.bf16.gmra.mxu0 %v2023
    %v2062 = vpop.f32.mrf.mxu0
    %v2063 = vadd.f32 0.0, %v2062
    %v2064 = vpop.f32.mrf.mxu0
    %v2065 = vpop.f32.mrf.mxu0
    %v2066 = vpop.f32.mrf.mxu0
    %2067 = vdwg.mxu0
    %v2069 = vsel %vm501, %v1863, 0
    %v2072 = vsel %vm501, %v1877, 0
    %2074 = vmatprep.subr.bf16.mxu0 0
    %2075 = vmatpush1.bf16.xpose.msra.mxu0 0
    %2076 = vmatprep.subr.bf16.mxu0 0
    %2077 = vmatpush1.bf16.xpose.msra.mxu0 0
    %2078 = vmatprep.subr.bf16.mxu0 0
    %2079 = vmatpush1.bf16.xpose.msra.mxu0 0
    %2080 = vmatprep.subr.bf16.mxu0 0
    %2081 = vmatpush1.bf16.xpose.msra.mxu0 0
    %2082 = vmatprep.subr.bf16.mxu0 0
    %2083 = vmatpush1.bf16.xpose.msra.mxu0 0
    %2084 = vmatprep.subr.bf16.mxu0 0
    %2085 = vmatpush1.bf16.xpose.msra.mxu0 0
    %2086 = vmatprep.subr.bf16.mxu0 0
    %2087 = vmatpush1.bf16.xpose.msra.mxu0 0
    %2088 = vmatprep.subr.bf16.mxu0 0
    %2089 = vmatpush1.bf16.xpose.msra.mxu0 %v2072
    %2090 = vmatprep.subr.bf16.mxu0 0
    %2091 = vmatpush2.bf16.xpose.msra.mxu0 0
    %2092 = vmatprep.subr.bf16.mxu0 0
    %2093 = vmatpush2.bf16.xpose.msra.mxu0 0
    %2094 = vmatprep.subr.bf16.mxu0 0
    %2095 = vmatpush2.bf16.xpose.msra.mxu0 0
    %2096 = vmatprep.subr.bf16.mxu0 0
    %2097 = vmatpush2.bf16.xpose.msra.mxu0 0
    %2098 = vmatprep.subr.bf16.mxu0 0
    %2099 = vmatpush2.bf16.xpose.msra.mxu0 0
    %2100 = vmatprep.subr.bf16.mxu0 0
    %2101 = vmatpush2.bf16.xpose.msra.mxu0 0
    %2102 = vmatprep.subr.bf16.mxu0 0
    %2103 = vmatpush2.bf16.xpose.msra.mxu0 0
    %2104 = vmatprep.subr.bf16.mxu0 0
    %2105 = vmatpush2.bf16.xpose.msra.mxu0 0
    %2106 = vmatprep.mubr.bf16.mxu0 0
    %2107 = vmatmul.mubr.bf16.gmra.mxu0 %v2069
    %v2108 = vpop.f32.mrf.mxu0
    %v2109 = vadd.f32 0.0, %v2108
    %v2110 = vpop.f32.mrf.mxu0
    %v2111 = vpop.f32.mrf.mxu0
    %v2112 = vpop.f32.mrf.mxu0
    %2113 = vdwg.mxu0
    %v2115 = vsel %vm501, %v1865, 0
    %v2118 = vsel %vm501, %v1879, 0
    %2120 = vmatprep.subr.bf16.mxu0 0
    %2121 = vmatpush1.bf16.xpose.msra.mxu0 0
    %2122 = vmatprep.subr.bf16.mxu0 0
    %2123 = vmatpush1.bf16.xpose.msra.mxu0 0
    %2124 = vmatprep.subr.bf16.mxu0 0
    %2125 = vmatpush1.bf16.xpose.msra.mxu0 0
    %2126 = vmatprep.subr.bf16.mxu0 0
    %2127 = vmatpush1.bf16.xpose.msra.mxu0 0
    %2128 = vmatprep.subr.bf16.mxu0 0
    %2129 = vmatpush1.bf16.xpose.msra.mxu0 0
    %2130 = vmatprep.subr.bf16.mxu0 0
    %2131 = vmatpush1.bf16.xpose.msra.mxu0 0
    %2132 = vmatprep.subr.bf16.mxu0 0
    %2133 = vmatpush1.bf16.xpose.msra.mxu0 0
    %2134 = vmatprep.subr.bf16.mxu0 0
    %2135 = vmatpush1.bf16.xpose.msra.mxu0 %v2118
    %2136 = vmatprep.subr.bf16.mxu0 0
    %2137 = vmatpush2.bf16.xpose.msra.mxu0 0
    %2138 = vmatprep.subr.bf16.mxu0 0
    %2139 = vmatpush2.bf16.xpose.msra.mxu0 0
    %2140 = vmatprep.subr.bf16.mxu0 0
    %2141 = vmatpush2.bf16.xpose.msra.mxu0 0
    %2142 = vmatprep.subr.bf16.mxu0 0
    %2143 = vmatpush2.bf16.xpose.msra.mxu0 0
    %2144 = vmatprep.subr.bf16.mxu0 0
    %2145 = vmatpush2.bf16.xpose.msra.mxu0 0
    %2146 = vmatprep.subr.bf16.mxu0 0
    %2147 = vmatpush2.bf16.xpose.msra.mxu0 0
    %2148 = vmatprep.subr.bf16.mxu0 0
    %2149 = vmatpush2.bf16.xpose.msra.mxu0 0
    %2150 = vmatprep.subr.bf16.mxu0 0
    %2151 = vmatpush2.bf16.xpose.msra.mxu0 0
    %2152 = vmatprep.mubr.bf16.mxu0 0
    %2153 = vmatmul.mubr.bf16.gmra.mxu0 %v2115
    %v2154 = vpop.f32.mrf.mxu0
    %v2155 = vadd.f32 0.0, %v2154
    %v2156 = vpop.f32.mrf.mxu0
    %v2157 = vpop.f32.mrf.mxu0
    %v2158 = vpop.f32.mrf.mxu0
    %2159 = vdwg.mxu0
    %v2161 = vsel %vm501, %v1867, 0
    %v2164 = vsel %vm501, %v1881, 0
    %2166 = vmatprep.subr.bf16.mxu0 0
    %2167 = vmatpush1.bf16.xpose.msra.mxu0 0
    %2168 = vmatprep.subr.bf16.mxu0 0
    %2169 = vmatpush1.bf16.xpose.msra.mxu0 0
    %2170 = vmatprep.subr.bf16.mxu0 0
    %2171 = vmatpush1.bf16.xpose.msra.mxu0 0
    %2172 = vmatprep.subr.bf16.mxu0 0
    %2173 = vmatpush1.bf16.xpose.msra.mxu0 0
    %2174 = vmatprep.subr.bf16.mxu0 0
    %2175 = vmatpush1.bf16.xpose.msra.mxu0 0
    %2176 = vmatprep.subr.bf16.mxu0 0
    %2177 = vmatpush1.bf16.xpose.msra.mxu0 0
    %2178 = vmatprep.subr.bf16.mxu0 0
    %2179 = vmatpush1.bf16.xpose.msra.mxu0 0
    %2180 = vmatprep.subr.bf16.mxu0 0
    %2181 = vmatpush1.bf16.xpose.msra.mxu0 %v2164
    %2182 = vmatprep.subr.bf16.mxu0 0
    %2183 = vmatpush2.bf16.xpose.msra.mxu0 0
    %2184 = vmatprep.subr.bf16.mxu0 0
    %2185 = vmatpush2.bf16.xpose.msra.mxu0 0
    %2186 = vmatprep.subr.bf16.mxu0 0
    %2187 = vmatpush2.bf16.xpose.msra.mxu0 0
    %2188 = vmatprep.subr.bf16.mxu0 0
    %2189 = vmatpush2.bf16.xpose.msra.mxu0 0
    %2190 = vmatprep.subr.bf16.mxu0 0
    %2191 = vmatpush2.bf16.xpose.msra.mxu0 0
    %2192 = vmatprep.subr.bf16.mxu0 0
    %2193 = vmatpush2.bf16.xpose.msra.mxu0 0
    %2194 = vmatprep.subr.bf16.mxu0 0
    %2195 = vmatpush2.bf16.xpose.msra.mxu0 0
    %2196 = vmatprep.subr.bf16.mxu0 0
    %2197 = vmatpush2.bf16.xpose.msra.mxu0 0
    %2198 = vmatprep.mubr.bf16.mxu0 0
    %2199 = vmatmul.mubr.bf16.gmra.mxu0 %v2161
    %v2200 = vpop.f32.mrf.mxu0
    %v2201 = vadd.f32 0.0, %v2200
    %v2202 = vpop.f32.mrf.mxu0
    %v2203 = vpop.f32.mrf.mxu0
    %v2204 = vpop.f32.mrf.mxu0
    %2205 = vdwg.mxu0
    %v2207 = vsel %vm501, %v1869, 0
    %v2210 = vsel %vm501, %v1883, 0
    %2212 = vmatprep.subr.bf16.mxu0 0
    %2213 = vmatpush1.bf16.xpose.msra.mxu0 0
    %2214 = vmatprep.subr.bf16.mxu0 0
    %2215 = vmatpush1.bf16.xpose.msra.mxu0 0
    %2216 = vmatprep.subr.bf16.mxu0 0
    %2217 = vmatpush1.bf16.xpose.msra.mxu0 0
    %2218 = vmatprep.subr.bf16.mxu0 0
    %2219 = vmatpush1.bf16.xpose.msra.mxu0 0
    %2220 = vmatprep.subr.bf16.mxu0 0
    %2221 = vmatpush1.bf16.xpose.msra.mxu0 0
    %2222 = vmatprep.subr.bf16.mxu0 0
    %2223 = vmatpush1.bf16.xpose.msra.mxu0 0
    %2224 = vmatprep.subr.bf16.mxu0 0
    %2225 = vmatpush1.bf16.xpose.msra.mxu0 0
    %2226 = vmatprep.subr.bf16.mxu0 0
    %2227 = vmatpush1.bf16.xpose.msra.mxu0 %v2210
    %2228 = vmatprep.subr.bf16.mxu0 0
    %2229 = vmatpush2.bf16.xpose.msra.mxu0 0
    %2230 = vmatprep.subr.bf16.mxu0 0
    %2231 = vmatpush2.bf16.xpose.msra.mxu0 0
    %2232 = vmatprep.subr.bf16.mxu0 0
    %2233 = vmatpush2.bf16.xpose.msra.mxu0 0
    %2234 = vmatprep.subr.bf16.mxu0 0
    %2235 = vmatpush2.bf16.xpose.msra.mxu0 0
    %2236 = vmatprep.subr.bf16.mxu0 0
    %2237 = vmatpush2.bf16.xpose.msra.mxu0 0
    %2238 = vmatprep.subr.bf16.mxu0 0
    %2239 = vmatpush2.bf16.xpose.msra.mxu0 0
    %2240 = vmatprep.subr.bf16.mxu0 0
    %2241 = vmatpush2.bf16.xpose.msra.mxu0 0
    %2242 = vmatprep.subr.bf16.mxu0 0
    %2243 = vmatpush2.bf16.xpose.msra.mxu0 0
    %2244 = vmatprep.mubr.bf16.mxu0 0
    %2245 = vmatmul.mubr.bf16.gmra.mxu0 %v2207
    %v2246 = vpop.f32.mrf.mxu0
    %v2247 = vadd.f32 0.0, %v2246
    %v2248 = vpop.f32.mrf.mxu0
    %v2249 = vpop.f32.mrf.mxu0
    %v2250 = vpop.f32.mrf.mxu0
    %2251 = vdwg.mxu0
    %v2252 = vadd.f32 %v1925, %v358
    %v2253 = vadd.f32 %v1971, %v359
    %v2254 = vadd.f32 %v2017, %v358
    %v2255 = vadd.f32 %v2063, %v359
    %v2256 = vadd.f32 %v2109, %v358
    %v2257 = vadd.f32 %v2155, %v359
    %v2258 = vadd.f32 %v2201, %v358
    %v2259 = vadd.f32 %v2247, %v359
    %vm2260 = vcmask 130048
    %v2261 = vsel %vm2260, %v2252, -inf
    %2262 = vmax.xlane.f32.xlu0 %v2261
    %v2263 = vpop.xlane.xlu0 %2262
    %v2264 = vsel %vm2260, %v2253, -inf
    %2265 = vmax.xlane.f32.xlu0 %v2264
    %v2266 = vpop.xlane.xlu0 %2265
    %v2267 = vsel %vm2260, %v2254, -inf
    %2268 = vmax.xlane.f32.xlu0 %v2267
    %v2269 = vpop.xlane.xlu0 %2268
    %v2270 = vsel %vm2260, %v2255, -inf
    %2271 = vmax.xlane.f32.xlu0 %v2270
    %v2272 = vpop.xlane.xlu0 %2271
    %v2273 = vsel %vm2260, %v2256, -inf
    %2274 = vmax.xlane.f32.xlu0 %v2273
    %v2275 = vpop.xlane.xlu0 %2274
    %v2276 = vsel %vm2260, %v2257, -inf
    %2277 = vmax.xlane.f32.xlu0 %v2276
    %v2278 = vpop.xlane.xlu0 %2277
    %v2279 = vsel %vm2260, %v2258, -inf
    %2280 = vmax.xlane.f32.xlu0 %v2279
    %v2281 = vpop.xlane.xlu0 %2280
    %v2282 = vsel %vm2260, %v2259, -inf
    %2283 = vmax.xlane.f32.xlu0 %v2282
    %v2284 = vpop.xlane.xlu0 %2283
    %v2285 = vsub.f32 %v2252, %v2263
    %v2286 = vsub.f32 %v2253, %v2266
    %v2287 = vsub.f32 %v2254, %v2269
    %v2288 = vsub.f32 %v2255, %v2272
    %v2289 = vsub.f32 %v2256, %v2275
    %v2290 = vsub.f32 %v2257, %v2278
    %v2291 = vsub.f32 %v2258, %v2281
    %v2292 = vsub.f32 %v2259, %v2284
    %v2293 = vmul.f32 %v2285, 1.442695
    %v2294 = vpow.pop %v2293
    %v2295 = vmul.f32 %v2286, 1.442695
    %v2296 = vpow.pop %v2295
    %v2297 = vmul.f32 %v2287, 1.442695
    %v2298 = vpow.pop %v2297
    %v2299 = vmul.f32 %v2288, 1.442695
    %v2300 = vpow.pop %v2299
    %v2301 = vmul.f32 %v2289, 1.442695
    %v2302 = vpow.pop %v2301
    %v2303 = vmul.f32 %v2290, 1.442695
    %v2304 = vpow.pop %v2303
    %v2305 = vmul.f32 %v2291, 1.442695
    %v2306 = vpow.pop %v2305
    %v2307 = vmul.f32 %v2292, 1.442695
    %v2308 = vpow.pop %v2307
    %v2309 = vsel %vm2260, %v2294, 0.0
    %2310 = vadd.xlane.f32.xlu0 %v2309
    %v2311 = vpop.xlane.xlu0 %2310
    %v2312 = vsel %vm2260, %v2296, 0.0
    %2313 = vadd.xlane.f32.xlu0 %v2312
    %v2314 = vpop.xlane.xlu0 %2313
    %v2315 = vsel %vm2260, %v2298, 0.0
    %2316 = vadd.xlane.f32.xlu0 %v2315
    %v2317 = vpop.xlane.xlu0 %2316
    %v2318 = vsel %vm2260, %v2300, 0.0
    %2319 = vadd.xlane.f32.xlu0 %v2318
    %v2320 = vpop.xlane.xlu0 %2319
    %v2321 = vsel %vm2260, %v2302, 0.0
    %2322 = vadd.xlane.f32.xlu0 %v2321
    %v2323 = vpop.xlane.xlu0 %2322
    %v2324 = vsel %vm2260, %v2304, 0.0
    %2325 = vadd.xlane.f32.xlu0 %v2324
    %v2326 = vpop.xlane.xlu0 %2325
    %v2327 = vsel %vm2260, %v2306, 0.0
    %2328 = vadd.xlane.f32.xlu0 %v2327
    %v2329 = vpop.xlane.xlu0 %2328
    %v2330 = vsel %vm2260, %v2308, 0.0
    %2331 = vadd.xlane.f32.xlu0 %v2330
    %v2332 = vpop.xlane.xlu0 %2331
    %v2333 = vrcp.pop %v2311
    %v2334 = vrcp.pop %v2314
    %v2335 = vrcp.pop %v2317
    %v2336 = vrcp.pop %v2320
    %v2337 = vrcp.pop %v2323
    %v2338 = vrcp.pop %v2326
    %v2339 = vrcp.pop %v2329
    %v2340 = vrcp.pop %v2332
    %v2341 = vmul.f32 %v2294, %v2333
    %v2342 = vmul.f32 %v2296, %v2334
    %v2343 = vmul.f32 %v2298, %v2335
    %v2344 = vmul.f32 %v2300, %v2336
    %v2345 = vmul.f32 %v2302, %v2337
    %v2346 = vmul.f32 %v2304, %v2338
    %v2347 = vmul.f32 %v2306, %v2339
    %v2348 = vmul.f32 %v2308, %v2340
    %v2349 = vpack.c.bf16 %v2341, %v2341
    %v2350 = vpack.c.bf16 %v2342, %v2342
    %v2351 = vpack.c.bf16 %v2343, %v2343
    %v2352 = vpack.c.bf16 %v2344, %v2344
    %v2353 = vpack.c.bf16 %v2345, %v2345
    %v2354 = vpack.c.bf16 %v2346, %v2346
    %v2355 = vpack.c.bf16 %v2347, %v2347
    %v2356 = vpack.c.bf16 %v2348, %v2348
    %2357 = vrot.lane.b32.xlu0 %v1856, 96
    %v2358 = vpop.permute.xlu0 %2357
    %v2361 = vsel %vm2260, %v2349, 0
    %2363 = vmatprep.subr.bf16.mxu0 0
    %2364 = vmatpush1.bf16.msra.mxu0 0
    %2365 = vmatprep.subr.bf16.mxu0 0
    %2366 = vmatpush1.bf16.msra.mxu0 0
    %2367 = vmatprep.subr.bf16.mxu0 0
    %2368 = vmatpush1.bf16.msra.mxu0 0
    %2369 = vmatprep.subr.bf16.mxu0 0
    %2370 = vmatpush1.bf16.msra.mxu0 0
    %2371 = vmatprep.subr.bf16.mxu0 0
    %2372 = vmatpush1.bf16.msra.mxu0 0
    %2373 = vmatprep.subr.bf16.mxu0 0
    %2374 = vmatpush1.bf16.msra.mxu0 0
    %2375 = vmatprep.subr.bf16.mxu0 0
    %2376 = vmatpush1.bf16.msra.mxu0 0
    %2377 = vmatprep.subr.bf16.mxu0 0
    %2378 = vmatpush1.bf16.msra.mxu0 %v2358
    %2379 = vmatprep.subr.bf16.mxu0 0
    %2380 = vmatpush2.bf16.msra.mxu0 0
    %2381 = vmatprep.subr.bf16.mxu0 0
    %2382 = vmatpush2.bf16.msra.mxu0 0
    %2383 = vmatprep.subr.bf16.mxu0 0
    %2384 = vmatpush2.bf16.msra.mxu0 0
    %2385 = vmatprep.subr.bf16.mxu0 0
    %2386 = vmatpush2.bf16.msra.mxu0 0
    %2387 = vmatprep.subr.bf16.mxu0 0
    %2388 = vmatpush2.bf16.msra.mxu0 0
    %2389 = vmatprep.subr.bf16.mxu0 0
    %2390 = vmatpush2.bf16.msra.mxu0 0
    %2391 = vmatprep.subr.bf16.mxu0 0
    %2392 = vmatpush2.bf16.msra.mxu0 0
    %2393 = vmatprep.subr.bf16.mxu0 0
    %2394 = vmatpush2.bf16.msra.mxu0 0
    %2395 = vmatprep.mubr.bf16.mxu0 0
    %2396 = vmatmul.mubr.bf16.gmra.mxu0 %v2361
    %v2397 = vpop.f32.mrf.mxu0
    %v2398 = vadd.f32 0.0, %v2397
    %v2399 = vpop.f32.mrf.mxu0
    %v2400 = vpop.f32.mrf.mxu0
    %v2401 = vpop.f32.mrf.mxu0
    %2402 = vdwg.mxu0
    %2403 = vrot.lane.b32.xlu0 %v1857, 96
    %v2404 = vpop.permute.xlu0 %2403
    %v2407 = vsel %vm2260, %v2350, 0
    %2409 = vmatprep.subr.bf16.mxu0 0
    %2410 = vmatpush1.bf16.msra.mxu0 0
    %2411 = vmatprep.subr.bf16.mxu0 0
    %2412 = vmatpush1.bf16.msra.mxu0 0
    %2413 = vmatprep.subr.bf16.mxu0 0
    %2414 = vmatpush1.bf16.msra.mxu0 0
    %2415 = vmatprep.subr.bf16.mxu0 0
    %2416 = vmatpush1.bf16.msra.mxu0 0
    %2417 = vmatprep.subr.bf16.mxu0 0
    %2418 = vmatpush1.bf16.msra.mxu0 0
    %2419 = vmatprep.subr.bf16.mxu0 0
    %2420 = vmatpush1.bf16.msra.mxu0 0
    %2421 = vmatprep.subr.bf16.mxu0 0
    %2422 = vmatpush1.bf16.msra.mxu0 0
    %2423 = vmatprep.subr.bf16.mxu0 0
    %2424 = vmatpush1.bf16.msra.mxu0 %v2404
    %2425 = vmatprep.subr.bf16.mxu0 0
    %2426 = vmatpush2.bf16.msra.mxu0 0
    %2427 = vmatprep.subr.bf16.mxu0 0
    %2428 = vmatpush2.bf16.msra.mxu0 0
    %2429 = vmatprep.subr.bf16.mxu0 0
    %2430 = vmatpush2.bf16.msra.mxu0 0
    %2431 = vmatprep.subr.bf16.mxu0 0
    %2432 = vmatpush2.bf16.msra.mxu0 0
    %2433 = vmatprep.subr.bf16.mxu0 0
    %2434 = vmatpush2.bf16.msra.mxu0 0
    %2435 = vmatprep.subr.bf16.mxu0 0
    %2436 = vmatpush2.bf16.msra.mxu0 0
    %2437 = vmatprep.subr.bf16.mxu0 0
    %2438 = vmatpush2.bf16.msra.mxu0 0
    %2439 = vmatprep.subr.bf16.mxu0 0
    %2440 = vmatpush2.bf16.msra.mxu0 0
    %2441 = vmatprep.mubr.bf16.mxu0 0
    %2442 = vmatmul.mubr.bf16.gmra.mxu0 %v2407
    %v2443 = vpop.f32.mrf.mxu0
    %v2444 = vadd.f32 0.0, %v2443
    %v2445 = vpop.f32.mrf.mxu0
    %v2446 = vpop.f32.mrf.mxu0
    %v2447 = vpop.f32.mrf.mxu0
    %2448 = vdwg.mxu0
    %2449 = vrot.lane.b32.xlu0 %v1873, 96
    %v2450 = vpop.permute.xlu0 %2449
    %v2453 = vsel %vm2260, %v2351, 0
    %2455 = vmatprep.subr.bf16.mxu0 0
    %2456 = vmatpush1.bf16.msra.mxu0 0
    %2457 = vmatprep.subr.bf16.mxu0 0
    %2458 = vmatpush1.bf16.msra.mxu0 0
    %2459 = vmatprep.subr.bf16.mxu0 0
    %2460 = vmatpush1.bf16.msra.mxu0 0
    %2461 = vmatprep.subr.bf16.mxu0 0
    %2462 = vmatpush1.bf16.msra.mxu0 0
    %2463 = vmatprep.subr.bf16.mxu0 0
    %2464 = vmatpush1.bf16.msra.mxu0 0
    %2465 = vmatprep.subr.bf16.mxu0 0
    %2466 = vmatpush1.bf16.msra.mxu0 0
    %2467 = vmatprep.subr.bf16.mxu0 0
    %2468 = vmatpush1.bf16.msra.mxu0 0
    %2469 = vmatprep.subr.bf16.mxu0 0
    %2470 = vmatpush1.bf16.msra.mxu0 %v2450
    %2471 = vmatprep.subr.bf16.mxu0 0
    %2472 = vmatpush2.bf16.msra.mxu0 0
    %2473 = vmatprep.subr.bf16.mxu0 0
    %2474 = vmatpush2.bf16.msra.mxu0 0
    %2475 = vmatprep.subr.bf16.mxu0 0
    %2476 = vmatpush2.bf16.msra.mxu0 0
    %2477 = vmatprep.subr.bf16.mxu0 0
    %2478 = vmatpush2.bf16.msra.mxu0 0
    %2479 = vmatprep.subr.bf16.mxu0 0
    %2480 = vmatpush2.bf16.msra.mxu0 0
    %2481 = vmatprep.subr.bf16.mxu0 0
    %2482 = vmatpush2.bf16.msra.mxu0 0
    %2483 = vmatprep.subr.bf16.mxu0 0
    %2484 = vmatpush2.bf16.msra.mxu0 0
    %2485 = vmatprep.subr.bf16.mxu0 0
    %2486 = vmatpush2.bf16.msra.mxu0 0
    %2487 = vmatprep.mubr.bf16.mxu0 0
    %2488 = vmatmul.mubr.bf16.gmra.mxu0 %v2453
    %v2489 = vpop.f32.mrf.mxu0
    %v2490 = vadd.f32 0.0, %v2489
    %v2491 = vpop.f32.mrf.mxu0
    %v2492 = vpop.f32.mrf.mxu0
    %v2493 = vpop.f32.mrf.mxu0
    %2494 = vdwg.mxu0
    %2495 = vrot.lane.b32.xlu0 %v1875, 96
    %v2496 = vpop.permute.xlu0 %2495
    %v2499 = vsel %vm2260, %v2352, 0
    %2501 = vmatprep.subr.bf16.mxu0 0
    %2502 = vmatpush1.bf16.msra.mxu0 0
    %2503 = vmatprep.subr.bf16.mxu0 0
    %2504 = vmatpush1.bf16.msra.mxu0 0
    %2505 = vmatprep.subr.bf16.mxu0 0
    %2506 = vmatpush1.bf16.msra.mxu0 0
    %2507 = vmatprep.subr.bf16.mxu0 0
    %2508 = vmatpush1.bf16.msra.mxu0 0
    %2509 = vmatprep.subr.bf16.mxu0 0
    %2510 = vmatpush1.bf16.msra.mxu0 0
    %2511 = vmatprep.subr.bf16.mxu0 0
    %2512 = vmatpush1.bf16.msra.mxu0 0
    %2513 = vmatprep.subr.bf16.mxu0 0
    %2514 = vmatpush1.bf16.msra.mxu0 0
    %2515 = vmatprep.subr.bf16.mxu0 0
    %2516 = vmatpush1.bf16.msra.mxu0 %v2496
    %2517 = vmatprep.subr.bf16.mxu0 0
    %2518 = vmatpush2.bf16.msra.mxu0 0
    %2519 = vmatprep.subr.bf16.mxu0 0
    %2520 = vmatpush2.bf16.msra.mxu0 0
    %2521 = vmatprep.subr.bf16.mxu0 0
    %2522 = vmatpush2.bf16.msra.mxu0 0
    %2523 = vmatprep.subr.bf16.mxu0 0
    %2524 = vmatpush2.bf16.msra.mxu0 0
    %2525 = vmatprep.subr.bf16.mxu0 0
    %2526 = vmatpush2.bf16.msra.mxu0 0
    %2527 = vmatprep.subr.bf16.mxu0 0
    %2528 = vmatpush2.bf16.msra.mxu0 0
    %2529 = vmatprep.subr.bf16.mxu0 0
    %2530 = vmatpush2.bf16.msra.mxu0 0
    %2531 = vmatprep.subr.bf16.mxu0 0
    %2532 = vmatpush2.bf16.msra.mxu0 0
    %2533 = vmatprep.mubr.bf16.mxu0 0
    %2534 = vmatmul.mubr.bf16.gmra.mxu0 %v2499
    %v2535 = vpop.f32.mrf.mxu0
    %v2536 = vadd.f32 0.0, %v2535
    %v2537 = vpop.f32.mrf.mxu0
    %v2538 = vpop.f32.mrf.mxu0
    %v2539 = vpop.f32.mrf.mxu0
    %2540 = vdwg.mxu0
    %2541 = vrot.lane.b32.xlu0 %v1877, 96
    %v2542 = vpop.permute.xlu0 %2541
    %v2545 = vsel %vm2260, %v2353, 0
    %2547 = vmatprep.subr.bf16.mxu0 0
    %2548 = vmatpush1.bf16.msra.mxu0 0
    %2549 = vmatprep.subr.bf16.mxu0 0
    %2550 = vmatpush1.bf16.msra.mxu0 0
    %2551 = vmatprep.subr.bf16.mxu0 0
    %2552 = vmatpush1.bf16.msra.mxu0 0
    %2553 = vmatprep.subr.bf16.mxu0 0
    %2554 = vmatpush1.bf16.msra.mxu0 0
    %2555 = vmatprep.subr.bf16.mxu0 0
    %2556 = vmatpush1.bf16.msra.mxu0 0
    %2557 = vmatprep.subr.bf16.mxu0 0
    %2558 = vmatpush1.bf16.msra.mxu0 0
    %2559 = vmatprep.subr.bf16.mxu0 0
    %2560 = vmatpush1.bf16.msra.mxu0 0
    %2561 = vmatprep.subr.bf16.mxu0 0
    %2562 = vmatpush1.bf16.msra.mxu0 %v2542
    %2563 = vmatprep.subr.bf16.mxu0 0
    %2564 = vmatpush2.bf16.msra.mxu0 0
    %2565 = vmatprep.subr.bf16.mxu0 0
    %2566 = vmatpush2.bf16.msra.mxu0 0
    %2567 = vmatprep.subr.bf16.mxu0 0
    %2568 = vmatpush2.bf16.msra.mxu0 0
    %2569 = vmatprep.subr.bf16.mxu0 0
    %2570 = vmatpush2.bf16.msra.mxu0 0
    %2571 = vmatprep.subr.bf16.mxu0 0
    %2572 = vmatpush2.bf16.msra.mxu0 0
    %2573 = vmatprep.subr.bf16.mxu0 0
    %2574 = vmatpush2.bf16.msra.mxu0 0
    %2575 = vmatprep.subr.bf16.mxu0 0
    %2576 = vmatpush2.bf16.msra.mxu0 0
    %2577 = vmatprep.subr.bf16.mxu0 0
    %2578 = vmatpush2.bf16.msra.mxu0 0
    %2579 = vmatprep.mubr.bf16.mxu0 0
    %2580 = vmatmul.mubr.bf16.gmra.mxu0 %v2545
    %v2581 = vpop.f32.mrf.mxu0
    %v2582 = vadd.f32 0.0, %v2581
    %v2583 = vpop.f32.mrf.mxu0
    %v2584 = vpop.f32.mrf.mxu0
    %v2585 = vpop.f32.mrf.mxu0
    %2586 = vdwg.mxu0
    %2587 = vrot.lane.b32.xlu0 %v1879, 96
    %v2588 = vpop.permute.xlu0 %2587
    %v2591 = vsel %vm2260, %v2354, 0
    %2593 = vmatprep.subr.bf16.mxu0 0
    %2594 = vmatpush1.bf16.msra.mxu0 0
    %2595 = vmatprep.subr.bf16.mxu0 0
    %2596 = vmatpush1.bf16.msra.mxu0 0
    %2597 = vmatprep.subr.bf16.mxu0 0
    %2598 = vmatpush1.bf16.msra.mxu0 0
    %2599 = vmatprep.subr.bf16.mxu0 0
    %2600 = vmatpush1.bf16.msra.mxu0 0
    %2601 = vmatprep.subr.bf16.mxu0 0
    %2602 = vmatpush1.bf16.msra.mxu0 0
    %2603 = vmatprep.subr.bf16.mxu0 0
    %2604 = vmatpush1.bf16.msra.mxu0 0
    %2605 = vmatprep.subr.bf16.mxu0 0
    %2606 = vmatpush1.bf16.msra.mxu0 0
    %2607 = vmatprep.subr.bf16.mxu0 0
    %2608 = vmatpush1.bf16.msra.mxu0 %v2588
    %2609 = vmatprep.subr.bf16.mxu0 0
    %2610 = vmatpush2.bf16.msra.mxu0 0
    %2611 = vmatprep.subr.bf16.mxu0 0
    %2612 = vmatpush2.bf16.msra.mxu0 0
    %2613 = vmatprep.subr.bf16.mxu0 0
    %2614 = vmatpush2.bf16.msra.mxu0 0
    %2615 = vmatprep.subr.bf16.mxu0 0
    %2616 = vmatpush2.bf16.msra.mxu0 0
    %2617 = vmatprep.subr.bf16.mxu0 0
    %2618 = vmatpush2.bf16.msra.mxu0 0
    %2619 = vmatprep.subr.bf16.mxu0 0
    %2620 = vmatpush2.bf16.msra.mxu0 0
    %2621 = vmatprep.subr.bf16.mxu0 0
    %2622 = vmatpush2.bf16.msra.mxu0 0
    %2623 = vmatprep.subr.bf16.mxu0 0
    %2624 = vmatpush2.bf16.msra.mxu0 0
    %2625 = vmatprep.mubr.bf16.mxu0 0
    %2626 = vmatmul.mubr.bf16.gmra.mxu0 %v2591
    %v2627 = vpop.f32.mrf.mxu0
    %v2628 = vadd.f32 0.0, %v2627
    %v2629 = vpop.f32.mrf.mxu0
    %v2630 = vpop.f32.mrf.mxu0
    %v2631 = vpop.f32.mrf.mxu0
    %2632 = vdwg.mxu0
    %2633 = vrot.lane.b32.xlu0 %v1881, 96
    %v2634 = vpop.permute.xlu0 %2633
    %v2637 = vsel %vm2260, %v2355, 0
    %2639 = vmatprep.subr.bf16.mxu0 0
    %2640 = vmatpush1.bf16.msra.mxu0 0
    %2641 = vmatprep.subr.bf16.mxu0 0
    %2642 = vmatpush1.bf16.msra.mxu0 0
    %2643 = vmatprep.subr.bf16.mxu0 0
    %2644 = vmatpush1.bf16.msra.mxu0 0
    %2645 = vmatprep.subr.bf16.mxu0 0
    %2646 = vmatpush1.bf16.msra.mxu0 0
    %2647 = vmatprep.subr.bf16.mxu0 0
    %2648 = vmatpush1.bf16.msra.mxu0 0
    %2649 = vmatprep.subr.bf16.mxu0 0
    %2650 = vmatpush1.bf16.msra.mxu0 0
    %2651 = vmatprep.subr.bf16.mxu0 0
    %2652 = vmatpush1.bf16.msra.mxu0 0
    %2653 = vmatprep.subr.bf16.mxu0 0
    %2654 = vmatpush1.bf16.msra.mxu0 %v2634
    %2655 = vmatprep.subr.bf16.mxu0 0
    %2656 = vmatpush2.bf16.msra.mxu0 0
    %2657 = vmatprep.subr.bf16.mxu0 0
    %2658 = vmatpush2.bf16.msra.mxu0 0
    %2659 = vmatprep.subr.bf16.mxu0 0
    %2660 = vmatpush2.bf16.msra.mxu0 0
    %2661 = vmatprep.subr.bf16.mxu0 0
    %2662 = vmatpush2.bf16.msra.mxu0 0
    %2663 = vmatprep.subr.bf16.mxu0 0
    %2664 = vmatpush2.bf16.msra.mxu0 0
    %2665 = vmatprep.subr.bf16.mxu0 0
    %2666 = vmatpush2.bf16.msra.mxu0 0
    %2667 = vmatprep.subr.bf16.mxu0 0
    %2668 = vmatpush2.bf16.msra.mxu0 0
    %2669 = vmatprep.subr.bf16.mxu0 0
    %2670 = vmatpush2.bf16.msra.mxu0 0
    %2671 = vmatprep.mubr.bf16.mxu0 0
    %2672 = vmatmul.mubr.bf16.gmra.mxu0 %v2637
    %v2673 = vpop.f32.mrf.mxu0
    %v2674 = vadd.f32 0.0, %v2673
    %v2675 = vpop.f32.mrf.mxu0
    %v2676 = vpop.f32.mrf.mxu0
    %v2677 = vpop.f32.mrf.mxu0
    %2678 = vdwg.mxu0
    %2679 = vrot.lane.b32.xlu0 %v1883, 96
    %v2680 = vpop.permute.xlu0 %2679
    %v2683 = vsel %vm2260, %v2356, 0
    %2685 = vmatprep.subr.bf16.mxu0 0
    %2686 = vmatpush1.bf16.msra.mxu0 0
    %2687 = vmatprep.subr.bf16.mxu0 0
    %2688 = vmatpush1.bf16.msra.mxu0 0
    %2689 = vmatprep.subr.bf16.mxu0 0
    %2690 = vmatpush1.bf16.msra.mxu0 0
    %2691 = vmatprep.subr.bf16.mxu0 0
    %2692 = vmatpush1.bf16.msra.mxu0 0
    %2693 = vmatprep.subr.bf16.mxu0 0
    %2694 = vmatpush1.bf16.msra.mxu0 0
    %2695 = vmatprep.subr.bf16.mxu0 0
    %2696 = vmatpush1.bf16.msra.mxu0 0
    %2697 = vmatprep.subr.bf16.mxu0 0
    %2698 = vmatpush1.bf16.msra.mxu0 0
    %2699 = vmatprep.subr.bf16.mxu0 0
    %2700 = vmatpush1.bf16.msra.mxu0 %v2680
    %2701 = vmatprep.subr.bf16.mxu0 0
    %2702 = vmatpush2.bf16.msra.mxu0 0
    %2703 = vmatprep.subr.bf16.mxu0 0
    %2704 = vmatpush2.bf16.msra.mxu0 0
    %2705 = vmatprep.subr.bf16.mxu0 0
    %2706 = vmatpush2.bf16.msra.mxu0 0
    %2707 = vmatprep.subr.bf16.mxu0 0
    %2708 = vmatpush2.bf16.msra.mxu0 0
    %2709 = vmatprep.subr.bf16.mxu0 0
    %2710 = vmatpush2.bf16.msra.mxu0 0
    %2711 = vmatprep.subr.bf16.mxu0 0
    %2712 = vmatpush2.bf16.msra.mxu0 0
    %2713 = vmatprep.subr.bf16.mxu0 0
    %2714 = vmatpush2.bf16.msra.mxu0 0
    %2715 = vmatprep.subr.bf16.mxu0 0
    %2716 = vmatpush2.bf16.msra.mxu0 0
    %2717 = vmatprep.mubr.bf16.mxu0 0
    %2718 = vmatmul.mubr.bf16.gmra.mxu0 %v2683
    %v2719 = vpop.f32.mrf.mxu0
    %v2720 = vadd.f32 0.0, %v2719
    %v2721 = vpop.f32.mrf.mxu0
    %v2722 = vpop.f32.mrf.mxu0
    %v2723 = vpop.f32.mrf.mxu0
    %2724 = vdwg.mxu0
    %v2725 = vpack.c.bf16 %v1847, %v1844
    %v2727 = vunpack.c.l.b16 %v2725
    %v2728 = vunpack.c.h.b16 %v2725
    %v2729 = vpack.c.b16 %v2727, %v2727
    %v2730 = vpack.c.b16 %v2728, %v2728
    %2731 = vrot.lane.b32.xlu0 %v2729, 120
    %v2732 = vpop.permute.xlu0 %2731
    %2733 = vrot.lane.b32.xlu0 %v2730, 120
    %v2734 = vpop.permute.xlu0 %2733
    %2735 = vrot.lane.b32.xlu0 %v2729, 112
    %v2736 = vpop.permute.xlu0 %2735
    %2737 = vrot.lane.b32.xlu0 %v2730, 112
    %v2738 = vpop.permute.xlu0 %2737
    %2739 = vrot.lane.b32.xlu0 %v2729, 104
    %v2740 = vpop.permute.xlu0 %2739
    %2741 = vrot.lane.b32.xlu0 %v2730, 104
    %v2742 = vpop.permute.xlu0 %2741
    %2743 = vrot.lane.b32.xlu0 %v1854, 96
    %v2744 = vpop.permute.xlu0 %2743
    %v2746 = vsel %vm501, %v2744, 0
    %v2749 = vsel %vm501, %v2729, 0
    %2751 = vmatprep.subr.bf16.mxu0 0
    %2752 = vmatpush1.bf16.xpose.msra.mxu0 0
    %2753 = vmatprep.subr.bf16.mxu0 0
    %2754 = vmatpush1.bf16.xpose.msra.mxu0 0
    %2755 = vmatprep.subr.bf16.mxu0 0
    %2756 = vmatpush1.bf16.xpose.msra.mxu0 0
    %2757 = vmatprep.subr.bf16.mxu0 0
    %2758 = vmatpush1.bf16.xpose.msra.mxu0 0
    %2759 = vmatprep.subr.bf16.mxu0 0
    %2760 = vmatpush1.bf16.xpose.msra.mxu0 0
    %2761 = vmatprep.subr.bf16.mxu0 0
    %2762 = vmatpush1.bf16.xpose.msra.mxu0 0
    %2763 = vmatprep.subr.bf16.mxu0 0
    %2764 = vmatpush1.bf16.xpose.msra.mxu0 0
    %2765 = vmatprep.subr.bf16.mxu0 0
    %2766 = vmatpush1.bf16.xpose.msra.mxu0 %v2749
    %2767 = vmatprep.subr.bf16.mxu0 0
    %2768 = vmatpush2.bf16.xpose.msra.mxu0 0
    %2769 = vmatprep.subr.bf16.mxu0 0
    %2770 = vmatpush2.bf16.xpose.msra.mxu0 0
    %2771 = vmatprep.subr.bf16.mxu0 0
    %2772 = vmatpush2.bf16.xpose.msra.mxu0 0
    %2773 = vmatprep.subr.bf16.mxu0 0
    %2774 = vmatpush2.bf16.xpose.msra.mxu0 0
    %2775 = vmatprep.subr.bf16.mxu0 0
    %2776 = vmatpush2.bf16.xpose.msra.mxu0 0
    %2777 = vmatprep.subr.bf16.mxu0 0
    %2778 = vmatpush2.bf16.xpose.msra.mxu0 0
    %2779 = vmatprep.subr.bf16.mxu0 0
    %2780 = vmatpush2.bf16.xpose.msra.mxu0 0
    %2781 = vmatprep.subr.bf16.mxu0 0
    %2782 = vmatpush2.bf16.xpose.msra.mxu0 0
    %2783 = vmatprep.mubr.bf16.mxu0 0
    %2784 = vmatmul.mubr.bf16.gmra.mxu0 %v2746
    %v2785 = vpop.f32.mrf.mxu0
    %v2786 = vadd.f32 0.0, %v2785
    %v2787 = vpop.f32.mrf.mxu0
    %v2788 = vpop.f32.mrf.mxu0
    %v2789 = vpop.f32.mrf.mxu0
    %2790 = vdwg.mxu0
    %2791 = vrot.lane.b32.xlu0 %v1855, 96
    %v2792 = vpop.permute.xlu0 %2791
    %v2794 = vsel %vm501, %v2792, 0
    %v2797 = vsel %vm501, %v2730, 0
    %2799 = vmatprep.subr.bf16.mxu0 0
    %2800 = vmatpush1.bf16.xpose.msra.mxu0 0
    %2801 = vmatprep.subr.bf16.mxu0 0
    %2802 = vmatpush1.bf16.xpose.msra.mxu0 0
    %2803 = vmatprep.subr.bf16.mxu0 0
    %2804 = vmatpush1.bf16.xpose.msra.mxu0 0
    %2805 = vmatprep.subr.bf16.mxu0 0
    %2806 = vmatpush1.bf16.xpose.msra.mxu0 0
    %2807 = vmatprep.subr.bf16.mxu0 0
    %2808 = vmatpush1.bf16.xpose.msra.mxu0 0
    %2809 = vmatprep.subr.bf16.mxu0 0
    %2810 = vmatpush1.bf16.xpose.msra.mxu0 0
    %2811 = vmatprep.subr.bf16.mxu0 0
    %2812 = vmatpush1.bf16.xpose.msra.mxu0 0
    %2813 = vmatprep.subr.bf16.mxu0 0
    %2814 = vmatpush1.bf16.xpose.msra.mxu0 %v2797
    %2815 = vmatprep.subr.bf16.mxu0 0
    %2816 = vmatpush2.bf16.xpose.msra.mxu0 0
    %2817 = vmatprep.subr.bf16.mxu0 0
    %2818 = vmatpush2.bf16.xpose.msra.mxu0 0
    %2819 = vmatprep.subr.bf16.mxu0 0
    %2820 = vmatpush2.bf16.xpose.msra.mxu0 0
    %2821 = vmatprep.subr.bf16.mxu0 0
    %2822 = vmatpush2.bf16.xpose.msra.mxu0 0
    %2823 = vmatprep.subr.bf16.mxu0 0
    %2824 = vmatpush2.bf16.xpose.msra.mxu0 0
    %2825 = vmatprep.subr.bf16.mxu0 0
    %2826 = vmatpush2.bf16.xpose.msra.mxu0 0
    %2827 = vmatprep.subr.bf16.mxu0 0
    %2828 = vmatpush2.bf16.xpose.msra.mxu0 0
    %2829 = vmatprep.subr.bf16.mxu0 0
    %2830 = vmatpush2.bf16.xpose.msra.mxu0 0
    %2831 = vmatprep.mubr.bf16.mxu0 0
    %2832 = vmatmul.mubr.bf16.gmra.mxu0 %v2794
    %v2833 = vpop.f32.mrf.mxu0
    %v2834 = vadd.f32 0.0, %v2833
    %v2835 = vpop.f32.mrf.mxu0
    %v2836 = vpop.f32.mrf.mxu0
    %v2837 = vpop.f32.mrf.mxu0
    %2838 = vdwg.mxu0
    %v2839 = vunpack.c.l.b16 %v1859
    %v2840 = vpack.c.b16 %v2839, %v2839
    %2841 = vrot.lane.b32.xlu0 %v2840, 96
    %v2842 = vpop.permute.xlu0 %2841
    %v2844 = vsel %vm501, %v2842, 0
    %v2847 = vsel %vm501, %v2732, 0
    %2849 = vmatprep.subr.bf16.mxu0 0
    %2850 = vmatpush1.bf16.xpose.msra.mxu0 0
    %2851 = vmatprep.subr.bf16.mxu0 0
    %2852 = vmatpush1.bf16.xpose.msra.mxu0 0
    %2853 = vmatprep.subr.bf16.mxu0 0
    %2854 = vmatpush1.bf16.xpose.msra.mxu0 0
    %2855 = vmatprep.subr.bf16.mxu0 0
    %2856 = vmatpush1.bf16.xpose.msra.mxu0 0
    %2857 = vmatprep.subr.bf16.mxu0 0
    %2858 = vmatpush1.bf16.xpose.msra.mxu0 0
    %2859 = vmatprep.subr.bf16.mxu0 0
    %2860 = vmatpush1.bf16.xpose.msra.mxu0 0
    %2861 = vmatprep.subr.bf16.mxu0 0
    %2862 = vmatpush1.bf16.xpose.msra.mxu0 0
    %2863 = vmatprep.subr.bf16.mxu0 0
    %2864 = vmatpush1.bf16.xpose.msra.mxu0 %v2847
    %2865 = vmatprep.subr.bf16.mxu0 0
    %2866 = vmatpush2.bf16.xpose.msra.mxu0 0
    %2867 = vmatprep.subr.bf16.mxu0 0
    %2868 = vmatpush2.bf16.xpose.msra.mxu0 0
    %2869 = vmatprep.subr.bf16.mxu0 0
    %2870 = vmatpush2.bf16.xpose.msra.mxu0 0
    %2871 = vmatprep.subr.bf16.mxu0 0
    %2872 = vmatpush2.bf16.xpose.msra.mxu0 0
    %2873 = vmatprep.subr.bf16.mxu0 0
    %2874 = vmatpush2.bf16.xpose.msra.mxu0 0
    %2875 = vmatprep.subr.bf16.mxu0 0
    %2876 = vmatpush2.bf16.xpose.msra.mxu0 0
    %2877 = vmatprep.subr.bf16.mxu0 0
    %2878 = vmatpush2.bf16.xpose.msra.mxu0 0
    %2879 = vmatprep.subr.bf16.mxu0 0
    %2880 = vmatpush2.bf16.xpose.msra.mxu0 0
    %2881 = vmatprep.mubr.bf16.mxu0 0
    %2882 = vmatmul.mubr.bf16.gmra.mxu0 %v2844
    %v2883 = vpop.f32.mrf.mxu0
    %v2884 = vadd.f32 0.0, %v2883
    %v2885 = vpop.f32.mrf.mxu0
    %v2886 = vpop.f32.mrf.mxu0
    %v2887 = vpop.f32.mrf.mxu0
    %2888 = vdwg.mxu0
    %v2889 = vunpack.c.l.b16 %v1861
    %v2890 = vpack.c.b16 %v2889, %v2889
    %2891 = vrot.lane.b32.xlu0 %v2890, 96
    %v2892 = vpop.permute.xlu0 %2891
    %v2894 = vsel %vm501, %v2892, 0
    %v2897 = vsel %vm501, %v2734, 0
    %2899 = vmatprep.subr.bf16.mxu0 0
    %2900 = vmatpush1.bf16.xpose.msra.mxu0 0
    %2901 = vmatprep.subr.bf16.mxu0 0
    %2902 = vmatpush1.bf16.xpose.msra.mxu0 0
    %2903 = vmatprep.subr.bf16.mxu0 0
    %2904 = vmatpush1.bf16.xpose.msra.mxu0 0
    %2905 = vmatprep.subr.bf16.mxu0 0
    %2906 = vmatpush1.bf16.xpose.msra.mxu0 0
    %2907 = vmatprep.subr.bf16.mxu0 0
    %2908 = vmatpush1.bf16.xpose.msra.mxu0 0
    %2909 = vmatprep.subr.bf16.mxu0 0
    %2910 = vmatpush1.bf16.xpose.msra.mxu0 0
    %2911 = vmatprep.subr.bf16.mxu0 0
    %2912 = vmatpush1.bf16.xpose.msra.mxu0 0
    %2913 = vmatprep.subr.bf16.mxu0 0
    %2914 = vmatpush1.bf16.xpose.msra.mxu0 %v2897
    %2915 = vmatprep.subr.bf16.mxu0 0
    %2916 = vmatpush2.bf16.xpose.msra.mxu0 0
    %2917 = vmatprep.subr.bf16.mxu0 0
    %2918 = vmatpush2.bf16.xpose.msra.mxu0 0
    %2919 = vmatprep.subr.bf16.mxu0 0
    %2920 = vmatpush2.bf16.xpose.msra.mxu0 0
    %2921 = vmatprep.subr.bf16.mxu0 0
    %2922 = vmatpush2.bf16.xpose.msra.mxu0 0
    %2923 = vmatprep.subr.bf16.mxu0 0
    %2924 = vmatpush2.bf16.xpose.msra.mxu0 0
    %2925 = vmatprep.subr.bf16.mxu0 0
    %2926 = vmatpush2.bf16.xpose.msra.mxu0 0
    %2927 = vmatprep.subr.bf16.mxu0 0
    %2928 = vmatpush2.bf16.xpose.msra.mxu0 0
    %2929 = vmatprep.subr.bf16.mxu0 0
    %2930 = vmatpush2.bf16.xpose.msra.mxu0 0
    %2931 = vmatprep.mubr.bf16.mxu0 0
    %2932 = vmatmul.mubr.bf16.gmra.mxu0 %v2894
    %v2933 = vpop.f32.mrf.mxu0
    %v2934 = vadd.f32 0.0, %v2933
    %v2935 = vpop.f32.mrf.mxu0
    %v2936 = vpop.f32.mrf.mxu0
    %v2937 = vpop.f32.mrf.mxu0
    %2938 = vdwg.mxu0
    %v2939 = vunpack.c.l.b16 %v1863
    %v2940 = vpack.c.b16 %v2939, %v2939
    %2941 = vrot.lane.b32.xlu0 %v2940, 96
    %v2942 = vpop.permute.xlu0 %2941
    %v2944 = vsel %vm501, %v2942, 0
    %v2947 = vsel %vm501, %v2736, 0
    %2949 = vmatprep.subr.bf16.mxu0 0
    %2950 = vmatpush1.bf16.xpose.msra.mxu0 0
    %2951 = vmatprep.subr.bf16.mxu0 0
    %2952 = vmatpush1.bf16.xpose.msra.mxu0 0
    %2953 = vmatprep.subr.bf16.mxu0 0
    %2954 = vmatpush1.bf16.xpose.msra.mxu0 0
    %2955 = vmatprep.subr.bf16.mxu0 0
    %2956 = vmatpush1.bf16.xpose.msra.mxu0 0
    %2957 = vmatprep.subr.bf16.mxu0 0
    %2958 = vmatpush1.bf16.xpose.msra.mxu0 0
    %2959 = vmatprep.subr.bf16.mxu0 0
    %2960 = vmatpush1.bf16.xpose.msra.mxu0 0
    %2961 = vmatprep.subr.bf16.mxu0 0
    %2962 = vmatpush1.bf16.xpose.msra.mxu0 0
    %2963 = vmatprep.subr.bf16.mxu0 0
    %2964 = vmatpush1.bf16.xpose.msra.mxu0 %v2947
    %2965 = vmatprep.subr.bf16.mxu0 0
    %2966 = vmatpush2.bf16.xpose.msra.mxu0 0
    %2967 = vmatprep.subr.bf16.mxu0 0
    %2968 = vmatpush2.bf16.xpose.msra.mxu0 0
    %2969 = vmatprep.subr.bf16.mxu0 0
    %2970 = vmatpush2.bf16.xpose.msra.mxu0 0
    %2971 = vmatprep.subr.bf16.mxu0 0
    %2972 = vmatpush2.bf16.xpose.msra.mxu0 0
    %2973 = vmatprep.subr.bf16.mxu0 0
    %2974 = vmatpush2.bf16.xpose.msra.mxu0 0
    %2975 = vmatprep.subr.bf16.mxu0 0
    %2976 = vmatpush2.bf16.xpose.msra.mxu0 0
    %2977 = vmatprep.subr.bf16.mxu0 0
    %2978 = vmatpush2.bf16.xpose.msra.mxu0 0
    %2979 = vmatprep.subr.bf16.mxu0 0
    %2980 = vmatpush2.bf16.xpose.msra.mxu0 0
    %2981 = vmatprep.mubr.bf16.mxu0 0
    %2982 = vmatmul.mubr.bf16.gmra.mxu0 %v2944
    %v2983 = vpop.f32.mrf.mxu0
    %v2984 = vadd.f32 0.0, %v2983
    %v2985 = vpop.f32.mrf.mxu0
    %v2986 = vpop.f32.mrf.mxu0
    %v2987 = vpop.f32.mrf.mxu0
    %2988 = vdwg.mxu0
    %v2989 = vunpack.c.l.b16 %v1865
    %v2990 = vpack.c.b16 %v2989, %v2989
    %2991 = vrot.lane.b32.xlu0 %v2990, 96
    %v2992 = vpop.permute.xlu0 %2991
    %v2994 = vsel %vm501, %v2992, 0
    %v2997 = vsel %vm501, %v2738, 0
    %2999 = vmatprep.subr.bf16.mxu0 0
    %3000 = vmatpush1.bf16.xpose.msra.mxu0 0
    %3001 = vmatprep.subr.bf16.mxu0 0
    %3002 = vmatpush1.bf16.xpose.msra.mxu0 0
    %3003 = vmatprep.subr.bf16.mxu0 0
    %3004 = vmatpush1.bf16.xpose.msra.mxu0 0
    %3005 = vmatprep.subr.bf16.mxu0 0
    %3006 = vmatpush1.bf16.xpose.msra.mxu0 0
    %3007 = vmatprep.subr.bf16.mxu0 0
    %3008 = vmatpush1.bf16.xpose.msra.mxu0 0
    %3009 = vmatprep.subr.bf16.mxu0 0
    %3010 = vmatpush1.bf16.xpose.msra.mxu0 0
    %3011 = vmatprep.subr.bf16.mxu0 0
    %3012 = vmatpush1.bf16.xpose.msra.mxu0 0
    %3013 = vmatprep.subr.bf16.mxu0 0
    %3014 = vmatpush1.bf16.xpose.msra.mxu0 %v2997
    %3015 = vmatprep.subr.bf16.mxu0 0
    %3016 = vmatpush2.bf16.xpose.msra.mxu0 0
    %3017 = vmatprep.subr.bf16.mxu0 0
    %3018 = vmatpush2.bf16.xpose.msra.mxu0 0
    %3019 = vmatprep.subr.bf16.mxu0 0
    %3020 = vmatpush2.bf16.xpose.msra.mxu0 0
    %3021 = vmatprep.subr.bf16.mxu0 0
    %3022 = vmatpush2.bf16.xpose.msra.mxu0 0
    %3023 = vmatprep.subr.bf16.mxu0 0
    %3024 = vmatpush2.bf16.xpose.msra.mxu0 0
    %3025 = vmatprep.subr.bf16.mxu0 0
    %3026 = vmatpush2.bf16.xpose.msra.mxu0 0
    %3027 = vmatprep.subr.bf16.mxu0 0
    %3028 = vmatpush2.bf16.xpose.msra.mxu0 0
    %3029 = vmatprep.subr.bf16.mxu0 0
    %3030 = vmatpush2.bf16.xpose.msra.mxu0 0
    %3031 = vmatprep.mubr.bf16.mxu0 0
    %3032 = vmatmul.mubr.bf16.gmra.mxu0 %v2994
    %v3033 = vpop.f32.mrf.mxu0
    %v3034 = vadd.f32 0.0, %v3033
    %v3035 = vpop.f32.mrf.mxu0
    %v3036 = vpop.f32.mrf.mxu0
    %v3037 = vpop.f32.mrf.mxu0
    %3038 = vdwg.mxu0
    %v3039 = vunpack.c.l.b16 %v1867
    %v3040 = vpack.c.b16 %v3039, %v3039
    %3041 = vrot.lane.b32.xlu0 %v3040, 96
    %v3042 = vpop.permute.xlu0 %3041
    %v3044 = vsel %vm501, %v3042, 0
    %v3047 = vsel %vm501, %v2740, 0
    %3049 = vmatprep.subr.bf16.mxu0 0
    %3050 = vmatpush1.bf16.xpose.msra.mxu0 0
    %3051 = vmatprep.subr.bf16.mxu0 0
    %3052 = vmatpush1.bf16.xpose.msra.mxu0 0
    %3053 = vmatprep.subr.bf16.mxu0 0
    %3054 = vmatpush1.bf16.xpose.msra.mxu0 0
    %3055 = vmatprep.subr.bf16.mxu0 0
    %3056 = vmatpush1.bf16.xpose.msra.mxu0 0
    %3057 = vmatprep.subr.bf16.mxu0 0
    %3058 = vmatpush1.bf16.xpose.msra.mxu0 0
    %3059 = vmatprep.subr.bf16.mxu0 0
    %3060 = vmatpush1.bf16.xpose.msra.mxu0 0
    %3061 = vmatprep.subr.bf16.mxu0 0
    %3062 = vmatpush1.bf16.xpose.msra.mxu0 0
    %3063 = vmatprep.subr.bf16.mxu0 0
    %3064 = vmatpush1.bf16.xpose.msra.mxu0 %v3047
    %3065 = vmatprep.subr.bf16.mxu0 0
    %3066 = vmatpush2.bf16.xpose.msra.mxu0 0
    %3067 = vmatprep.subr.bf16.mxu0 0
    %3068 = vmatpush2.bf16.xpose.msra.mxu0 0
    %3069 = vmatprep.subr.bf16.mxu0 0
    %3070 = vmatpush2.bf16.xpose.msra.mxu0 0
    %3071 = vmatprep.subr.bf16.mxu0 0
    %3072 = vmatpush2.bf16.xpose.msra.mxu0 0
    %3073 = vmatprep.subr.bf16.mxu0 0
    %3074 = vmatpush2.bf16.xpose.msra.mxu0 0
    %3075 = vmatprep.subr.bf16.mxu0 0
    %3076 = vmatpush2.bf16.xpose.msra.mxu0 0
    %3077 = vmatprep.subr.bf16.mxu0 0
    %3078 = vmatpush2.bf16.xpose.msra.mxu0 0
    %3079 = vmatprep.subr.bf16.mxu0 0
    %3080 = vmatpush2.bf16.xpose.msra.mxu0 0
    %3081 = vmatprep.mubr.bf16.mxu0 0
    %3082 = vmatmul.mubr.bf16.gmra.mxu0 %v3044
    %v3083 = vpop.f32.mrf.mxu0
    %v3084 = vadd.f32 0.0, %v3083
    %v3085 = vpop.f32.mrf.mxu0
    %v3086 = vpop.f32.mrf.mxu0
    %v3087 = vpop.f32.mrf.mxu0
    %3088 = vdwg.mxu0
    %v3089 = vunpack.c.l.b16 %v1869
    %v3090 = vpack.c.b16 %v3089, %v3089
    %3091 = vrot.lane.b32.xlu0 %v3090, 96
    %v3092 = vpop.permute.xlu0 %3091
    %v3094 = vsel %vm501, %v3092, 0
    %v3097 = vsel %vm501, %v2742, 0
    %3099 = vmatprep.subr.bf16.mxu0 0
    %3100 = vmatpush1.bf16.xpose.msra.mxu0 0
    %3101 = vmatprep.subr.bf16.mxu0 0
    %3102 = vmatpush1.bf16.xpose.msra.mxu0 0
    %3103 = vmatprep.subr.bf16.mxu0 0
    %3104 = vmatpush1.bf16.xpose.msra.mxu0 0
    %3105 = vmatprep.subr.bf16.mxu0 0
    %3106 = vmatpush1.bf16.xpose.msra.mxu0 0
    %3107 = vmatprep.subr.bf16.mxu0 0
    %3108 = vmatpush1.bf16.xpose.msra.mxu0 0
    %3109 = vmatprep.subr.bf16.mxu0 0
    %3110 = vmatpush1.bf16.xpose.msra.mxu0 0
    %3111 = vmatprep.subr.bf16.mxu0 0
    %3112 = vmatpush1.bf16.xpose.msra.mxu0 0
    %3113 = vmatprep.subr.bf16.mxu0 0
    %3114 = vmatpush1.bf16.xpose.msra.mxu0 %v3097
    %3115 = vmatprep.subr.bf16.mxu0 0
    %3116 = vmatpush2.bf16.xpose.msra.mxu0 0
    %3117 = vmatprep.subr.bf16.mxu0 0
    %3118 = vmatpush2.bf16.xpose.msra.mxu0 0
    %3119 = vmatprep.subr.bf16.mxu0 0
    %3120 = vmatpush2.bf16.xpose.msra.mxu0 0
    %3121 = vmatprep.subr.bf16.mxu0 0
    %3122 = vmatpush2.bf16.xpose.msra.mxu0 0
    %3123 = vmatprep.subr.bf16.mxu0 0
    %3124 = vmatpush2.bf16.xpose.msra.mxu0 0
    %3125 = vmatprep.subr.bf16.mxu0 0
    %3126 = vmatpush2.bf16.xpose.msra.mxu0 0
    %3127 = vmatprep.subr.bf16.mxu0 0
    %3128 = vmatpush2.bf16.xpose.msra.mxu0 0
    %3129 = vmatprep.subr.bf16.mxu0 0
    %3130 = vmatpush2.bf16.xpose.msra.mxu0 0
    %3131 = vmatprep.mubr.bf16.mxu0 0
    %3132 = vmatmul.mubr.bf16.gmra.mxu0 %v3094
    %v3133 = vpop.f32.mrf.mxu0
    %v3134 = vadd.f32 0.0, %v3133
    %v3135 = vpop.f32.mrf.mxu0
    %v3136 = vpop.f32.mrf.mxu0
    %v3137 = vpop.f32.mrf.mxu0
    %3138 = vdwg.mxu0
    %v3139 = vadd.f32 %v2786, %v360
    %v3140 = vadd.f32 %v2834, %v361
    %v3141 = vadd.f32 %v2884, %v360
    %v3142 = vadd.f32 %v2934, %v361
    %v3143 = vadd.f32 %v2984, %v360
    %v3144 = vadd.f32 %v3034, %v361
    %v3145 = vadd.f32 %v3084, %v360
    %v3146 = vadd.f32 %v3134, %v361
    %v3147 = vsel %vm501, %v3139, -inf
    %3148 = vmax.xlane.f32.xlu0 %v3147
    %v3149 = vpop.xlane.xlu0 %3148
    %v3150 = vsel %vm501, %v3140, -inf
    %3151 = vmax.xlane.f32.xlu0 %v3150
    %v3152 = vpop.xlane.xlu0 %3151
    %v3153 = vsel %vm501, %v3141, -inf
    %3154 = vmax.xlane.f32.xlu0 %v3153
    %v3155 = vpop.xlane.xlu0 %3154
    %v3156 = vsel %vm501, %v3142, -inf
    %3157 = vmax.xlane.f32.xlu0 %v3156
    %v3158 = vpop.xlane.xlu0 %3157
    %v3159 = vsel %vm501, %v3143, -inf
    %3160 = vmax.xlane.f32.xlu0 %v3159
    %v3161 = vpop.xlane.xlu0 %3160
    %v3162 = vsel %vm501, %v3144, -inf
    %3163 = vmax.xlane.f32.xlu0 %v3162
    %v3164 = vpop.xlane.xlu0 %3163
    %v3165 = vsel %vm501, %v3145, -inf
    %3166 = vmax.xlane.f32.xlu0 %v3165
    %v3167 = vpop.xlane.xlu0 %3166
    %v3168 = vsel %vm501, %v3146, -inf
    %3169 = vmax.xlane.f32.xlu0 %v3168
    %v3170 = vpop.xlane.xlu0 %3169
    %v3171 = vsub.f32 %v3139, %v3149
    %v3172 = vsub.f32 %v3140, %v3152
    %v3173 = vsub.f32 %v3141, %v3155
    %v3174 = vsub.f32 %v3142, %v3158
    %v3175 = vsub.f32 %v3143, %v3161
    %v3176 = vsub.f32 %v3144, %v3164
    %v3177 = vsub.f32 %v3145, %v3167
    %v3178 = vsub.f32 %v3146, %v3170
    %v3179 = vmul.f32 %v3171, 1.442695
    %v3180 = vpow.pop %v3179
    %v3181 = vmul.f32 %v3172, 1.442695
    %v3182 = vpow.pop %v3181
    %v3183 = vmul.f32 %v3173, 1.442695
    %v3184 = vpow.pop %v3183
    %v3185 = vmul.f32 %v3174, 1.442695
    %v3186 = vpow.pop %v3185
    %v3187 = vmul.f32 %v3175, 1.442695
    %v3188 = vpow.pop %v3187
    %v3189 = vmul.f32 %v3176, 1.442695
    %v3190 = vpow.pop %v3189
    %v3191 = vmul.f32 %v3177, 1.442695
    %v3192 = vpow.pop %v3191
    %v3193 = vmul.f32 %v3178, 1.442695
    %v3194 = vpow.pop %v3193
    %v3195 = vsel %vm501, %v3180, 0.0
    %3196 = vadd.xlane.f32.xlu0 %v3195
    %v3197 = vpop.xlane.xlu0 %3196
    %v3198 = vsel %vm501, %v3182, 0.0
    %3199 = vadd.xlane.f32.xlu0 %v3198
    %v3200 = vpop.xlane.xlu0 %3199
    %v3201 = vsel %vm501, %v3184, 0.0
    %3202 = vadd.xlane.f32.xlu0 %v3201
    %v3203 = vpop.xlane.xlu0 %3202
    %v3204 = vsel %vm501, %v3186, 0.0
    %3205 = vadd.xlane.f32.xlu0 %v3204
    %v3206 = vpop.xlane.xlu0 %3205
    %v3207 = vsel %vm501, %v3188, 0.0
    %3208 = vadd.xlane.f32.xlu0 %v3207
    %v3209 = vpop.xlane.xlu0 %3208
    %v3210 = vsel %vm501, %v3190, 0.0
    %3211 = vadd.xlane.f32.xlu0 %v3210
    %v3212 = vpop.xlane.xlu0 %3211
    %v3213 = vsel %vm501, %v3192, 0.0
    %3214 = vadd.xlane.f32.xlu0 %v3213
    %v3215 = vpop.xlane.xlu0 %3214
    %v3216 = vsel %vm501, %v3194, 0.0
    %3217 = vadd.xlane.f32.xlu0 %v3216
    %v3218 = vpop.xlane.xlu0 %3217
    %v3219 = vrcp.pop %v3197
    %v3220 = vrcp.pop %v3200
    %v3221 = vrcp.pop %v3203
    %v3222 = vrcp.pop %v3206
    %v3223 = vrcp.pop %v3209
    %v3224 = vrcp.pop %v3212
    %v3225 = vrcp.pop %v3215
    %v3226 = vrcp.pop %v3218
    %v3227 = vmul.f32 %v3180, %v3219
    %v3228 = vmul.f32 %v3182, %v3220
    %v3229 = vmul.f32 %v3184, %v3221
    %v3230 = vmul.f32 %v3186, %v3222
    %v3231 = vmul.f32 %v3188, %v3223
    %v3232 = vmul.f32 %v3190, %v3224
    %v3233 = vmul.f32 %v3192, %v3225
    %v3234 = vmul.f32 %v3194, %v3226
    %v3237 = vlaneseq
    %v3238 = vshrl.u32 %v3237, 7
    %v3239 = vsub.s32 0, %v3238
    %v3240 = vrot.slane %v354, %v3239
    %v3241 = vlaneseq
    %v3242 = vshrl.u32 %v3241, 7
    %v3243 = vsub.s32 0, %v3242
    %v3244 = vrot.slane %v355, %v3243
    %v3247 = vmul.f32 %v3227, %v3240
    %v3248 = vmul.f32 %v3228, %v3244
    %v3249 = vmul.f32 %v3229, %v3240
    %v3250 = vmul.f32 %v3230, %v3244
    %v3251 = vmul.f32 %v3231, %v3240
    %v3252 = vmul.f32 %v3232, %v3244
    %v3253 = vmul.f32 %v3233, %v3240
    %v3254 = vmul.f32 %v3234, %v3244
    %v3255 = vpack.c.bf16 %v3247, %v3247
    %v3256 = vpack.c.bf16 %v3248, %v3248
    %v3257 = vpack.c.bf16 %v3249, %v3249
    %v3258 = vpack.c.bf16 %v3250, %v3250
    %v3259 = vpack.c.bf16 %v3251, %v3251
    %v3260 = vpack.c.bf16 %v3252, %v3252
    %v3261 = vpack.c.bf16 %v3253, %v3253
    %v3262 = vpack.c.bf16 %v3254, %v3254
    %3263 = vrot.lane.b32.xlu0 %v2729, 96
    %v3264 = vpop.permute.xlu0 %3263
    %v3266 = vsel %vm501, %v3255, 0
    %v3269 = vsel %vm1005, %v3264, 0
    %3271 = vmatprep.subr.bf16.mxu0 0
    %3272 = vmatpush1.bf16.msra.mxu0 0
    %3273 = vmatprep.subr.bf16.mxu0 0
    %3274 = vmatpush1.bf16.msra.mxu0 0
    %3275 = vmatprep.subr.bf16.mxu0 0
    %3276 = vmatpush1.bf16.msra.mxu0 0
    %3277 = vmatprep.subr.bf16.mxu0 0
    %3278 = vmatpush1.bf16.msra.mxu0 0
    %3279 = vmatprep.subr.bf16.mxu0 0
    %3280 = vmatpush1.bf16.msra.mxu0 0
    %3281 = vmatprep.subr.bf16.mxu0 0
    %3282 = vmatpush1.bf16.msra.mxu0 0
    %3283 = vmatprep.subr.bf16.mxu0 0
    %3284 = vmatpush1.bf16.msra.mxu0 0
    %3285 = vmatprep.subr.bf16.mxu0 0
    %3286 = vmatpush1.bf16.msra.mxu0 %v3269
    %3287 = vmatprep.subr.bf16.mxu0 0
    %3288 = vmatpush2.bf16.msra.mxu0 0
    %3289 = vmatprep.subr.bf16.mxu0 0
    %3290 = vmatpush2.bf16.msra.mxu0 0
    %3291 = vmatprep.subr.bf16.mxu0 0
    %3292 = vmatpush2.bf16.msra.mxu0 0
    %3293 = vmatprep.subr.bf16.mxu0 0
    %3294 = vmatpush2.bf16.msra.mxu0 0
    %3295 = vmatprep.subr.bf16.mxu0 0
    %3296 = vmatpush2.bf16.msra.mxu0 0
    %3297 = vmatprep.subr.bf16.mxu0 0
    %3298 = vmatpush2.bf16.msra.mxu0 0
    %3299 = vmatprep.subr.bf16.mxu0 0
    %3300 = vmatpush2.bf16.msra.mxu0 0
    %3301 = vmatprep.subr.bf16.mxu0 0
    %3302 = vmatpush2.bf16.msra.mxu0 0
    %3303 = vmatprep.mubr.bf16.mxu0 0
    %3304 = vmatmul.mubr.bf16.gmra.mxu0 %v3266
    %v3305 = vpop.f32.mrf.mxu0
    %v3306 = vadd.f32 0.0, %v3305
    %v3307 = vpop.f32.mrf.mxu0
    %v3308 = vpop.f32.mrf.mxu0
    %v3309 = vpop.f32.mrf.mxu0
    %3310 = vdwg.mxu0
    %3311 = vrot.lane.b32.xlu0 %v2730, 96
    %v3312 = vpop.permute.xlu0 %3311
    %v3314 = vsel %vm501, %v3256, 0
    %v3317 = vsel %vm1005, %v3312, 0
    %3319 = vmatprep.subr.bf16.mxu0 0
    %3320 = vmatpush1.bf16.msra.mxu0 0
    %3321 = vmatprep.subr.bf16.mxu0 0
    %3322 = vmatpush1.bf16.msra.mxu0 0
    %3323 = vmatprep.subr.bf16.mxu0 0
    %3324 = vmatpush1.bf16.msra.mxu0 0
    %3325 = vmatprep.subr.bf16.mxu0 0
    %3326 = vmatpush1.bf16.msra.mxu0 0
    %3327 = vmatprep.subr.bf16.mxu0 0
    %3328 = vmatpush1.bf16.msra.mxu0 0
    %3329 = vmatprep.subr.bf16.mxu0 0
    %3330 = vmatpush1.bf16.msra.mxu0 0
    %3331 = vmatprep.subr.bf16.mxu0 0
    %3332 = vmatpush1.bf16.msra.mxu0 0
    %3333 = vmatprep.subr.bf16.mxu0 0
    %3334 = vmatpush1.bf16.msra.mxu0 %v3317
    %3335 = vmatprep.subr.bf16.mxu0 0
    %3336 = vmatpush2.bf16.msra.mxu0 0
    %3337 = vmatprep.subr.bf16.mxu0 0
    %3338 = vmatpush2.bf16.msra.mxu0 0
    %3339 = vmatprep.subr.bf16.mxu0 0
    %3340 = vmatpush2.bf16.msra.mxu0 0
    %3341 = vmatprep.subr.bf16.mxu0 0
    %3342 = vmatpush2.bf16.msra.mxu0 0
    %3343 = vmatprep.subr.bf16.mxu0 0
    %3344 = vmatpush2.bf16.msra.mxu0 0
    %3345 = vmatprep.subr.bf16.mxu0 0
    %3346 = vmatpush2.bf16.msra.mxu0 0
    %3347 = vmatprep.subr.bf16.mxu0 0
    %3348 = vmatpush2.bf16.msra.mxu0 0
    %3349 = vmatprep.subr.bf16.mxu0 0
    %3350 = vmatpush2.bf16.msra.mxu0 0
    %3351 = vmatprep.mubr.bf16.mxu0 0
    %3352 = vmatmul.mubr.bf16.gmra.mxu0 %v3314
    %v3353 = vpop.f32.mrf.mxu0
    %v3354 = vadd.f32 0.0, %v3353
    %v3355 = vpop.f32.mrf.mxu0
    %v3356 = vpop.f32.mrf.mxu0
    %v3357 = vpop.f32.mrf.mxu0
    %3358 = vdwg.mxu0
    %v3359 = vunpack.c.l.b16 %v2732
    %v3360 = vpack.c.b16 %v3359, %v3359
    %3361 = vrot.lane.b32.xlu0 %v3360, 96
    %v3362 = vpop.permute.xlu0 %3361
    %v3364 = vsel %vm501, %v3257, 0
    %v3367 = vsel %vm1005, %v3362, 0
    %3369 = vmatprep.subr.bf16.mxu0 0
    %3370 = vmatpush1.bf16.msra.mxu0 0
    %3371 = vmatprep.subr.bf16.mxu0 0
    %3372 = vmatpush1.bf16.msra.mxu0 0
    %3373 = vmatprep.subr.bf16.mxu0 0
    %3374 = vmatpush1.bf16.msra.mxu0 0
    %3375 = vmatprep.subr.bf16.mxu0 0
    %3376 = vmatpush1.bf16.msra.mxu0 0
    %3377 = vmatprep.subr.bf16.mxu0 0
    %3378 = vmatpush1.bf16.msra.mxu0 0
    %3379 = vmatprep.subr.bf16.mxu0 0
    %3380 = vmatpush1.bf16.msra.mxu0 0
    %3381 = vmatprep.subr.bf16.mxu0 0
    %3382 = vmatpush1.bf16.msra.mxu0 0
    %3383 = vmatprep.subr.bf16.mxu0 0
    %3384 = vmatpush1.bf16.msra.mxu0 %v3367
    %3385 = vmatprep.subr.bf16.mxu0 0
    %3386 = vmatpush2.bf16.msra.mxu0 0
    %3387 = vmatprep.subr.bf16.mxu0 0
    %3388 = vmatpush2.bf16.msra.mxu0 0
    %3389 = vmatprep.subr.bf16.mxu0 0
    %3390 = vmatpush2.bf16.msra.mxu0 0
    %3391 = vmatprep.subr.bf16.mxu0 0
    %3392 = vmatpush2.bf16.msra.mxu0 0
    %3393 = vmatprep.subr.bf16.mxu0 0
    %3394 = vmatpush2.bf16.msra.mxu0 0
    %3395 = vmatprep.subr.bf16.mxu0 0
    %3396 = vmatpush2.bf16.msra.mxu0 0
    %3397 = vmatprep.subr.bf16.mxu0 0
    %3398 = vmatpush2.bf16.msra.mxu0 0
    %3399 = vmatprep.subr.bf16.mxu0 0
    %3400 = vmatpush2.bf16.msra.mxu0 0
    %3401 = vmatprep.mubr.bf16.mxu0 0
    %3402 = vmatmul.mubr.bf16.gmra.mxu0 %v3364
    %v3403 = vpop.f32.mrf.mxu0
    %v3404 = vadd.f32 0.0, %v3403
    %v3405 = vpop.f32.mrf.mxu0
    %v3406 = vpop.f32.mrf.mxu0
    %v3407 = vpop.f32.mrf.mxu0
    %3408 = vdwg.mxu0
    %v3409 = vunpack.c.l.b16 %v2734
    %v3410 = vpack.c.b16 %v3409, %v3409
    %3411 = vrot.lane.b32.xlu0 %v3410, 96
    %v3412 = vpop.permute.xlu0 %3411
    %v3414 = vsel %vm501, %v3258, 0
    %v3417 = vsel %vm1005, %v3412, 0
    %3419 = vmatprep.subr.bf16.mxu0 0
    %3420 = vmatpush1.bf16.msra.mxu0 0
    %3421 = vmatprep.subr.bf16.mxu0 0
    %3422 = vmatpush1.bf16.msra.mxu0 0
    %3423 = vmatprep.subr.bf16.mxu0 0
    %3424 = vmatpush1.bf16.msra.mxu0 0
    %3425 = vmatprep.subr.bf16.mxu0 0
    %3426 = vmatpush1.bf16.msra.mxu0 0
    %3427 = vmatprep.subr.bf16.mxu0 0
    %3428 = vmatpush1.bf16.msra.mxu0 0
    %3429 = vmatprep.subr.bf16.mxu0 0
    %3430 = vmatpush1.bf16.msra.mxu0 0
    %3431 = vmatprep.subr.bf16.mxu0 0
    %3432 = vmatpush1.bf16.msra.mxu0 0
    %3433 = vmatprep.subr.bf16.mxu0 0
    %3434 = vmatpush1.bf16.msra.mxu0 %v3417
    %3435 = vmatprep.subr.bf16.mxu0 0
    %3436 = vmatpush2.bf16.msra.mxu0 0
    %3437 = vmatprep.subr.bf16.mxu0 0
    %3438 = vmatpush2.bf16.msra.mxu0 0
    %3439 = vmatprep.subr.bf16.mxu0 0
    %3440 = vmatpush2.bf16.msra.mxu0 0
    %3441 = vmatprep.subr.bf16.mxu0 0
    %3442 = vmatpush2.bf16.msra.mxu0 0
    %3443 = vmatprep.subr.bf16.mxu0 0
    %3444 = vmatpush2.bf16.msra.mxu0 0
    %3445 = vmatprep.subr.bf16.mxu0 0
    %3446 = vmatpush2.bf16.msra.mxu0 0
    %3447 = vmatprep.subr.bf16.mxu0 0
    %3448 = vmatpush2.bf16.msra.mxu0 0
    %3449 = vmatprep.subr.bf16.mxu0 0
    %3450 = vmatpush2.bf16.msra.mxu0 0
    %3451 = vmatprep.mubr.bf16.mxu0 0
    %3452 = vmatmul.mubr.bf16.gmra.mxu0 %v3414
    %v3453 = vpop.f32.mrf.mxu0
    %v3454 = vadd.f32 0.0, %v3453
    %v3455 = vpop.f32.mrf.mxu0
    %v3456 = vpop.f32.mrf.mxu0
    %v3457 = vpop.f32.mrf.mxu0
    %3458 = vdwg.mxu0
    %v3459 = vunpack.c.l.b16 %v2736
    %v3460 = vpack.c.b16 %v3459, %v3459
    %3461 = vrot.lane.b32.xlu0 %v3460, 96
    %v3462 = vpop.permute.xlu0 %3461
    %v3464 = vsel %vm501, %v3259, 0
    %v3467 = vsel %vm1005, %v3462, 0
    %3469 = vmatprep.subr.bf16.mxu0 0
    %3470 = vmatpush1.bf16.msra.mxu0 0
    %3471 = vmatprep.subr.bf16.mxu0 0
    %3472 = vmatpush1.bf16.msra.mxu0 0
    %3473 = vmatprep.subr.bf16.mxu0 0
    %3474 = vmatpush1.bf16.msra.mxu0 0
    %3475 = vmatprep.subr.bf16.mxu0 0
    %3476 = vmatpush1.bf16.msra.mxu0 0
    %3477 = vmatprep.subr.bf16.mxu0 0
    %3478 = vmatpush1.bf16.msra.mxu0 0
    %3479 = vmatprep.subr.bf16.mxu0 0
    %3480 = vmatpush1.bf16.msra.mxu0 0
    %3481 = vmatprep.subr.bf16.mxu0 0
    %3482 = vmatpush1.bf16.msra.mxu0 0
    %3483 = vmatprep.subr.bf16.mxu0 0
    %3484 = vmatpush1.bf16.msra.mxu0 %v3467
    %3485 = vmatprep.subr.bf16.mxu0 0
    %3486 = vmatpush2.bf16.msra.mxu0 0
    %3487 = vmatprep.subr.bf16.mxu0 0
    %3488 = vmatpush2.bf16.msra.mxu0 0
    %3489 = vmatprep.subr.bf16.mxu0 0
    %3490 = vmatpush2.bf16.msra.mxu0 0
    %3491 = vmatprep.subr.bf16.mxu0 0
    %3492 = vmatpush2.bf16.msra.mxu0 0
    %3493 = vmatprep.subr.bf16.mxu0 0
    %3494 = vmatpush2.bf16.msra.mxu0 0
    %3495 = vmatprep.subr.bf16.mxu0 0
    %3496 = vmatpush2.bf16.msra.mxu0 0
    %3497 = vmatprep.subr.bf16.mxu0 0
    %3498 = vmatpush2.bf16.msra.mxu0 0
    %3499 = vmatprep.subr.bf16.mxu0 0
    %3500 = vmatpush2.bf16.msra.mxu0 0
    %3501 = vmatprep.mubr.bf16.mxu0 0
    %3502 = vmatmul.mubr.bf16.gmra.mxu0 %v3464
    %v3503 = vpop.f32.mrf.mxu0
    %v3504 = vadd.f32 0.0, %v3503
    %v3505 = vpop.f32.mrf.mxu0
    %v3506 = vpop.f32.mrf.mxu0
    %v3507 = vpop.f32.mrf.mxu0
    %3508 = vdwg.mxu0
    %v3509 = vunpack.c.l.b16 %v2738
    %v3510 = vpack.c.b16 %v3509, %v3509
    %3511 = vrot.lane.b32.xlu0 %v3510, 96
    %v3512 = vpop.permute.xlu0 %3511
    %v3514 = vsel %vm501, %v3260, 0
    %v3517 = vsel %vm1005, %v3512, 0
    %3519 = vmatprep.subr.bf16.mxu0 0
    %3520 = vmatpush1.bf16.msra.mxu0 0
    %3521 = vmatprep.subr.bf16.mxu0 0
    %3522 = vmatpush1.bf16.msra.mxu0 0
    %3523 = vmatprep.subr.bf16.mxu0 0
    %3524 = vmatpush1.bf16.msra.mxu0 0
    %3525 = vmatprep.subr.bf16.mxu0 0
    %3526 = vmatpush1.bf16.msra.mxu0 0
    %3527 = vmatprep.subr.bf16.mxu0 0
    %3528 = vmatpush1.bf16.msra.mxu0 0
    %3529 = vmatprep.subr.bf16.mxu0 0
    %3530 = vmatpush1.bf16.msra.mxu0 0
    %3531 = vmatprep.subr.bf16.mxu0 0
    %3532 = vmatpush1.bf16.msra.mxu0 0
    %3533 = vmatprep.subr.bf16.mxu0 0
    %3534 = vmatpush1.bf16.msra.mxu0 %v3517
    %3535 = vmatprep.subr.bf16.mxu0 0
    %3536 = vmatpush2.bf16.msra.mxu0 0
    %3537 = vmatprep.subr.bf16.mxu0 0
    %3538 = vmatpush2.bf16.msra.mxu0 0
    %3539 = vmatprep.subr.bf16.mxu0 0
    %3540 = vmatpush2.bf16.msra.mxu0 0
    %3541 = vmatprep.subr.bf16.mxu0 0
    %3542 = vmatpush2.bf16.msra.mxu0 0
    %3543 = vmatprep.subr.bf16.mxu0 0
    %3544 = vmatpush2.bf16.msra.mxu0 0
    %3545 = vmatprep.subr.bf16.mxu0 0
    %3546 = vmatpush2.bf16.msra.mxu0 0
    %3547 = vmatprep.subr.bf16.mxu0 0
    %3548 = vmatpush2.bf16.msra.mxu0 0
    %3549 = vmatprep.subr.bf16.mxu0 0
    %3550 = vmatpush2.bf16.msra.mxu0 0
    %3551 = vmatprep.mubr.bf16.mxu0 0
    %3552 = vmatmul.mubr.bf16.gmra.mxu0 %v3514
    %v3553 = vpop.f32.mrf.mxu0
    %v3554 = vadd.f32 0.0, %v3553
    %v3555 = vpop.f32.mrf.mxu0
    %v3556 = vpop.f32.mrf.mxu0
    %v3557 = vpop.f32.mrf.mxu0
    %3558 = vdwg.mxu0
    %v3559 = vunpack.c.l.b16 %v2740
    %v3560 = vpack.c.b16 %v3559, %v3559
    %3561 = vrot.lane.b32.xlu0 %v3560, 96
    %v3562 = vpop.permute.xlu0 %3561
    %v3564 = vsel %vm501, %v3261, 0
    %v3567 = vsel %vm1005, %v3562, 0
    %3569 = vmatprep.subr.bf16.mxu0 0
    %3570 = vmatpush1.bf16.msra.mxu0 0
    %3571 = vmatprep.subr.bf16.mxu0 0
    %3572 = vmatpush1.bf16.msra.mxu0 0
    %3573 = vmatprep.subr.bf16.mxu0 0
    %3574 = vmatpush1.bf16.msra.mxu0 0
    %3575 = vmatprep.subr.bf16.mxu0 0
    %3576 = vmatpush1.bf16.msra.mxu0 0
    %3577 = vmatprep.subr.bf16.mxu0 0
    %3578 = vmatpush1.bf16.msra.mxu0 0
    %3579 = vmatprep.subr.bf16.mxu0 0
    %3580 = vmatpush1.bf16.msra.mxu0 0
    %3581 = vmatprep.subr.bf16.mxu0 0
    %3582 = vmatpush1.bf16.msra.mxu0 0
    %3583 = vmatprep.subr.bf16.mxu0 0
    %3584 = vmatpush1.bf16.msra.mxu0 %v3567
    %3585 = vmatprep.subr.bf16.mxu0 0
    %3586 = vmatpush2.bf16.msra.mxu0 0
    %3587 = vmatprep.subr.bf16.mxu0 0
    %3588 = vmatpush2.bf16.msra.mxu0 0
    %3589 = vmatprep.subr.bf16.mxu0 0
    %3590 = vmatpush2.bf16.msra.mxu0 0
    %3591 = vmatprep.subr.bf16.mxu0 0
    %3592 = vmatpush2.bf16.msra.mxu0 0
    %3593 = vmatprep.subr.bf16.mxu0 0
    %3594 = vmatpush2.bf16.msra.mxu0 0
    %3595 = vmatprep.subr.bf16.mxu0 0
    %3596 = vmatpush2.bf16.msra.mxu0 0
    %3597 = vmatprep.subr.bf16.mxu0 0
    %3598 = vmatpush2.bf16.msra.mxu0 0
    %3599 = vmatprep.subr.bf16.mxu0 0
    %3600 = vmatpush2.bf16.msra.mxu0 0
    %3601 = vmatprep.mubr.bf16.mxu0 0
    %3602 = vmatmul.mubr.bf16.gmra.mxu0 %v3564
    %v3603 = vpop.f32.mrf.mxu0
    %v3604 = vadd.f32 0.0, %v3603
    %v3605 = vpop.f32.mrf.mxu0
    %v3606 = vpop.f32.mrf.mxu0
    %v3607 = vpop.f32.mrf.mxu0
    %3608 = vdwg.mxu0
    %v3609 = vunpack.c.l.b16 %v2742
    %v3610 = vpack.c.b16 %v3609, %v3609
    %3611 = vrot.lane.b32.xlu0 %v3610, 96
    %v3612 = vpop.permute.xlu0 %3611
    %v3614 = vsel %vm501, %v3262, 0
    %v3617 = vsel %vm1005, %v3612, 0
    %3619 = vmatprep.subr.bf16.mxu0 0
    %3620 = vmatpush1.bf16.msra.mxu0 0
    %3621 = vmatprep.subr.bf16.mxu0 0
    %3622 = vmatpush1.bf16.msra.mxu0 0
    %3623 = vmatprep.subr.bf16.mxu0 0
    %3624 = vmatpush1.bf16.msra.mxu0 0
    %3625 = vmatprep.subr.bf16.mxu0 0
    %3626 = vmatpush1.bf16.msra.mxu0 0
    %3627 = vmatprep.subr.bf16.mxu0 0
    %3628 = vmatpush1.bf16.msra.mxu0 0
    %3629 = vmatprep.subr.bf16.mxu0 0
    %3630 = vmatpush1.bf16.msra.mxu0 0
    %3631 = vmatprep.subr.bf16.mxu0 0
    %3632 = vmatpush1.bf16.msra.mxu0 0
    %3633 = vmatprep.subr.bf16.mxu0 0
    %3634 = vmatpush1.bf16.msra.mxu0 %v3617
    %3635 = vmatprep.subr.bf16.mxu0 0
    %3636 = vmatpush2.bf16.msra.mxu0 0
    %3637 = vmatprep.subr.bf16.mxu0 0
    %3638 = vmatpush2.bf16.msra.mxu0 0
    %3639 = vmatprep.subr.bf16.mxu0 0
    %3640 = vmatpush2.bf16.msra.mxu0 0
    %3641 = vmatprep.subr.bf16.mxu0 0
    %3642 = vmatpush2.bf16.msra.mxu0 0
    %3643 = vmatprep.subr.bf16.mxu0 0
    %3644 = vmatpush2.bf16.msra.mxu0 0
    %3645 = vmatprep.subr.bf16.mxu0 0
    %3646 = vmatpush2.bf16.msra.mxu0 0
    %3647 = vmatprep.subr.bf16.mxu0 0
    %3648 = vmatpush2.bf16.msra.mxu0 0
    %3649 = vmatprep.subr.bf16.mxu0 0
    %3650 = vmatpush2.bf16.msra.mxu0 0
    %3651 = vmatprep.mubr.bf16.mxu0 0
    %3652 = vmatmul.mubr.bf16.gmra.mxu0 %v3614
    %v3653 = vpop.f32.mrf.mxu0
    %v3654 = vadd.f32 0.0, %v3653
    %v3655 = vpop.f32.mrf.mxu0
    %v3656 = vpop.f32.mrf.mxu0
    %v3657 = vpop.f32.mrf.mxu0
    %3658 = vdwg.mxu0
    %v3659 = vld [vmem:[%s37] sm:$0xf]
    %v3660 = vld [vmem:[%s37 + $0x4] sm:$0xf]
    %v3661 = vld [vmem:[%s37 + $0x8] sm:$0xf]
    %v3662 = vld [vmem:[%s37 + $0xc] sm:$0xf]
    %v3663 = vld [vmem:[%s39] sm:$0x1]
    %v3664 = vpack.c.bf16 %v2444, %v2398
    %v3665 = vpack.c.bf16 %v2536, %v2490
    %v3666 = vpack.c.bf16 %v2628, %v2582
    %v3667 = vpack.c.bf16 %v2720, %v2674
    %v3669 = vsel %vm501, %v3665, 0
    %v3672 = vsel %vm1005, %v3660, 0
    %3674 = vmatprep.subr.bf16.mxu0 0
    %3675 = vmatpush1.bf16.msra.mxu0 0
    %3676 = vmatprep.subr.bf16.mxu0 0
    %3677 = vmatpush1.bf16.msra.mxu0 0
    %3678 = vmatprep.subr.bf16.mxu0 0
    %3679 = vmatpush1.bf16.msra.mxu0 0
    %3680 = vmatprep.subr.bf16.mxu0 0
    %3681 = vmatpush1.bf16.msra.mxu0 0
    %3682 = vmatprep.subr.bf16.mxu0 0
    %3683 = vmatpush1.bf16.msra.mxu0 0
    %3684 = vmatprep.subr.bf16.mxu0 0
    %3685 = vmatpush1.bf16.msra.mxu0 0
    %3686 = vmatprep.subr.bf16.mxu0 0
    %3687 = vmatpush1.bf16.msra.mxu0 0
    %3688 = vmatprep.subr.bf16.mxu0 0
    %3689 = vmatpush1.bf16.msra.mxu0 %v3672
    %3690 = vmatprep.subr.bf16.mxu0 0
    %3691 = vmatpush2.bf16.msra.mxu0 0
    %3692 = vmatprep.subr.bf16.mxu0 0
    %3693 = vmatpush2.bf16.msra.mxu0 0
    %3694 = vmatprep.subr.bf16.mxu0 0
    %3695 = vmatpush2.bf16.msra.mxu0 0
    %3696 = vmatprep.subr.bf16.mxu0 0
    %3697 = vmatpush2.bf16.msra.mxu0 0
    %3698 = vmatprep.subr.bf16.mxu0 0
    %3699 = vmatpush2.bf16.msra.mxu0 0
    %3700 = vmatprep.subr.bf16.mxu0 0
    %3701 = vmatpush2.bf16.msra.mxu0 0
    %3702 = vmatprep.subr.bf16.mxu0 0
    %3703 = vmatpush2.bf16.msra.mxu0 0
    %3704 = vmatprep.subr.bf16.mxu0 0
    %3705 = vmatpush2.bf16.msra.mxu0 0
    %3706 = vmatprep.mubr.bf16.mxu0 0
    %3707 = vmatmul.mubr.bf16.gmra.mxu0 %v3669
    %v3708 = vpop.f32.mrf.mxu0
    %v3709 = vadd.f32 0.0, %v3708
    %v3710 = vpop.f32.mrf.mxu0
    %v3711 = vpop.f32.mrf.mxu0
    %v3712 = vadd.f32 0.0, %v3711
    %v3713 = vpop.f32.mrf.mxu0
    %3714 = vdwg.mxu0
    %v3716 = vsel %vm501, %v3664, 0
    %v3719 = vsel %vm1005, %v3659, 0
    %3721 = vmatprep.subr.bf16.mxu0 0
    %3722 = vmatpush1.bf16.msra.mxu0 0
    %3723 = vmatprep.subr.bf16.mxu0 0
    %3724 = vmatpush1.bf16.msra.mxu0 0
    %3725 = vmatprep.subr.bf16.mxu0 0
    %3726 = vmatpush1.bf16.msra.mxu0 0
    %3727 = vmatprep.subr.bf16.mxu0 0
    %3728 = vmatpush1.bf16.msra.mxu0 0
    %3729 = vmatprep.subr.bf16.mxu0 0
    %3730 = vmatpush1.bf16.msra.mxu0 0
    %3731 = vmatprep.subr.bf16.mxu0 0
    %3732 = vmatpush1.bf16.msra.mxu0 0
    %3733 = vmatprep.subr.bf16.mxu0 0
    %3734 = vmatpush1.bf16.msra.mxu0 0
    %3735 = vmatprep.subr.bf16.mxu0 0
    %3736 = vmatpush1.bf16.msra.mxu0 %v3719
    %3737 = vmatprep.subr.bf16.mxu0 0
    %3738 = vmatpush2.bf16.msra.mxu0 0
    %3739 = vmatprep.subr.bf16.mxu0 0
    %3740 = vmatpush2.bf16.msra.mxu0 0
    %3741 = vmatprep.subr.bf16.mxu0 0
    %3742 = vmatpush2.bf16.msra.mxu0 0
    %3743 = vmatprep.subr.bf16.mxu0 0
    %3744 = vmatpush2.bf16.msra.mxu0 0
    %3745 = vmatprep.subr.bf16.mxu0 0
    %3746 = vmatpush2.bf16.msra.mxu0 0
    %3747 = vmatprep.subr.bf16.mxu0 0
    %3748 = vmatpush2.bf16.msra.mxu0 0
    %3749 = vmatprep.subr.bf16.mxu0 0
    %3750 = vmatpush2.bf16.msra.mxu0 0
    %3751 = vmatprep.subr.bf16.mxu0 0
    %3752 = vmatpush2.bf16.msra.mxu0 0
    %3753 = vmatprep.mubr.bf16.mxu0 0
    %3754 = vmatmul.mubr.bf16.gmra.mxu0 %v3716
    %v3755 = vpop.f32.mrf.mxu0
    %v3756 = vadd.f32 %v3709, %v3755
    %v3757 = vpop.f32.mrf.mxu0
    %v3758 = vpop.f32.mrf.mxu0
    %v3759 = vadd.f32 %v3712, %v3758
    %v3760 = vpop.f32.mrf.mxu0
    %3761 = vdwg.mxu0
    %v3763 = vsel %vm501, %v3666, 0
    %v3766 = vsel %vm1005, %v3661, 0
    %3768 = vmatprep.subr.bf16.mxu0 0
    %3769 = vmatpush1.bf16.msra.mxu0 0
    %3770 = vmatprep.subr.bf16.mxu0 0
    %3771 = vmatpush1.bf16.msra.mxu0 0
    %3772 = vmatprep.subr.bf16.mxu0 0
    %3773 = vmatpush1.bf16.msra.mxu0 0
    %3774 = vmatprep.subr.bf16.mxu0 0
    %3775 = vmatpush1.bf16.msra.mxu0 0
    %3776 = vmatprep.subr.bf16.mxu0 0
    %3777 = vmatpush1.bf16.msra.mxu0 0
    %3778 = vmatprep.subr.bf16.mxu0 0
    %3779 = vmatpush1.bf16.msra.mxu0 0
    %3780 = vmatprep.subr.bf16.mxu0 0
    %3781 = vmatpush1.bf16.msra.mxu0 0
    %3782 = vmatprep.subr.bf16.mxu0 0
    %3783 = vmatpush1.bf16.msra.mxu0 %v3766
    %3784 = vmatprep.subr.bf16.mxu0 0
    %3785 = vmatpush2.bf16.msra.mxu0 0
    %3786 = vmatprep.subr.bf16.mxu0 0
    %3787 = vmatpush2.bf16.msra.mxu0 0
    %3788 = vmatprep.subr.bf16.mxu0 0
    %3789 = vmatpush2.bf16.msra.mxu0 0
    %3790 = vmatprep.subr.bf16.mxu0 0
    %3791 = vmatpush2.bf16.msra.mxu0 0
    %3792 = vmatprep.subr.bf16.mxu0 0
    %3793 = vmatpush2.bf16.msra.mxu0 0
    %3794 = vmatprep.subr.bf16.mxu0 0
    %3795 = vmatpush2.bf16.msra.mxu0 0
    %3796 = vmatprep.subr.bf16.mxu0 0
    %3797 = vmatpush2.bf16.msra.mxu0 0
    %3798 = vmatprep.subr.bf16.mxu0 0
    %3799 = vmatpush2.bf16.msra.mxu0 0
    %3800 = vmatprep.mubr.bf16.mxu0 0
    %3801 = vmatmul.mubr.bf16.gmra.mxu0 %v3763
    %v3802 = vpop.f32.mrf.mxu0
    %v3803 = vadd.f32 0.0, %v3802
    %v3804 = vpop.f32.mrf.mxu0
    %v3805 = vpop.f32.mrf.mxu0
    %v3806 = vadd.f32 0.0, %v3805
    %v3807 = vpop.f32.mrf.mxu0
    %3808 = vdwg.mxu0
    %v3809 = vadd.f32 %v3756, %v3803
    %v3810 = vadd.f32 %v3759, %v3806
    %v3812 = vsel %vm501, %v3667, 0
    %v3815 = vsel %vm1005, %v3662, 0
    %3817 = vmatprep.subr.bf16.mxu0 0
    %3818 = vmatpush1.bf16.msra.mxu0 0
    %3819 = vmatprep.subr.bf16.mxu0 0
    %3820 = vmatpush1.bf16.msra.mxu0 0
    %3821 = vmatprep.subr.bf16.mxu0 0
    %3822 = vmatpush1.bf16.msra.mxu0 0
    %3823 = vmatprep.subr.bf16.mxu0 0
    %3824 = vmatpush1.bf16.msra.mxu0 0
    %3825 = vmatprep.subr.bf16.mxu0 0
    %3826 = vmatpush1.bf16.msra.mxu0 0
    %3827 = vmatprep.subr.bf16.mxu0 0
    %3828 = vmatpush1.bf16.msra.mxu0 0
    %3829 = vmatprep.subr.bf16.mxu0 0
    %3830 = vmatpush1.bf16.msra.mxu0 0
    %3831 = vmatprep.subr.bf16.mxu0 0
    %3832 = vmatpush1.bf16.msra.mxu0 %v3815
    %3833 = vmatprep.subr.bf16.mxu0 0
    %3834 = vmatpush2.bf16.msra.mxu0 0
    %3835 = vmatprep.subr.bf16.mxu0 0
    %3836 = vmatpush2.bf16.msra.mxu0 0
    %3837 = vmatprep.subr.bf16.mxu0 0
    %3838 = vmatpush2.bf16.msra.mxu0 0
    %3839 = vmatprep.subr.bf16.mxu0 0
    %3840 = vmatpush2.bf16.msra.mxu0 0
    %3841 = vmatprep.subr.bf16.mxu0 0
    %3842 = vmatpush2.bf16.msra.mxu0 0
    %3843 = vmatprep.subr.bf16.mxu0 0
    %3844 = vmatpush2.bf16.msra.mxu0 0
    %3845 = vmatprep.subr.bf16.mxu0 0
    %3846 = vmatpush2.bf16.msra.mxu0 0
    %3847 = vmatprep.subr.bf16.mxu0 0
    %3848 = vmatpush2.bf16.msra.mxu0 0
    %3849 = vmatprep.mubr.bf16.mxu0 0
    %3850 = vmatmul.mubr.bf16.gmra.mxu0 %v3812
    %v3851 = vpop.f32.mrf.mxu0
    %v3852 = vadd.f32 0.0, %v3851
    %v3853 = vpop.f32.mrf.mxu0
    %v3854 = vpop.f32.mrf.mxu0
    %v3855 = vadd.f32 0.0, %v3854
    %v3856 = vpop.f32.mrf.mxu0
    %3857 = vdwg.mxu0
    %v3858 = vadd.f32 %v3809, %v3852
    %v3859 = vadd.f32 %v3810, %v3855
    %v3861 = vlaneseq
    %v3862 = vshrl.u32 %v3861, 7
    %v3863 = vsub.s32 0, %v3862
    %v3864 = vrot.slane %v3663, %v3863
    %v3866 = vadd.f32 %v3858, %v3864
    %v3867 = vadd.f32 %v3859, %v3864
    %v3868 = vld [vmem:[#allocation27] sm:$0xf]
    %v3869 = vld [vmem:[#allocation27 + $0x4] sm:$0xf]
    %v3870 = vld [vmem:[#allocation27 + $0x8] sm:$0xf]
    %v3871 = vld [vmem:[#allocation27 + $0xc] sm:$0xf]
    %v3872 = vld [vmem:[%s43] sm:$0x1]
    %v3873 = vpack.c.bf16 %v3354, %v3306
    %v3874 = vpack.c.bf16 %v3454, %v3404
    %v3875 = vpack.c.bf16 %v3554, %v3504
    %v3876 = vpack.c.bf16 %v3654, %v3604
    %v3878 = vsel %vm501, %v3874, 0
    %v3881 = vsel %vm1005, %v3869, 0
    %3883 = vmatprep.subr.bf16.mxu0 0
    %3884 = vmatpush1.bf16.msra.mxu0 0
    %3885 = vmatprep.subr.bf16.mxu0 0
    %3886 = vmatpush1.bf16.msra.mxu0 0
    %3887 = vmatprep.subr.bf16.mxu0 0
    %3888 = vmatpush1.bf16.msra.mxu0 0
    %3889 = vmatprep.subr.bf16.mxu0 0
    %3890 = vmatpush1.bf16.msra.mxu0 0
    %3891 = vmatprep.subr.bf16.mxu0 0
    %3892 = vmatpush1.bf16.msra.mxu0 0
    %3893 = vmatprep.subr.bf16.mxu0 0
    %3894 = vmatpush1.bf16.msra.mxu0 0
    %3895 = vmatprep.subr.bf16.mxu0 0
    %3896 = vmatpush1.bf16.msra.mxu0 0
    %3897 = vmatprep.subr.bf16.mxu0 0
    %3898 = vmatpush1.bf16.msra.mxu0 %v3881
    %3899 = vmatprep.subr.bf16.mxu0 0
    %3900 = vmatpush2.bf16.msra.mxu0 0
    %3901 = vmatprep.subr.bf16.mxu0 0
    %3902 = vmatpush2.bf16.msra.mxu0 0
    %3903 = vmatprep.subr.bf16.mxu0 0
    %3904 = vmatpush2.bf16.msra.mxu0 0
    %3905 = vmatprep.subr.bf16.mxu0 0
    %3906 = vmatpush2.bf16.msra.mxu0 0
    %3907 = vmatprep.subr.bf16.mxu0 0
    %3908 = vmatpush2.bf16.msra.mxu0 0
    %3909 = vmatprep.subr.bf16.mxu0 0
    %3910 = vmatpush2.bf16.msra.mxu0 0
    %3911 = vmatprep.subr.bf16.mxu0 0
    %3912 = vmatpush2.bf16.msra.mxu0 0
    %3913 = vmatprep.subr.bf16.mxu0 0
    %3914 = vmatpush2.bf16.msra.mxu0 0
    %3915 = vmatprep.mubr.bf16.mxu0 0
    %3916 = vmatmul.mubr.bf16.gmra.mxu0 %v3878
    %v3917 = vpop.f32.mrf.mxu0
    %v3918 = vadd.f32 0.0, %v3917
    %v3919 = vpop.f32.mrf.mxu0
    %v3920 = vpop.f32.mrf.mxu0
    %v3921 = vadd.f32 0.0, %v3920
    %v3922 = vpop.f32.mrf.mxu0
    %3923 = vdwg.mxu0
    %v3925 = vsel %vm501, %v3873, 0
    %v3928 = vsel %vm1005, %v3868, 0
    %3930 = vmatprep.subr.bf16.mxu0 0
    %3931 = vmatpush1.bf16.msra.mxu0 0
    %3932 = vmatprep.subr.bf16.mxu0 0
    %3933 = vmatpush1.bf16.msra.mxu0 0
    %3934 = vmatprep.subr.bf16.mxu0 0
    %3935 = vmatpush1.bf16.msra.mxu0 0
    %3936 = vmatprep.subr.bf16.mxu0 0
    %3937 = vmatpush1.bf16.msra.mxu0 0
    %3938 = vmatprep.subr.bf16.mxu0 0
    %3939 = vmatpush1.bf16.msra.mxu0 0
    %3940 = vmatprep.subr.bf16.mxu0 0
    %3941 = vmatpush1.bf16.msra.mxu0 0
    %3942 = vmatprep.subr.bf16.mxu0 0
    %3943 = vmatpush1.bf16.msra.mxu0 0
    %3944 = vmatprep.subr.bf16.mxu0 0
    %3945 = vmatpush1.bf16.msra.mxu0 %v3928
    %3946 = vmatprep.subr.bf16.mxu0 0
    %3947 = vmatpush2.bf16.msra.mxu0 0
    %3948 = vmatprep.subr.bf16.mxu0 0
    %3949 = vmatpush2.bf16.msra.mxu0 0
    %3950 = vmatprep.subr.bf16.mxu0 0
    %3951 = vmatpush2.bf16.msra.mxu0 0
    %3952 = vmatprep.subr.bf16.mxu0 0
    %3953 = vmatpush2.bf16.msra.mxu0 0
    %3954 = vmatprep.subr.bf16.mxu0 0
    %3955 = vmatpush2.bf16.msra.mxu0 0
    %3956 = vmatprep.subr.bf16.mxu0 0
    %3957 = vmatpush2.bf16.msra.mxu0 0
    %3958 = vmatprep.subr.bf16.mxu0 0
    %3959 = vmatpush2.bf16.msra.mxu0 0
    %3960 = vmatprep.subr.bf16.mxu0 0
    %3961 = vmatpush2.bf16.msra.mxu0 0
    %3962 = vmatprep.mubr.bf16.mxu0 0
    %3963 = vmatmul.mubr.bf16.gmra.mxu0 %v3925
    %v3964 = vpop.f32.mrf.mxu0
    %v3965 = vadd.f32 %v3918, %v3964
    %v3966 = vpop.f32.mrf.mxu0
    %v3967 = vpop.f32.mrf.mxu0
    %v3968 = vadd.f32 %v3921, %v3967
    %v3969 = vpop.f32.mrf.mxu0
    %3970 = vdwg.mxu0
    %v3972 = vsel %vm501, %v3875, 0
    %v3975 = vsel %vm1005, %v3870, 0
    %3977 = vmatprep.subr.bf16.mxu0 0
    %3978 = vmatpush1.bf16.msra.mxu0 0
    %3979 = vmatprep.subr.bf16.mxu0 0
    %3980 = vmatpush1.bf16.msra.mxu0 0
    %3981 = vmatprep.subr.bf16.mxu0 0
    %3982 = vmatpush1.bf16.msra.mxu0 0
    %3983 = vmatprep.subr.bf16.mxu0 0
    %3984 = vmatpush1.bf16.msra.mxu0 0
    %3985 = vmatprep.subr.bf16.mxu0 0
    %3986 = vmatpush1.bf16.msra.mxu0 0
    %3987 = vmatprep.subr.bf16.mxu0 0
    %3988 = vmatpush1.bf16.msra.mxu0 0
    %3989 = vmatprep.subr.bf16.mxu0 0
    %3990 = vmatpush1.bf16.msra.mxu0 0
    %3991 = vmatprep.subr.bf16.mxu0 0
    %3992 = vmatpush1.bf16.msra.mxu0 %v3975
    %3993 = vmatprep.subr.bf16.mxu0 0
    %3994 = vmatpush2.bf16.msra.mxu0 0
    %3995 = vmatprep.subr.bf16.mxu0 0
    %3996 = vmatpush2.bf16.msra.mxu0 0
    %3997 = vmatprep.subr.bf16.mxu0 0
    %3998 = vmatpush2.bf16.msra.mxu0 0
    %3999 = vmatprep.subr.bf16.mxu0 0
    %4000 = vmatpush2.bf16.msra.mxu0 0
    %4001 = vmatprep.subr.bf16.mxu0 0
    %4002 = vmatpush2.bf16.msra.mxu0 0
    %4003 = vmatprep.subr.bf16.mxu0 0
    %4004 = vmatpush2.bf16.msra.mxu0 0
    %4005 = vmatprep.subr.bf16.mxu0 0
    %4006 = vmatpush2.bf16.msra.mxu0 0
    %4007 = vmatprep.subr.bf16.mxu0 0
    %4008 = vmatpush2.bf16.msra.mxu0 0
    %4009 = vmatprep.mubr.bf16.mxu0 0
    %4010 = vmatmul.mubr.bf16.gmra.mxu0 %v3972
    %v4011 = vpop.f32.mrf.mxu0
    %v4012 = vadd.f32 0.0, %v4011
    %v4013 = vpop.f32.mrf.mxu0
    %v4014 = vpop.f32.mrf.mxu0
    %v4015 = vadd.f32 0.0, %v4014
    %v4016 = vpop.f32.mrf.mxu0
    %4017 = vdwg.mxu0
    %v4018 = vadd.f32 %v3965, %v4012
    %v4019 = vadd.f32 %v3968, %v4015
    %v4021 = vsel %vm501, %v3876, 0
    %v4024 = vsel %vm1005, %v3871, 0
    %4026 = vmatprep.subr.bf16.mxu0 0
    %4027 = vmatpush1.bf16.msra.mxu0 0
    %4028 = vmatprep.subr.bf16.mxu0 0
    %4029 = vmatpush1.bf16.msra.mxu0 0
    %4030 = vmatprep.subr.bf16.mxu0 0
    %4031 = vmatpush1.bf16.msra.mxu0 0
    %4032 = vmatprep.subr.bf16.mxu0 0
    %4033 = vmatpush1.bf16.msra.mxu0 0
    %4034 = vmatprep.subr.bf16.mxu0 0
    %4035 = vmatpush1.bf16.msra.mxu0 0
    %4036 = vmatprep.subr.bf16.mxu0 0
    %4037 = vmatpush1.bf16.msra.mxu0 0
    %4038 = vmatprep.subr.bf16.mxu0 0
    %4039 = vmatpush1.bf16.msra.mxu0 0
    %4040 = vmatprep.subr.bf16.mxu0 0
    %4041 = vmatpush1.bf16.msra.mxu0 %v4024
    %4042 = vmatprep.subr.bf16.mxu0 0
    %4043 = vmatpush2.bf16.msra.mxu0 0
    %4044 = vmatprep.subr.bf16.mxu0 0
    %4045 = vmatpush2.bf16.msra.mxu0 0
    %4046 = vmatprep.subr.bf16.mxu0 0
    %4047 = vmatpush2.bf16.msra.mxu0 0
    %4048 = vmatprep.subr.bf16.mxu0 0
    %4049 = vmatpush2.bf16.msra.mxu0 0
    %4050 = vmatprep.subr.bf16.mxu0 0
    %4051 = vmatpush2.bf16.msra.mxu0 0
    %4052 = vmatprep.subr.bf16.mxu0 0
    %4053 = vmatpush2.bf16.msra.mxu0 0
    %4054 = vmatprep.subr.bf16.mxu0 0
    %4055 = vmatpush2.bf16.msra.mxu0 0
    %4056 = vmatprep.subr.bf16.mxu0 0
    %4057 = vmatpush2.bf16.msra.mxu0 0
    %4058 = vmatprep.mubr.bf16.mxu0 0
    %4059 = vmatmul.mubr.bf16.gmra.mxu0 %v4021
    %v4060 = vpop.f32.mrf.mxu0
    %v4061 = vadd.f32 0.0, %v4060
    %v4062 = vpop.f32.mrf.mxu0
    %v4063 = vpop.f32.mrf.mxu0
    %v4064 = vadd.f32 0.0, %v4063
    %v4065 = vpop.f32.mrf.mxu0
    %4066 = vdwg.mxu0
    %v4067 = vadd.f32 %v4018, %v4061
    %v4068 = vadd.f32 %v4019, %v4064
    %v4070 = vlaneseq
    %v4071 = vshrl.u32 %v4070, 7
    %v4072 = vsub.s32 0, %v4071
    %v4073 = vrot.slane %v3872, %v4072
    %v4075 = vadd.f32 %v4067, %v4073
    %v4076 = vadd.f32 %v4068, %v4073
    %v4077 = vld [vmem:[%s45] sm:$0x1]
    %v4079 = vlaneseq
    %v4080 = vshrl.u32 %v4079, 7
    %v4081 = vsub.s32 0, %v4080
    %v4082 = vrot.slane %v4077, %v4081
    %v4084 = vmul.f32 %v3866, %v4082
    %v4085 = vmul.f32 %v3867, %v4082
    %v4086 = vsel %vm363, %v4084, 0.0
    %4087 = vadd.xlane.f32.xlu0 %v4086
    %v4088 = vpop.xlane.xlu0 %4087
    %v4089 = vsel %vm363, %v4085, 0.0
    %4090 = vadd.xlane.f32.xlu0 %v4089
    %v4091 = vpop.xlane.xlu0 %4090
    %4092 = vrot.lane.b32.xlu0 %v4082, 96
    %v4093 = vpop.permute.xlu0 %4092
    %v4095 = vmul.f32 %v4075, %v4093
    %v4096 = vmul.f32 %v4076, %v4093
    %v4097 = vsel %vm363, %v4095, 0.0
    %4098 = vadd.xlane.f32.xlu0 %v4097
    %v4099 = vpop.xlane.xlu0 %4098
    %v4100 = vsel %vm363, %v4096, 0.0
    %4101 = vadd.xlane.f32.xlu0 %v4100
    %v4102 = vpop.xlane.xlu0 %4101
    %v4103 = vadd.f32 %v4088, %v4099
    %v4104 = vadd.f32 %v4091, %v4102
    %v4105 = vld [vmem:[#allocation2] sm:$0x1]
    %v4107 = vlaneseq
    %v4108 = vshrl.u32 %v4107, 7
    %v4109 = vsub.s32 0, %v4108
    %v4110 = vrot.slane %v4105, %v4109
    %v4112 = vadd.f32 %v4103, %v4110
    %v4113 = vadd.f32 %v4104, %v4110
    %v4114 = vxor.u32 %v4112, 2147483648
    %v4115 = vxor.u32 %v4113, 2147483648
    %v4116 = vmul.f32 %v4114, 1.442695
    %v4117 = vpow.pop %v4116
    %v4118 = vmul.f32 %v4115, 1.442695
    %v4119 = vpow.pop %v4118
    %v4120 = vadd.f32 %v4117, 1.0
    %v4121 = vadd.f32 %v4119, 1.0
    %v4122 = vrcp.pop %v4120
    %v4123 = vmul.f32 1.0, %v4122
    %v4124 = vrcp.pop %v4121
    %v4125 = vmul.f32 1.0, %v4124
    %4127 = vset.pattern.permute.xlu0 0
    %4128 = vperm.xlu0 %4127, %v4123
    %v4129 = vpop.permute.xlu0 %4128
    %4132 = vset.pattern.permute.xlu0 0
    %4133 = vperm.xlu0 %4132, %v4125
    %v4134 = vpop.permute.xlu0 %4133
    %v4136 = vmul.f32 %v4129, %v3866
    %v4137 = vmul.f32 %v4134, %v3867
    %v4138 = vsub.f32 1.0, %v4123
    %v4139 = vsub.f32 1.0, %v4125
    %4141 = vset.pattern.permute.xlu0 0
    %4142 = vperm.xlu0 %4141, %v4138
    %v4143 = vpop.permute.xlu0 %4142
    %4146 = vset.pattern.permute.xlu0 0
    %4147 = vperm.xlu0 %4146, %v4139
    %v4148 = vpop.permute.xlu0 %4147
    %v4150 = vmul.f32 %v4143, %v4075
    %v4151 = vmul.f32 %v4148, %v4076
    %v4152 = vadd.f32 %v4136, %v4150
    %v4153 = vadd.f32 %v4137, %v4151
    %v4154 = vadd.f32 %v4152, %v1594
    %v4155 = vadd.f32 %v4153, %v1595
    %v4156 = vsel %vm363, %v4154, 0.0
    %4157 = vadd.xlane.f32.xlu0 %v4156
    %v4158 = vpop.xlane.xlu0 %4157
    %v4159 = vsel %vm363, %v4155, 0.0
    %4160 = vadd.xlane.f32.xlu0 %v4159
    %v4161 = vpop.xlane.xlu0 %4160
    %v4162 = vmul.f32 %v4158, %v370
    %v4163 = vmul.f32 %v4161, %v370
    %v4164 = vsub.f32 %v4154, %v4162
    %v4165 = vsub.f32 %v4155, %v4163
    %v4166 = vmul.f32 %v4164, %v4164
    %v4167 = vmul.f32 %v4165, %v4165
    %v4168 = vsel %vm363, %v4166, 0.0
    %4169 = vadd.xlane.f32.xlu0 %v4168
    %v4170 = vpop.xlane.xlu0 %4169
    %v4171 = vsel %vm363, %v4167, 0.0
    %4172 = vadd.xlane.f32.xlu0 %v4171
    %v4173 = vpop.xlane.xlu0 %4172
    %v4174 = vmul.f32 %v4170, %v370
    %v4175 = vmul.f32 %v4173, %v370
    %v4176 = vadd.f32 %v4174, 1e-06
    %v4177 = vadd.f32 %v4175, 1e-06
    %v4178 = vrsqrt.pop %v4176
    %v4179 = vrsqrt.pop %v4177
    %v4180 = vmul.f32 %v4164, %v4178
    %v4181 = vmul.f32 %v4165, %v4179
    %v4182 = vlaneseq
    %v4183 = vshrl.u32 %v4182, 7
    %v4184 = vsub.s32 4, %v4183
    %v4185 = vrot.slane %v362, %v4184
    %v4186 = vmul.f32 %v4180, %v4185
    %v4187 = vmul.f32 %v4181, %v4185
    %v4188 = vlaneseq
    %v4189 = vshrl.u32 %v4188, 7
    %v4190 = vsub.s32 5, %v4189
    %v4191 = vrot.slane %v362, %v4190
    %v4192 = vadd.f32 %v4186, %v4191
    %v4193 = vadd.f32 %v4187, %v4191
    %v4194 = vpack.c.bf16 %v4193, %v4192
    %v4195 = vld [vmem:[#allocation29] sm:$0xf]
    %v4196 = vld [vmem:[#allocation29 + $0x4] sm:$0xf]
    %v4197 = vld [vmem:[#allocation29 + $0x8] sm:$0xf]
    %v4198 = vld [vmem:[#allocation29 + $0xc] sm:$0xf]
    %v4199 = vld [vmem:[%s51] sm:$0x1]
    %v4201 = vlaneseq
    %v4202 = vshrl.u32 %v4201, 7
    %v4203 = vsub.s32 0, %v4202
    %v4204 = vrot.slane %v4199, %v4203
    %v4210 = vunpack.c.l.b16 %v4195
    %v4211 = vunpack.c.l.b16 %v4196
    %v4212 = vunpack.c.l.b16 %v4197
    %v4213 = vunpack.c.l.b16 %v4198
    %v4214 = vpack.c.b16 %v4211, %v4210
    %v4215 = vpack.c.b16 %v4213, %v4212
    %v4219 = vsel %vm363, %v4194, 0
    %4221 = vmatprep.subr.bf16.mxu0 0
    %4222 = vmatpush1.bf16.msra.mxu0 0
    %4223 = vmatprep.subr.bf16.mxu0 0
    %4224 = vmatpush1.bf16.msra.mxu0 0
    %4225 = vmatprep.subr.bf16.mxu0 0
    %4226 = vmatpush1.bf16.msra.mxu0 0
    %4227 = vmatprep.subr.bf16.mxu0 0
    %4228 = vmatpush1.bf16.msra.mxu0 0
    %4229 = vmatprep.subr.bf16.mxu0 0
    %4230 = vmatpush1.bf16.msra.mxu0 0
    %4231 = vmatprep.subr.bf16.mxu0 0
    %4232 = vmatpush1.bf16.msra.mxu0 0
    %4233 = vmatprep.subr.bf16.mxu0 0
    %4234 = vmatpush1.bf16.msra.mxu0 %v4215
    %4235 = vmatprep.subr.bf16.mxu0 0
    %4236 = vmatpush1.bf16.msra.mxu0 %v4214
    %4237 = vmatprep.subr.bf16.mxu0 0
    %4238 = vmatpush2.bf16.msra.mxu0 0
    %4239 = vmatprep.subr.bf16.mxu0 0
    %4240 = vmatpush2.bf16.msra.mxu0 0
    %4241 = vmatprep.subr.bf16.mxu0 0
    %4242 = vmatpush2.bf16.msra.mxu0 0
    %4243 = vmatprep.subr.bf16.mxu0 0
    %4244 = vmatpush2.bf16.msra.mxu0 0
    %4245 = vmatprep.subr.bf16.mxu0 0
    %4246 = vmatpush2.bf16.msra.mxu0 0
    %4247 = vmatprep.subr.bf16.mxu0 0
    %4248 = vmatpush2.bf16.msra.mxu0 0
    %4249 = vmatprep.subr.bf16.mxu0 0
    %4250 = vmatpush2.bf16.msra.mxu0 0
    %4251 = vmatprep.subr.bf16.mxu0 0
    %4252 = vmatpush2.bf16.msra.mxu0 0
    %4253 = vmatprep.mubr.bf16.mxu0 0
    %4254 = vmatmul.mubr.bf16.gmra.mxu0 %v4219
    %v4255 = vpop.f32.mrf.mxu0
    %v4256 = vadd.f32 %v4204, %v4255
    %v4257 = vpop.f32.mrf.mxu0
    %v4258 = vpop.f32.mrf.mxu0
    %v4259 = vadd.f32 %v4204, %v4258
    %v4260 = vpop.f32.mrf.mxu0
    %4261 = vdwg.mxu0
    %v4262 = vmax.f32 %v4256, 0.0
    %v4263 = vmax.f32 %v4259, 0.0
    %v4264 = vpack.c.bf16 %v4263, %v4262
    %v4265 = vld [vmem:[%s53] sm:$0xf]
    %v4266 = vld [vmem:[%s53 + $0x4] sm:$0xf]
    %v4267 = vld [vmem:[%s53 + $0x8] sm:$0xf]
    %v4268 = vld [vmem:[%s53 + $0xc] sm:$0xf]
    %v4269 = vld [vmem:[%s53 + $0x10] sm:$0xf]
    %v4270 = vld [vmem:[%s53 + $0x14] sm:$0xf]
    %v4271 = vld [vmem:[%s53 + $0x18] sm:$0xf]
    %v4272 = vld [vmem:[%s53 + $0x1c] sm:$0xf]
    %v4273 = vld [vmem:[%s55] sm:$0x1]
    %v4275 = vlaneseq
    %v4276 = vshrl.u32 %v4275, 7
    %v4277 = vsub.s32 0, %v4276
    %v4278 = vrot.slane %v4273, %v4277
    %v4288 = vunpack.c.l.b16 %v4265
    %v4289 = vunpack.c.l.b16 %v4266
    %v4290 = vunpack.c.l.b16 %v4267
    %v4291 = vunpack.c.l.b16 %v4268
    %v4292 = vunpack.c.l.b16 %v4269
    %v4293 = vunpack.c.l.b16 %v4270
    %v4294 = vunpack.c.l.b16 %v4271
    %v4295 = vunpack.c.l.b16 %v4272
    %v4296 = vpack.c.b16 %v4289, %v4288
    %v4297 = vpack.c.b16 %v4291, %v4290
    %v4298 = vpack.c.b16 %v4293, %v4292
    %v4299 = vpack.c.b16 %v4295, %v4294
    %vm4304 = vcmask 523264
    %v4306 = vsel %vm4304, %v4264, 0
    %4308 = vmatprep.subr.bf16.mxu0 0
    %4309 = vmatpush1.bf16.msra.mxu0 0
    %4310 = vmatprep.subr.bf16.mxu0 0
    %4311 = vmatpush1.bf16.msra.mxu0 0
    %4312 = vmatprep.subr.bf16.mxu0 0
    %4313 = vmatpush1.bf16.msra.mxu0 0
    %4314 = vmatprep.subr.bf16.mxu0 0
    %4315 = vmatpush1.bf16.msra.mxu0 0
    %4316 = vmatprep.subr.bf16.mxu0 0
    %4317 = vmatpush1.bf16.msra.mxu0 %v4299
    %4318 = vmatprep.subr.bf16.mxu0 0
    %4319 = vmatpush1.bf16.msra.mxu0 %v4298
    %4320 = vmatprep.subr.bf16.mxu0 0
    %4321 = vmatpush1.bf16.msra.mxu0 %v4297
    %4322 = vmatprep.subr.bf16.mxu0 0
    %4323 = vmatpush1.bf16.msra.mxu0 %v4296
    %4324 = vmatprep.subr.bf16.mxu0 0
    %4325 = vmatpush2.bf16.msra.mxu0 0
    %4326 = vmatprep.subr.bf16.mxu0 0
    %4327 = vmatpush2.bf16.msra.mxu0 0
    %4328 = vmatprep.subr.bf16.mxu0 0
    %4329 = vmatpush2.bf16.msra.mxu0 0
    %4330 = vmatprep.subr.bf16.mxu0 0
    %4331 = vmatpush2.bf16.msra.mxu0 0
    %4332 = vmatprep.subr.bf16.mxu0 0
    %4333 = vmatpush2.bf16.msra.mxu0 0
    %4334 = vmatprep.subr.bf16.mxu0 0
    %4335 = vmatpush2.bf16.msra.mxu0 0
    %4336 = vmatprep.subr.bf16.mxu0 0
    %4337 = vmatpush2.bf16.msra.mxu0 0
    %4338 = vmatprep.subr.bf16.mxu0 0
    %4339 = vmatpush2.bf16.msra.mxu0 0
    %4340 = vmatprep.mubr.bf16.mxu0 0
    %4341 = vmatmul.mubr.bf16.gmra.mxu0 %v4306
    %v4342 = vpop.f32.mrf.mxu0
    %v4343 = vadd.f32 %v4278, %v4342
    %v4344 = vpop.f32.mrf.mxu0
    %v4345 = vpop.f32.mrf.mxu0
    %v4346 = vadd.f32 %v4278, %v4345
    %v4347 = vpop.f32.mrf.mxu0
    %4348 = vdwg.mxu0
    %v4349 = vadd.f32 %v4343, %v4154
    %v4350 = vadd.f32 %v4346, %v4155
    %4351 = vst.msk [vmem:[#allocation30] sm:$0xff] %vm363, %v4349
    %4352 = vst.msk [vmem:[#allocation30 + $0x8] sm:$0xff] %vm363, %v4350
    // Predicated region
    $region182: #{tpu_custom_call.1} parent=1 // pred_check
      _
    $region183: #{tpu_custom_call.1} parent=1 // pred_check_branch
      %4354 = sbr.rel (0) target = $region185
    $region184: #{tpu_custom_call.1} parent=1 // pred_region
      %s4356 = ssub.s32 256, 256
      %4357 = vsyncadd [#allocation5], %s4356
      %s4358 = sshll.u32 [#allocation30], 4
      %s4359 = int_to_ptr.vmem [resolvable:$true] %s4358
      %4364 = dma.vmem_to_hbm [thread:$0]  %s4359, 256, %s57, [#allocation5], 128, 128, 8
    $region185: #{tpu_custom_call.1} parent=1 // pred_fallthru
      _
    // Predicated region
    $region186: #{tpu_custom_call.1} parent=1 // pred_check
      _
    $region187: #{tpu_custom_call.1} parent=1 // pred_check_branch
      %4366 = sbr.rel (0) target = $region189
    $region188: #{tpu_custom_call.1} parent=1 // pred_region
      %s4368 = ssub.s32 256, 256
      %4369 = vsyncadd [#allocation32], %s4368
      %s4370 = sshll.u32 [#allocation31], 4
      %s4371 = int_to_ptr.vmem [resolvable:$true] %s4370
      %4376 = dma.vmem_to_hbm [thread:$0]  %s4371, 256, %s59, [#allocation32], 128, 128, 8
    $region189: #{tpu_custom_call.1} parent=1 // pred_fallthru
      _
    // Predicated region
    $region190: #{tpu_custom_call.1} parent=1 // pred_check
      _
    $region191: #{tpu_custom_call.1} parent=1 // pred_check_branch
      %4378 = sbr.rel (0) target = $region193
    $region192: #{tpu_custom_call.1} parent=1 // pred_region
      %4379 = dma.done [#allocation5], 256
    $region193: #{tpu_custom_call.1} parent=1 // pred_fallthru
      _
    // Predicated region
    $region194: #{tpu_custom_call.1} parent=1 // pred_check
      _
    $region195: #{tpu_custom_call.1} parent=1 // pred_check_branch
      %4381 = sbr.rel (0) target = $region197
    $region196: #{tpu_custom_call.1} parent=1 // pred_region
      %4382 = dma.done [#allocation32], 256
    $region197: #{tpu_custom_call.1} parent=1 // pred_fallthru
      _
    %4383 = vsyncpa [#allocation4], 1
    %4384 = vsyncpa [#allocation7], 1
    %4385 = vsyncpa [#allocation10], 1
    %4386 = vsyncpa [#allocation13], 1
    %4387 = vsyncpa [#allocation16], 1
    %4388 = vsyncpa [#allocation19], 1
    %4389 = vsyncpa [#allocation22], 1
    %4390 = vsyncpa [#allocation25], 1
    %4391 = vsyncpa [#allocation28], 1
    %4392 = vsyncpa [#allocation5], 1
    %4393 = vsyncpa [#allocation32], 1

</llo_original>
